<compile_context>
chip_gen: v7x
topology: tpu7x:2x2x1
jax: 0.10.0
libtpu: 0.0.40
codegen_flags: <defaults>
</compile_context>

<pallas_src>
import functools
import math

import jax
import jax.numpy as jnp
from jax.experimental import pallas as pl
from jax.experimental.pallas import tpu as pltpu

EPS = 1e-5  # nn.LayerNorm default


def _layernorm(x, gamma, beta):
    # f32 statistics (biased variance, eps=1e-5) to match PyTorch.
    mu = jnp.mean(x, axis=-1, keepdims=True)
    var = jnp.mean((x - mu) ** 2, axis=-1, keepdims=True)
    return (x - mu) * jax.lax.rsqrt(var + EPS) * gamma + beta


# ----------------------------------------------------------------------------
# Kernels
# ----------------------------------------------------------------------------
def patch_embed_kernel(p_ref, w_ref, b_ref, o_ref):
    # (tm, C*p*p)[bf16] @ (C*p*p, D)[bf16] -> f32 acc, + f32 bias
    o_ref[...] = (
        jnp.dot(p_ref[...], w_ref[...], preferred_element_type=jnp.float32)
        + b_ref[...]
    )


_NT_DIMS = (((1,), (1,)), ((), ()))  # contract last dims: q @ k^T without a transpose op


def encoder_stack_kernel(x_ref, ln1g_ref, ln1b_ref, wqkv_ref, bqkv_ref,
                         wo_ref, bo_ref, ln2g_ref, ln2b_ref,
                         w1_ref, b1_ref, w2_ref, b2_ref,
                         o_ref, act_ref, ctx_ref,
                         *, num_heads, block_b, seq_len):
    l = pl.program_id(1)

    # Residual stream stays resident in VMEM across the (arbitrary) layer axis.
    @pl.when(l == 0)
    def _():
        act_ref[...] = x_ref[...]

    x = act_ref[...]                      # (block_b*S, D) f32 residual stream
    M, D = x.shape
    H = num_heads
    dh = D // H
    scale = 1.0 / math.sqrt(dh)

    # ---- multi-head self-attention (pre-LN), residual add ----
    xn = _layernorm(x, ln1g_ref[...], ln1b_ref[...])
    qkv = (
        jnp.dot(xn.astype(jnp.bfloat16), wqkv_ref[...],
                preferred_element_type=jnp.float32)
        + bqkv_ref[...]
    )                                      # (M, 3D) f32

    # Attention score/context matmuls run per (batch-element, head); the heavy
    # projection/MLP matmuls above/below use the full batch-folded M.
    for b in range(block_b):
        r = b * seq_len
        heads = []
        for h in range(H):
            c = h * dh
            qh = qkv[r:r + seq_len, c:c + dh].astype(jnp.bfloat16)
            kh = qkv[r:r + seq_len, D + c:D + c + dh].astype(jnp.bfloat16)
            vh = qkv[r:r + seq_len, 2 * D + c:2 * D + c + dh].astype(jnp.bfloat16)
            s = jax.lax.dot_general(qh, kh, _NT_DIMS,
                                    preferred_element_type=jnp.float32) * scale
            s = s - jnp.max(s, axis=-1, keepdims=True)
            p = jnp.exp(s)                                    # f32 softmax
            p = p * pl.reciprocal(jnp.sum(p, axis=-1, keepdims=True), approx=True)
            # TODO(synk): attn_dropout omitted (eval/inference mode => identity)
            heads.append(jnp.dot(p.astype(jnp.bfloat16), vh,
                                 preferred_element_type=jnp.float32))
        ctx_ref[r:r + seq_len, :] = jnp.concatenate(heads, axis=-1)

    attn = (
        jnp.dot(ctx_ref[...].astype(jnp.bfloat16), wo_ref[...],
                preferred_element_type=jnp.float32)
        + bo_ref[...]
    )
    x = x + attn

    # ---- MLP (pre-LN), exact-erf GELU, residual add ----
    xn2 = _layernorm(x, ln2g_ref[...], ln2b_ref[...])
    h1 = (
        jnp.dot(xn2.astype(jnp.bfloat16), w1_ref[...],
                preferred_element_type=jnp.float32)
        + b1_ref[...]
    )
    h1 = 0.5 * h1 * (1.0 + jax.lax.erf(h1 * (1.0 / math.sqrt(2.0))))
    # TODO(synk): mlp_dropout omitted (eval/inference mode => identity)
    h2 = (
        jnp.dot(h1.astype(jnp.bfloat16), w2_ref[...],
                preferred_element_type=jnp.float32)
        + b2_ref[...]
    )
    x = x + h2

    act_ref[...] = x

    @pl.when(l == pl.num_programs(1) - 1)
    def _():
        o_ref[...] = x


def classifier_kernel(x_ref, g_ref, b_ref, w_ref, bias_ref, o_ref):
    xn = _layernorm(x_ref[...], g_ref[...], b_ref[...])
    o_ref[...] = (
        jnp.dot(xn.astype(jnp.bfloat16), w_ref[...],
                preferred_element_type=jnp.float32)
        + bias_ref[...]
    )


# ----------------------------------------------------------------------------
# Wrappers (pallas_call plumbing)
# ----------------------------------------------------------------------------
def patch_embed(patches, w, b):
    BN, Cpp = patches.shape
    D = w.shape[1]
    if BN % 256 == 0:
        tm = 256
    elif BN % 128 == 0:
        tm = 128
    else:
        tm = BN
    return pl.pallas_call(
        patch_embed_kernel,
        out_shape=jax.ShapeDtypeStruct((BN, D), jnp.float32),
        grid=(BN // tm,),
        in_specs=[
            pl.BlockSpec((tm, Cpp), lambda i: (i, 0)),
            pl.BlockSpec((Cpp, D), lambda i: (0, 0)),
            pl.BlockSpec((1, D), lambda i: (0, 0)),
        ],
        out_specs=pl.BlockSpec((tm, D), lambda i: (i, 0)),
        compiler_params=pltpu.CompilerParams(dimension_semantics=("parallel",)),
    )(patches, w, b)


def encoder_stack(x, p, *, num_heads, block_b):
    B, S, D = x.shape
    L = p["wqkv"].shape[0]
    MLP = p["w1"].shape[2]
    assert B % block_b == 0
    nb = B // block_b
    rows = block_b * S

    x3 = x.reshape(nb, rows, D)

    def wspec(shape):
        # stacked per-layer tensor with leading L axis squeezed away
        return pl.BlockSpec((None,) + shape,
                            lambda bb, l, _s=shape: (l,) + (0,) * len(_s))

    kernel = functools.partial(encoder_stack_kernel, num_heads=num_heads,
                               block_b=block_b, seq_len=S)
    # NOTE: for v7x (2 TensorCores) pick block_b = B // 2 so the parallel batch
    # axis has >= 2 iterations; at real sizes (D=768, MLP=3072) keep weights in
    # bf16 and K-tile the MLP matmuls to respect the 64 MiB VMEM budget.
    out = pl.pallas_call(
        kernel,
        out_shape=jax.ShapeDtypeStruct((nb, rows, D), jnp.float32),
        grid=(nb, L),
        in_specs=[
            pl.BlockSpec((None, rows, D), lambda bb, l: (bb, 0, 0)),
            wspec((1, D)), wspec((1, D)),            # ln1 gamma/beta
            wspec((D, 3 * D)), wspec((1, 3 * D)),    # in-proj W (bf16), b
            wspec((D, D)), wspec((1, D)),            # out-proj W (bf16), b
            wspec((1, D)), wspec((1, D)),            # ln2 gamma/beta
            wspec((D, MLP)), wspec((1, MLP)),        # mlp fc1 (bf16), b
            wspec((MLP, D)), wspec((1, D)),          # mlp fc2 (bf16), b
        ],
        out_specs=pl.BlockSpec((None, rows, D), lambda bb, l: (bb, 0, 0)),
        scratch_shapes=[
            pltpu.VMEM((rows, D), jnp.float32),      # resident residual stream
            pltpu.VMEM((rows, D), jnp.float32),      # attention context slab
        ],
        compiler_params=pltpu.CompilerParams(
            dimension_semantics=("parallel", "arbitrary")),
    )(x3, p["ln1_g"], p["ln1_b"], p["wqkv"], p["bqkv"], p["wo"], p["bo"],
      p["ln2_g"], p["ln2_b"], p["w1"], p["b1"], p["w2"], p["b2"])
    return out.reshape(B, S, D)


def classify(cls_tok, g, b, w, bias):
    B, D = cls_tok.shape
    C = w.shape[1]
    return pl.pallas_call(
        classifier_kernel,
        out_shape=jax.ShapeDtypeStruct((B, C), jnp.float32),
        grid=(1,),
        in_specs=[
            pl.BlockSpec((B, D), lambda i: (0, 0)),
            pl.BlockSpec((1, D), lambda i: (0, 0)),
            pl.BlockSpec((1, D), lambda i: (0, 0)),
            pl.BlockSpec((D, C), lambda i: (0, 0)),
            pl.BlockSpec((1, C), lambda i: (0, 0)),
        ],
        out_specs=pl.BlockSpec((B, C), lambda i: (0, 0)),
    )(cls_tok, g, b, w, bias)


def vit_forward(x, params, *, patch_size, num_heads):
    B, C, H, W = x.shape
    p = patch_size
    nh, nw = H // p, W // p
    N = nh * nw
    D = params["cls"].shape[-1]

    # Patch extraction = Conv2d(kernel=stride=p) unrolled to matmul (glue).
    patches = (
        x.reshape(B, C, nh, p, nw, p)
         .transpose(0, 2, 4, 1, 3, 5)            # (B, nh, nw, C, p, p)
         .reshape(B * N, C * p * p)
         .astype(jnp.bfloat16)
    )
    emb = patch_embed(patches, params["patch_w"], params["patch_b"]).reshape(B, N, D)

    cls = jnp.broadcast_to(params["cls"], (B, 1, D))
    seq = jnp.concatenate([cls, emb], axis=1) + params["pos"]
    # TODO(synk): embedding_dropout omitted (eval/inference mode => identity)

    seq = encoder_stack(seq, params["enc"], num_heads=num_heads, block_b=B)

    return classify(seq[:, 0], params["cls_ln_g"], params["cls_ln_b"],
                    params["head_w"], params["head_b"])


# ----------------------------------------------------------------------------
# Deterministic parameter init (synthetic, no checkpoint)
# ----------------------------------------------------------------------------
def init_params(key, *, in_channels, patch_size, num_patches, emb, mlp, layers,
                classes):
    std = 0.02
    Cpp = in_channels * patch_size * patch_size
    L = layers
    ks = jax.random.split(key, 8)
    kl = jax.random.split(ks[7], 4)

    def nrm(k, shape):
        return std * jax.random.normal(k, shape, jnp.float32)

    return {
        "cls": jax.random.normal(ks[0], (1, 1, emb), jnp.float32),
        "pos": jax.random.normal(ks[1], (1, num_patches + 1, emb), jnp.float32),
        "patch_w": nrm(ks[2], (Cpp, emb)).astype(jnp.bfloat16),
        "patch_b": jnp.zeros((1, emb), jnp.float32),
        "cls_ln_g": jnp.ones((1, emb), jnp.float32),
        "cls_ln_b": jnp.zeros((1, emb), jnp.float32),
        "head_w": nrm(ks[3], (emb, classes)).astype(jnp.bfloat16),
        "head_b": jnp.zeros((1, classes), jnp.float32),
        "enc": {  # per-layer tensors stacked along a leading L axis
            "ln1_g": jnp.ones((L, 1, emb), jnp.float32),
            "ln1_b": jnp.zeros((L, 1, emb), jnp.float32),
            "wqkv": nrm(kl[0], (L, emb, 3 * emb)).astype(jnp.bfloat16),
            "bqkv": jnp.zeros((L, 1, 3 * emb), jnp.float32),
            "wo": nrm(kl[1], (L, emb, emb)).astype(jnp.bfloat16),
            "bo": jnp.zeros((L, 1, emb), jnp.float32),
            "ln2_g": jnp.ones((L, 1, emb), jnp.float32),
            "ln2_b": jnp.zeros((L, 1, emb), jnp.float32),
            "w1": nrm(kl[2], (L, emb, mlp)).astype(jnp.bfloat16),
            "b1": jnp.zeros((L, 1, mlp), jnp.float32),
            "w2": nrm(kl[3], (L, mlp, emb)).astype(jnp.bfloat16),
            "b2": jnp.zeros((L, 1, emb), jnp.float32),
        },
    }


if __name__ == "__main__":
    # Small ViT config: img 16x16, patch 4 -> 16 patches, seq 17, D=128.
    B, C_IN, IMG, PATCH = 2, 3, 16, 4
    EMB, MLP, HEADS, LAYERS, CLASSES = 128, 128, 4, 2, 10
    NUM_PATCHES = (IMG // PATCH) ** 2

    key = jax.random.PRNGKey(0)
    k_params, k_x = jax.random.split(key)
    params = init_params(k_params, in_channels=C_IN, patch_size=PATCH,
                         num_patches=NUM_PATCHES, emb=EMB, mlp=MLP,
                         layers=LAYERS, classes=CLASSES)

    x = jax.random.normal(k_x, (B, C_IN, IMG, IMG), jnp.float32)  # NCHW

    fwd = jax.jit(functools.partial(vit_forward, patch_size=PATCH, num_heads=HEADS))
    out = jax.block_until_ready(fwd(x, params))
    assert out.shape == (B, CLASSES), out.shape
    assert jnp.all(jnp.isfinite(out))
    print("KERNEL_OK")
</pallas_src>

<mosaic_0001>
module attributes {stable_mosaic.version = 11 : i64} {
  func.func @patch_embed_kernel(%arg0: i32, %arg1: memref<32x48xbf16, #tpu.memory_space<vmem>>, %arg2: memref<48x128xbf16, #tpu.memory_space<vmem>>, %arg3: memref<1x128xf32, #tpu.memory_space<vmem>>, %arg4: memref<32x128xf32, #tpu.memory_space<vmem>>) attributes {dimension_semantics = [#tpu.dimension_semantics<parallel>], iteration_bounds = array<i64: 1>, scalar_prefetch = 0 : i64, scratch_operands = 0 : i64, tpu.core_type = #tpu.core_type<tc>, window_params = [{transform_indices = @transform_0, window_bounds = array<i64: 32, 48>}, {pipeline_mode = #tpu.pipeline_mode<synchronous>, transform_indices = @transform_1, window_bounds = array<i64: 48, 128>}, {pipeline_mode = #tpu.pipeline_mode<synchronous>, transform_indices = @transform_2, window_bounds = array<i64: 1, 128>}, {transform_indices = @transform_3, window_bounds = array<i64: 32, 128>}]} {
    %c0 = arith.constant 0 : index
    %c0_0 = arith.constant 0 : index
    %0 = vector.load %arg1[%c0, %c0_0] : memref<32x48xbf16, #tpu.memory_space<vmem>>, vector<32x48xbf16>
    %c0_1 = arith.constant 0 : index
    %c0_2 = arith.constant 0 : index
    %1 = vector.load %arg2[%c0_1, %c0_2] : memref<48x128xbf16, #tpu.memory_space<vmem>>, vector<48x128xbf16>
    %cst = arith.constant dense<0.000000e+00> : vector<32x128xf32>
    %2 = tpu.matmul %0, %1, %cst {dimension_numbers = #tpu.dot_dimension_numbers<[1], [0], [0], [1], [0, 0, 1, 1], [], []>} : vector<32x48xbf16>, vector<48x128xbf16>, vector<32x128xf32> -> vector<32x128xf32>
    %c0_3 = arith.constant 0 : index
    %c0_4 = arith.constant 0 : index
    %3 = vector.load %arg3[%c0_3, %c0_4] : memref<1x128xf32, #tpu.memory_space<vmem>>, vector<1x128xf32>
    %4 = vector.broadcast %3 : vector<1x128xf32> to vector<32x128xf32>
    %5 = arith.addf %2, %4 : vector<32x128xf32>
    %c0_5 = arith.constant 0 : index
    %c0_6 = arith.constant 0 : index
    %6 = vector.load %arg4[%c0_5, %c0_6] : memref<32x128xf32, #tpu.memory_space<vmem>>, vector<32x128xf32>
    tpu.vector_store %arg4[%c0_5, %c0_6], %5 {strides = array<i32>} : memref<32x128xf32, #tpu.memory_space<vmem>>, vector<32x128xf32>,
    return
  }
  func.func @transform_0(%arg0: i32) -> (i32, i32) {
    %c0_i32 = arith.constant 0 : i32
    %c0_i32_0 = arith.constant 0 : i32
    return %arg0, %c0_i32 : i32, i32
  }
  func.func @transform_1(%arg0: i32) -> (i32, i32) {
    %c0_i32 = arith.constant 0 : i32
    %c0_i32_0 = arith.constant 0 : i32
    %c0_i32_1 = arith.constant 0 : i32
    return %c0_i32, %c0_i32_0 : i32, i32
  }
  func.func @transform_2(%arg0: i32) -> (i32, i32) {
    %c0_i32 = arith.constant 0 : i32
    %c0_i32_0 = arith.constant 0 : i32
    %c0_i32_1 = arith.constant 0 : i32
    return %c0_i32, %c0_i32_0 : i32, i32
  }
  func.func @transform_3(%arg0: i32) -> (i32, i32) {
    %c0_i32 = arith.constant 0 : i32
    %c0_i32_0 = arith.constant 0 : i32
    return %arg0, %c0_i32 : i32, i32
  }
}

module attributes {stable_mosaic.version = 11 : i64} {
  func.func @encoder_stack_kernel(%arg0: i32, %arg1: i32, %arg2: memref<1x34x128xf32, #tpu.memory_space<vmem>>, %arg3: memref<1x1x128xf32, #tpu.memory_space<vmem>>, %arg4: memref<1x1x128xf32, #tpu.memory_space<vmem>>, %arg5: memref<1x128x384xbf16, #tpu.memory_space<vmem>>, %arg6: memref<1x1x384xf32, #tpu.memory_space<vmem>>, %arg7: memref<1x128x128xbf16, #tpu.memory_space<vmem>>, %arg8: memref<1x1x128xf32, #tpu.memory_space<vmem>>, %arg9: memref<1x1x128xf32, #tpu.memory_space<vmem>>, %arg10: memref<1x1x128xf32, #tpu.memory_space<vmem>>, %arg11: memref<1x128x128xbf16, #tpu.memory_space<vmem>>, %arg12: memref<1x1x128xf32, #tpu.memory_space<vmem>>, %arg13: memref<1x128x128xbf16, #tpu.memory_space<vmem>>, %arg14: memref<1x1x128xf32, #tpu.memory_space<vmem>>, %arg15: memref<1x34x128xf32, #tpu.memory_space<vmem>>, %arg16: memref<34x128xf32, #tpu.memory_space<vmem>>, %arg17: memref<34x128xf32, #tpu.memory_space<vmem>>) attributes {dimension_semantics = [#tpu.dimension_semantics<parallel>, #tpu.dimension_semantics<arbitrary>], iteration_bounds = array<i64: 1, 2>, scalar_prefetch = 0 : i64, scratch_operands = 2 : i64, tpu.core_type = #tpu.core_type<tc>, window_params = [{transform_indices = @transform_0, window_bounds = array<i64: 1, 34, 128>}, {transform_indices = @transform_1, window_bounds = array<i64: 1, 1, 128>}, {transform_indices = @transform_2, window_bounds = array<i64: 1, 1, 128>}, {transform_indices = @transform_3, window_bounds = array<i64: 1, 128, 384>}, {transform_indices = @transform_4, window_bounds = array<i64: 1, 1, 384>}, {transform_indices = @transform_5, window_bounds = array<i64: 1, 128, 128>}, {transform_indices = @transform_6, window_bounds = array<i64: 1, 1, 128>}, {transform_indices = @transform_7, window_bounds = array<i64: 1, 1, 128>}, {transform_indices = @transform_8, window_bounds = array<i64: 1, 1, 128>}, {transform_indices = @transform_9, window_bounds = array<i64: 1, 128, 128>}, {transform_indices = @transform_10, window_bounds = array<i64: 1, 1, 128>}, {transform_indices = @transform_11, window_bounds = array<i64: 1, 128, 128>}, {transform_indices = @transform_12, window_bounds = array<i64: 1, 1, 128>}, {transform_indices = @transform_13, window_bounds = array<i64: 1, 34, 128>}]} {
    %c0_i32 = arith.constant 0 : i32
    %0 = arith.cmpi eq, %arg1, %c0_i32 : i32
    %1 = arith.extui %0 : i1 to i32
    %c0_i32_0 = arith.constant 0 : i32
    %2 = arith.cmpi ne, %1, %c0_i32_0 : i32
    scf.if %2 {
      %c0_102 = arith.constant 0 : index
      %c0_103 = arith.constant 0 : index
      %c0_104 = arith.constant 0 : index
      %275 = vector.load %arg2[%c0_102, %c0_103, %c0_104] : memref<1x34x128xf32, #tpu.memory_space<vmem>>, vector<1x34x128xf32>
      %276 = vector.shape_cast %275 : vector<1x34x128xf32> to vector<34x128xf32>
      %c0_105 = arith.constant 0 : index
      %c0_106 = arith.constant 0 : index
      %277 = vector.load %arg16[%c0_105, %c0_106] : memref<34x128xf32, #tpu.memory_space<vmem>>, vector<34x128xf32>
      tpu.vector_store %arg16[%c0_105, %c0_106], %276 {strides = array<i32>} : memref<34x128xf32, #tpu.memory_space<vmem>>, vector<34x128xf32>,
    } else {
    }
    %c0 = arith.constant 0 : index
    %c0_1 = arith.constant 0 : index
    %3 = vector.load %arg16[%c0, %c0_1] : memref<34x128xf32, #tpu.memory_space<vmem>>, vector<34x128xf32>
    %c0_2 = arith.constant 0 : index
    %c0_3 = arith.constant 0 : index
    %c0_4 = arith.constant 0 : index
    %4 = vector.load %arg3[%c0_2, %c0_3, %c0_4] : memref<1x1x128xf32, #tpu.memory_space<vmem>>, vector<1x1x128xf32>
    %5 = vector.shape_cast %4 : vector<1x1x128xf32> to vector<1x128xf32>
    %c0_5 = arith.constant 0 : index
    %c0_6 = arith.constant 0 : index
    %c0_7 = arith.constant 0 : index
    %6 = vector.load %arg4[%c0_5, %c0_6, %c0_7] : memref<1x1x128xf32, #tpu.memory_space<vmem>>, vector<1x1x128xf32>
    %7 = vector.shape_cast %6 : vector<1x1x128xf32> to vector<1x128xf32>
    %cst = arith.constant dense<0.000000e+00> : vector<34xf32>
    %8 = vector.multi_reduction <add>, %3, %cst [1] : vector<34x128xf32> to vector<34xf32>
    %9 = vector.shape_cast %8 : vector<34xf32> to vector<34x1xf32>
    %cst_8 = arith.constant 1.280000e+02 : f32
    %10 = vector.broadcast %cst_8 : f32 to vector<34x1xf32>
    %11 = arith.divf %9, %10 : vector<34x1xf32>
    %12 = vector.broadcast %11 : vector<34x1xf32> to vector<34x128xf32>
    %13 = arith.subf %3, %12 : vector<34x128xf32>
    %14 = arith.mulf %13, %13 : vector<34x128xf32>
    %cst_9 = arith.constant dense<0.000000e+00> : vector<34xf32>
    %15 = vector.multi_reduction <add>, %14, %cst_9 [1] : vector<34x128xf32> to vector<34xf32>
    %16 = vector.shape_cast %15 : vector<34xf32> to vector<34x1xf32>
    %cst_10 = arith.constant 1.280000e+02 : f32
    %17 = vector.broadcast %cst_10 : f32 to vector<34x1xf32>
    %18 = arith.divf %16, %17 : vector<34x1xf32>
    %19 = vector.broadcast %11 : vector<34x1xf32> to vector<34x128xf32>
    %20 = arith.subf %3, %19 : vector<34x128xf32>
    %cst_11 = arith.constant 9.99999974E-6 : f32
    %21 = vector.broadcast %cst_11 : f32 to vector<34x1xf32>
    %22 = arith.addf %18, %21 : vector<34x1xf32>
    %23 = math.rsqrt %22 : vector<34x1xf32>
    %24 = vector.broadcast %23 : vector<34x1xf32> to vector<34x128xf32>
    %25 = arith.mulf %20, %24 : vector<34x128xf32>
    %26 = vector.broadcast %5 : vector<1x128xf32> to vector<34x128xf32>
    %27 = arith.mulf %25, %26 : vector<34x128xf32>
    %28 = vector.broadcast %7 : vector<1x128xf32> to vector<34x128xf32>
    %29 = arith.addf %27, %28 : vector<34x128xf32>
    %30 = arith.truncf %29 : vector<34x128xf32> to vector<34x128xbf16>
    %c0_12 = arith.constant 0 : index
    %c0_13 = arith.constant 0 : index
    %c0_14 = arith.constant 0 : index
    %31 = vector.load %arg5[%c0_12, %c0_13, %c0_14] : memref<1x128x384xbf16, #tpu.memory_space<vmem>>, vector<1x128x384xbf16>
    %32 = vector.shape_cast %31 : vector<1x128x384xbf16> to vector<128x384xbf16>
    %cst_15 = arith.constant dense<0.000000e+00> : vector<34x384xf32>
    %33 = tpu.matmul %30, %32, %cst_15 {dimension_numbers = #tpu.dot_dimension_numbers<[1], [0], [0], [1], [0, 0, 1, 1], [], []>} : vector<34x128xbf16>, vector<128x384xbf16>, vector<34x384xf32> -> vector<34x384xf32>
    %c0_16 = arith.constant 0 : index
    %c0_17 = arith.constant 0 : index
    %c0_18 = arith.constant 0 : index
    %34 = vector.load %arg6[%c0_16, %c0_17, %c0_18] : memref<1x1x384xf32, #tpu.memory_space<vmem>>, vector<1x1x384xf32>
    %35 = vector.shape_cast %34 : vector<1x1x384xf32> to vector<1x384xf32>
    %36 = vector.broadcast %35 : vector<1x384xf32> to vector<34x384xf32>
    %37 = arith.addf %33, %36 : vector<34x384xf32>
    %38 = vector.extract_strided_slice %37 {offsets = [0, 0], sizes = [17, 32], strides = [1, 1]} : vector<34x384xf32> to vector<17x32xf32>
    %39 = arith.truncf %38 : vector<17x32xf32> to vector<17x32xbf16>
    %40 = vector.extract_strided_slice %37 {offsets = [0, 128], sizes = [17, 32], strides = [1, 1]} : vector<34x384xf32> to vector<17x32xf32>
    %41 = arith.truncf %40 : vector<17x32xf32> to vector<17x32xbf16>
    %42 = vector.extract_strided_slice %37 {offsets = [0, 256], sizes = [17, 32], strides = [1, 1]} : vector<34x384xf32> to vector<17x32xf32>
    %43 = arith.truncf %42 : vector<17x32xf32> to vector<17x32xbf16>
    %cst_19 = arith.constant dense<0.000000e+00> : vector<17x17xf32>
    %44 = tpu.matmul %39, %41, %cst_19 {dimension_numbers = #tpu.dot_dimension_numbers<[1], [1], [0], [0], [0, 0, 1, 0], [], []>} : vector<17x32xbf16>, vector<17x32xbf16>, vector<17x17xf32> -> vector<17x17xf32>
    %cst_20 = arith.constant 0.176776692 : f32
    %45 = vector.broadcast %cst_20 : f32 to vector<17x17xf32>
    %46 = arith.mulf %44, %45 : vector<17x17xf32>
    %cst_21 = arith.constant dense<0xFF800000> : vector<17xf32>
    %47 = vector.multi_reduction <maximumf>, %46, %cst_21 [1] : vector<17x17xf32> to vector<17xf32>
    %48 = vector.shape_cast %47 : vector<17xf32> to vector<17x1xf32>
    %49 = vector.broadcast %48 : vector<17x1xf32> to vector<17x17xf32>
    %50 = arith.subf %46, %49 : vector<17x17xf32>
    %51 = math.exp %50 : vector<17x17xf32>
    %cst_22 = arith.constant dense<0.000000e+00> : vector<17xf32>
    %52 = vector.multi_reduction <add>, %51, %cst_22 [1] : vector<17x17xf32> to vector<17xf32>
    %53 = vector.shape_cast %52 : vector<17xf32> to vector<17x1xf32>
    %54 = tpu.reciprocal %53 {approx = true} : vector<17x1xf32> -> vector<17x1xf32>
    %55 = vector.broadcast %54 : vector<17x1xf32> to vector<17x17xf32>
    %56 = arith.mulf %51, %55 : vector<17x17xf32>
    %57 = arith.truncf %56 : vector<17x17xf32> to vector<17x17xbf16>
    %cst_23 = arith.constant dense<0.000000e+00> : vector<17x32xf32>
    %58 = tpu.matmul %57, %43, %cst_23 {dimension_numbers = #tpu.dot_dimension_numbers<[1], [0], [0], [1], [0, 0, 1, 1], [], []>} : vector<17x17xbf16>, vector<17x32xbf16>, vector<17x32xf32> -> vector<17x32xf32>
    %59 = vector.extract_strided_slice %37 {offsets = [0, 32], sizes = [17, 32], strides = [1, 1]} : vector<34x384xf32> to vector<17x32xf32>
    %60 = arith.truncf %59 : vector<17x32xf32> to vector<17x32xbf16>
    %61 = vector.extract_strided_slice %37 {offsets = [0, 160], sizes = [17, 32], strides = [1, 1]} : vector<34x384xf32> to vector<17x32xf32>
    %62 = arith.truncf %61 : vector<17x32xf32> to vector<17x32xbf16>
    %63 = vector.extract_strided_slice %37 {offsets = [0, 288], sizes = [17, 32], strides = [1, 1]} : vector<34x384xf32> to vector<17x32xf32>
    %64 = arith.truncf %63 : vector<17x32xf32> to vector<17x32xbf16>
    %cst_24 = arith.constant dense<0.000000e+00> : vector<17x17xf32>
    %65 = tpu.matmul %60, %62, %cst_24 {dimension_numbers = #tpu.dot_dimension_numbers<[1], [1], [0], [0], [0, 0, 1, 0], [], []>} : vector<17x32xbf16>, vector<17x32xbf16>, vector<17x17xf32> -> vector<17x17xf32>
    %cst_25 = arith.constant 0.176776692 : f32
    %66 = vector.broadcast %cst_25 : f32 to vector<17x17xf32>
    %67 = arith.mulf %65, %66 : vector<17x17xf32>
    %cst_26 = arith.constant dense<0xFF800000> : vector<17xf32>
    %68 = vector.multi_reduction <maximumf>, %67, %cst_26 [1] : vector<17x17xf32> to vector<17xf32>
    %69 = vector.shape_cast %68 : vector<17xf32> to vector<17x1xf32>
    %70 = vector.broadcast %69 : vector<17x1xf32> to vector<17x17xf32>
    %71 = arith.subf %67, %70 : vector<17x17xf32>
    %72 = math.exp %71 : vector<17x17xf32>
    %cst_27 = arith.constant dense<0.000000e+00> : vector<17xf32>
    %73 = vector.multi_reduction <add>, %72, %cst_27 [1] : vector<17x17xf32> to vector<17xf32>
    %74 = vector.shape_cast %73 : vector<17xf32> to vector<17x1xf32>
    %75 = tpu.reciprocal %74 {approx = true} : vector<17x1xf32> -> vector<17x1xf32>
    %76 = vector.broadcast %75 : vector<17x1xf32> to vector<17x17xf32>
    %77 = arith.mulf %72, %76 : vector<17x17xf32>
    %78 = arith.truncf %77 : vector<17x17xf32> to vector<17x17xbf16>
    %cst_28 = arith.constant dense<0.000000e+00> : vector<17x32xf32>
    %79 = tpu.matmul %78, %64, %cst_28 {dimension_numbers = #tpu.dot_dimension_numbers<[1], [0], [0], [1], [0, 0, 1, 1], [], []>} : vector<17x17xbf16>, vector<17x32xbf16>, vector<17x32xf32> -> vector<17x32xf32>
    %80 = vector.extract_strided_slice %37 {offsets = [0, 64], sizes = [17, 32], strides = [1, 1]} : vector<34x384xf32> to vector<17x32xf32>
    %81 = arith.truncf %80 : vector<17x32xf32> to vector<17x32xbf16>
    %82 = vector.extract_strided_slice %37 {offsets = [0, 192], sizes = [17, 32], strides = [1, 1]} : vector<34x384xf32> to vector<17x32xf32>
    %83 = arith.truncf %82 : vector<17x32xf32> to vector<17x32xbf16>
    %84 = vector.extract_strided_slice %37 {offsets = [0, 320], sizes = [17, 32], strides = [1, 1]} : vector<34x384xf32> to vector<17x32xf32>
    %85 = arith.truncf %84 : vector<17x32xf32> to vector<17x32xbf16>
    %cst_29 = arith.constant dense<0.000000e+00> : vector<17x17xf32>
    %86 = tpu.matmul %81, %83, %cst_29 {dimension_numbers = #tpu.dot_dimension_numbers<[1], [1], [0], [0], [0, 0, 1, 0], [], []>} : vector<17x32xbf16>, vector<17x32xbf16>, vector<17x17xf32> -> vector<17x17xf32>
    %cst_30 = arith.constant 0.176776692 : f32
    %87 = vector.broadcast %cst_30 : f32 to vector<17x17xf32>
    %88 = arith.mulf %86, %87 : vector<17x17xf32>
    %cst_31 = arith.constant dense<0xFF800000> : vector<17xf32>
    %89 = vector.multi_reduction <maximumf>, %88, %cst_31 [1] : vector<17x17xf32> to vector<17xf32>
    %90 = vector.shape_cast %89 : vector<17xf32> to vector<17x1xf32>
    %91 = vector.broadcast %90 : vector<17x1xf32> to vector<17x17xf32>
    %92 = arith.subf %88, %91 : vector<17x17xf32>
    %93 = math.exp %92 : vector<17x17xf32>
    %cst_32 = arith.constant dense<0.000000e+00> : vector<17xf32>
    %94 = vector.multi_reduction <add>, %93, %cst_32 [1] : vector<17x17xf32> to vector<17xf32>
    %95 = vector.shape_cast %94 : vector<17xf32> to vector<17x1xf32>
    %96 = tpu.reciprocal %95 {approx = true} : vector<17x1xf32> -> vector<17x1xf32>
    %97 = vector.broadcast %96 : vector<17x1xf32> to vector<17x17xf32>
    %98 = arith.mulf %93, %97 : vector<17x17xf32>
    %99 = arith.truncf %98 : vector<17x17xf32> to vector<17x17xbf16>
    %cst_33 = arith.constant dense<0.000000e+00> : vector<17x32xf32>
    %100 = tpu.matmul %99, %85, %cst_33 {dimension_numbers = #tpu.dot_dimension_numbers<[1], [0], [0], [1], [0, 0, 1, 1], [], []>} : vector<17x17xbf16>, vector<17x32xbf16>, vector<17x32xf32> -> vector<17x32xf32>
    %101 = vector.extract_strided_slice %37 {offsets = [0, 96], sizes = [17, 32], strides = [1, 1]} : vector<34x384xf32> to vector<17x32xf32>
    %102 = arith.truncf %101 : vector<17x32xf32> to vector<17x32xbf16>
    %103 = vector.extract_strided_slice %37 {offsets = [0, 224], sizes = [17, 32], strides = [1, 1]} : vector<34x384xf32> to vector<17x32xf32>
    %104 = arith.truncf %103 : vector<17x32xf32> to vector<17x32xbf16>
    %105 = vector.extract_strided_slice %37 {offsets = [0, 352], sizes = [17, 32], strides = [1, 1]} : vector<34x384xf32> to vector<17x32xf32>
    %106 = arith.truncf %105 : vector<17x32xf32> to vector<17x32xbf16>
    %cst_34 = arith.constant dense<0.000000e+00> : vector<17x17xf32>
    %107 = tpu.matmul %102, %104, %cst_34 {dimension_numbers = #tpu.dot_dimension_numbers<[1], [1], [0], [0], [0, 0, 1, 0], [], []>} : vector<17x32xbf16>, vector<17x32xbf16>, vector<17x17xf32> -> vector<17x17xf32>
    %cst_35 = arith.constant 0.176776692 : f32
    %108 = vector.broadcast %cst_35 : f32 to vector<17x17xf32>
    %109 = arith.mulf %107, %108 : vector<17x17xf32>
    %cst_36 = arith.constant dense<0xFF800000> : vector<17xf32>
    %110 = vector.multi_reduction <maximumf>, %109, %cst_36 [1] : vector<17x17xf32> to vector<17xf32>
    %111 = vector.shape_cast %110 : vector<17xf32> to vector<17x1xf32>
    %112 = vector.broadcast %111 : vector<17x1xf32> to vector<17x17xf32>
    %113 = arith.subf %109, %112 : vector<17x17xf32>
    %114 = math.exp %113 : vector<17x17xf32>
    %cst_37 = arith.constant dense<0.000000e+00> : vector<17xf32>
    %115 = vector.multi_reduction <add>, %114, %cst_37 [1] : vector<17x17xf32> to vector<17xf32>
    %116 = vector.shape_cast %115 : vector<17xf32> to vector<17x1xf32>
    %117 = tpu.reciprocal %116 {approx = true} : vector<17x1xf32> -> vector<17x1xf32>
    %118 = vector.broadcast %117 : vector<17x1xf32> to vector<17x17xf32>
    %119 = arith.mulf %114, %118 : vector<17x17xf32>
    %120 = arith.truncf %119 : vector<17x17xf32> to vector<17x17xbf16>
    %cst_38 = arith.constant dense<0.000000e+00> : vector<17x32xf32>
    %121 = tpu.matmul %120, %106, %cst_38 {dimension_numbers = #tpu.dot_dimension_numbers<[1], [0], [0], [1], [0, 0, 1, 1], [], []>} : vector<17x17xbf16>, vector<17x32xbf16>, vector<17x32xf32> -> vector<17x32xf32>
    %122 = tpu.concatenate %58, %79, %100, %121 in 1 : vector<17x32xf32>, vector<17x32xf32>, vector<17x32xf32>, vector<17x32xf32> -> vector<17x128xf32>
    %c0_39 = arith.constant 0 : index
    %c0_40 = arith.constant 0 : index
    %123 = vector.load %arg17[%c0_39, %c0_40] : memref<34x128xf32, #tpu.memory_space<vmem>>, vector<17x128xf32>
    tpu.vector_store %arg17[%c0_39, %c0_40], %122 {strides = array<i32>} : memref<34x128xf32, #tpu.memory_space<vmem>>, vector<17x128xf32>,
    %124 = vector.extract_strided_slice %37 {offsets = [17, 0], sizes = [17, 32], strides = [1, 1]} : vector<34x384xf32> to vector<17x32xf32>
    %125 = arith.truncf %124 : vector<17x32xf32> to vector<17x32xbf16>
    %126 = vector.extract_strided_slice %37 {offsets = [17, 128], sizes = [17, 32], strides = [1, 1]} : vector<34x384xf32> to vector<17x32xf32>
    %127 = arith.truncf %126 : vector<17x32xf32> to vector<17x32xbf16>
    %128 = vector.extract_strided_slice %37 {offsets = [17, 256], sizes = [17, 32], strides = [1, 1]} : vector<34x384xf32> to vector<17x32xf32>
    %129 = arith.truncf %128 : vector<17x32xf32> to vector<17x32xbf16>
    %cst_41 = arith.constant dense<0.000000e+00> : vector<17x17xf32>
    %130 = tpu.matmul %125, %127, %cst_41 {dimension_numbers = #tpu.dot_dimension_numbers<[1], [1], [0], [0], [0, 0, 1, 0], [], []>} : vector<17x32xbf16>, vector<17x32xbf16>, vector<17x17xf32> -> vector<17x17xf32>
    %cst_42 = arith.constant 0.176776692 : f32
    %131 = vector.broadcast %cst_42 : f32 to vector<17x17xf32>
    %132 = arith.mulf %130, %131 : vector<17x17xf32>
    %cst_43 = arith.constant dense<0xFF800000> : vector<17xf32>
    %133 = vector.multi_reduction <maximumf>, %132, %cst_43 [1] : vector<17x17xf32> to vector<17xf32>
    %134 = vector.shape_cast %133 : vector<17xf32> to vector<17x1xf32>
    %135 = vector.broadcast %134 : vector<17x1xf32> to vector<17x17xf32>
    %136 = arith.subf %132, %135 : vector<17x17xf32>
    %137 = math.exp %136 : vector<17x17xf32>
    %cst_44 = arith.constant dense<0.000000e+00> : vector<17xf32>
    %138 = vector.multi_reduction <add>, %137, %cst_44 [1] : vector<17x17xf32> to vector<17xf32>
    %139 = vector.shape_cast %138 : vector<17xf32> to vector<17x1xf32>
    %140 = tpu.reciprocal %139 {approx = true} : vector<17x1xf32> -> vector<17x1xf32>
    %141 = vector.broadcast %140 : vector<17x1xf32> to vector<17x17xf32>
    %142 = arith.mulf %137, %141 : vector<17x17xf32>
    %143 = arith.truncf %142 : vector<17x17xf32> to vector<17x17xbf16>
    %cst_45 = arith.constant dense<0.000000e+00> : vector<17x32xf32>
    %144 = tpu.matmul %143, %129, %cst_45 {dimension_numbers = #tpu.dot_dimension_numbers<[1], [0], [0], [1], [0, 0, 1, 1], [], []>} : vector<17x17xbf16>, vector<17x32xbf16>, vector<17x32xf32> -> vector<17x32xf32>
    %145 = vector.extract_strided_slice %37 {offsets = [17, 32], sizes = [17, 32], strides = [1, 1]} : vector<34x384xf32> to vector<17x32xf32>
    %146 = arith.truncf %145 : vector<17x32xf32> to vector<17x32xbf16>
    %147 = vector.extract_strided_slice %37 {offsets = [17, 160], sizes = [17, 32], strides = [1, 1]} : vector<34x384xf32> to vector<17x32xf32>
    %148 = arith.truncf %147 : vector<17x32xf32> to vector<17x32xbf16>
    %149 = vector.extract_strided_slice %37 {offsets = [17, 288], sizes = [17, 32], strides = [1, 1]} : vector<34x384xf32> to vector<17x32xf32>
    %150 = arith.truncf %149 : vector<17x32xf32> to vector<17x32xbf16>
    %cst_46 = arith.constant dense<0.000000e+00> : vector<17x17xf32>
    %151 = tpu.matmul %146, %148, %cst_46 {dimension_numbers = #tpu.dot_dimension_numbers<[1], [1], [0], [0], [0, 0, 1, 0], [], []>} : vector<17x32xbf16>, vector<17x32xbf16>, vector<17x17xf32> -> vector<17x17xf32>
    %cst_47 = arith.constant 0.176776692 : f32
    %152 = vector.broadcast %cst_47 : f32 to vector<17x17xf32>
    %153 = arith.mulf %151, %152 : vector<17x17xf32>
    %cst_48 = arith.constant dense<0xFF800000> : vector<17xf32>
    %154 = vector.multi_reduction <maximumf>, %153, %cst_48 [1] : vector<17x17xf32> to vector<17xf32>
    %155 = vector.shape_cast %154 : vector<17xf32> to vector<17x1xf32>
    %156 = vector.broadcast %155 : vector<17x1xf32> to vector<17x17xf32>
    %157 = arith.subf %153, %156 : vector<17x17xf32>
    %158 = math.exp %157 : vector<17x17xf32>
    %cst_49 = arith.constant dense<0.000000e+00> : vector<17xf32>
    %159 = vector.multi_reduction <add>, %158, %cst_49 [1] : vector<17x17xf32> to vector<17xf32>
    %160 = vector.shape_cast %159 : vector<17xf32> to vector<17x1xf32>
    %161 = tpu.reciprocal %160 {approx = true} : vector<17x1xf32> -> vector<17x1xf32>
    %162 = vector.broadcast %161 : vector<17x1xf32> to vector<17x17xf32>
    %163 = arith.mulf %158, %162 : vector<17x17xf32>
    %164 = arith.truncf %163 : vector<17x17xf32> to vector<17x17xbf16>
    %cst_50 = arith.constant dense<0.000000e+00> : vector<17x32xf32>
    %165 = tpu.matmul %164, %150, %cst_50 {dimension_numbers = #tpu.dot_dimension_numbers<[1], [0], [0], [1], [0, 0, 1, 1], [], []>} : vector<17x17xbf16>, vector<17x32xbf16>, vector<17x32xf32> -> vector<17x32xf32>
    %166 = vector.extract_strided_slice %37 {offsets = [17, 64], sizes = [17, 32], strides = [1, 1]} : vector<34x384xf32> to vector<17x32xf32>
    %167 = arith.truncf %166 : vector<17x32xf32> to vector<17x32xbf16>
    %168 = vector.extract_strided_slice %37 {offsets = [17, 192], sizes = [17, 32], strides = [1, 1]} : vector<34x384xf32> to vector<17x32xf32>
    %169 = arith.truncf %168 : vector<17x32xf32> to vector<17x32xbf16>
    %170 = vector.extract_strided_slice %37 {offsets = [17, 320], sizes = [17, 32], strides = [1, 1]} : vector<34x384xf32> to vector<17x32xf32>
    %171 = arith.truncf %170 : vector<17x32xf32> to vector<17x32xbf16>
    %cst_51 = arith.constant dense<0.000000e+00> : vector<17x17xf32>
    %172 = tpu.matmul %167, %169, %cst_51 {dimension_numbers = #tpu.dot_dimension_numbers<[1], [1], [0], [0], [0, 0, 1, 0], [], []>} : vector<17x32xbf16>, vector<17x32xbf16>, vector<17x17xf32> -> vector<17x17xf32>
    %cst_52 = arith.constant 0.176776692 : f32
    %173 = vector.broadcast %cst_52 : f32 to vector<17x17xf32>
    %174 = arith.mulf %172, %173 : vector<17x17xf32>
    %cst_53 = arith.constant dense<0xFF800000> : vector<17xf32>
    %175 = vector.multi_reduction <maximumf>, %174, %cst_53 [1] : vector<17x17xf32> to vector<17xf32>
    %176 = vector.shape_cast %175 : vector<17xf32> to vector<17x1xf32>
    %177 = vector.broadcast %176 : vector<17x1xf32> to vector<17x17xf32>
    %178 = arith.subf %174, %177 : vector<17x17xf32>
    %179 = math.exp %178 : vector<17x17xf32>
    %cst_54 = arith.constant dense<0.000000e+00> : vector<17xf32>
    %180 = vector.multi_reduction <add>, %179, %cst_54 [1] : vector<17x17xf32> to vector<17xf32>
    %181 = vector.shape_cast %180 : vector<17xf32> to vector<17x1xf32>
    %182 = tpu.reciprocal %181 {approx = true} : vector<17x1xf32> -> vector<17x1xf32>
    %183 = vector.broadcast %182 : vector<17x1xf32> to vector<17x17xf32>
    %184 = arith.mulf %179, %183 : vector<17x17xf32>
    %185 = arith.truncf %184 : vector<17x17xf32> to vector<17x17xbf16>
    %cst_55 = arith.constant dense<0.000000e+00> : vector<17x32xf32>
    %186 = tpu.matmul %185, %171, %cst_55 {dimension_numbers = #tpu.dot_dimension_numbers<[1], [0], [0], [1], [0, 0, 1, 1], [], []>} : vector<17x17xbf16>, vector<17x32xbf16>, vector<17x32xf32> -> vector<17x32xf32>
    %187 = vector.extract_strided_slice %37 {offsets = [17, 96], sizes = [17, 32], strides = [1, 1]} : vector<34x384xf32> to vector<17x32xf32>
    %188 = arith.truncf %187 : vector<17x32xf32> to vector<17x32xbf16>
    %189 = vector.extract_strided_slice %37 {offsets = [17, 224], sizes = [17, 32], strides = [1, 1]} : vector<34x384xf32> to vector<17x32xf32>
    %190 = arith.truncf %189 : vector<17x32xf32> to vector<17x32xbf16>
    %191 = vector.extract_strided_slice %37 {offsets = [17, 352], sizes = [17, 32], strides = [1, 1]} : vector<34x384xf32> to vector<17x32xf32>
    %192 = arith.truncf %191 : vector<17x32xf32> to vector<17x32xbf16>
    %cst_56 = arith.constant dense<0.000000e+00> : vector<17x17xf32>
    %193 = tpu.matmul %188, %190, %cst_56 {dimension_numbers = #tpu.dot_dimension_numbers<[1], [1], [0], [0], [0, 0, 1, 0], [], []>} : vector<17x32xbf16>, vector<17x32xbf16>, vector<17x17xf32> -> vector<17x17xf32>
    %cst_57 = arith.constant 0.176776692 : f32
    %194 = vector.broadcast %cst_57 : f32 to vector<17x17xf32>
    %195 = arith.mulf %193, %194 : vector<17x17xf32>
    %cst_58 = arith.constant dense<0xFF800000> : vector<17xf32>
    %196 = vector.multi_reduction <maximumf>, %195, %cst_58 [1] : vector<17x17xf32> to vector<17xf32>
    %197 = vector.shape_cast %196 : vector<17xf32> to vector<17x1xf32>
    %198 = vector.broadcast %197 : vector<17x1xf32> to vector<17x17xf32>
    %199 = arith.subf %195, %198 : vector<17x17xf32>
    %200 = math.exp %199 : vector<17x17xf32>
    %cst_59 = arith.constant dense<0.000000e+00> : vector<17xf32>
    %201 = vector.multi_reduction <add>, %200, %cst_59 [1] : vector<17x17xf32> to vector<17xf32>
    %202 = vector.shape_cast %201 : vector<17xf32> to vector<17x1xf32>
    %203 = tpu.reciprocal %202 {approx = true} : vector<17x1xf32> -> vector<17x1xf32>
    %204 = vector.broadcast %203 : vector<17x1xf32> to vector<17x17xf32>
    %205 = arith.mulf %200, %204 : vector<17x17xf32>
    %206 = arith.truncf %205 : vector<17x17xf32> to vector<17x17xbf16>
    %cst_60 = arith.constant dense<0.000000e+00> : vector<17x32xf32>
    %207 = tpu.matmul %206, %192, %cst_60 {dimension_numbers = #tpu.dot_dimension_numbers<[1], [0], [0], [1], [0, 0, 1, 1], [], []>} : vector<17x17xbf16>, vector<17x32xbf16>, vector<17x32xf32> -> vector<17x32xf32>
    %208 = tpu.concatenate %144, %165, %186, %207 in 1 : vector<17x32xf32>, vector<17x32xf32>, vector<17x32xf32>, vector<17x32xf32> -> vector<17x128xf32>
    %c17 = arith.constant 17 : index
    %c0_61 = arith.constant 0 : index
    %209 = vector.load %arg17[%c17, %c0_61] : memref<34x128xf32, #tpu.memory_space<vmem>>, vector<17x128xf32>
    tpu.vector_store %arg17[%c17, %c0_61], %208 {strides = array<i32>} : memref<34x128xf32, #tpu.memory_space<vmem>>, vector<17x128xf32>,
    %c0_62 = arith.constant 0 : index
    %c0_63 = arith.constant 0 : index
    %210 = vector.load %arg17[%c0_62, %c0_63] : memref<34x128xf32, #tpu.memory_space<vmem>>, vector<34x128xf32>
    %211 = arith.truncf %210 : vector<34x128xf32> to vector<34x128xbf16>
    %c0_64 = arith.constant 0 : index
    %c0_65 = arith.constant 0 : index
    %c0_66 = arith.constant 0 : index
    %212 = vector.load %arg7[%c0_64, %c0_65, %c0_66] : memref<1x128x128xbf16, #tpu.memory_space<vmem>>, vector<1x128x128xbf16>
    %213 = vector.shape_cast %212 : vector<1x128x128xbf16> to vector<128x128xbf16>
    %cst_67 = arith.constant dense<0.000000e+00> : vector<34x128xf32>
    %214 = tpu.matmul %211, %213, %cst_67 {dimension_numbers = #tpu.dot_dimension_numbers<[1], [0], [0], [1], [0, 0, 1, 1], [], []>} : vector<34x128xbf16>, vector<128x128xbf16>, vector<34x128xf32> -> vector<34x128xf32>
    %c0_68 = arith.constant 0 : index
    %c0_69 = arith.constant 0 : index
    %c0_70 = arith.constant 0 : index
    %215 = vector.load %arg8[%c0_68, %c0_69, %c0_70] : memref<1x1x128xf32, #tpu.memory_space<vmem>>, vector<1x1x128xf32>
    %216 = vector.shape_cast %215 : vector<1x1x128xf32> to vector<1x128xf32>
    %217 = vector.broadcast %216 : vector<1x128xf32> to vector<34x128xf32>
    %218 = arith.addf %214, %217 : vector<34x128xf32>
    %219 = arith.addf %3, %218 : vector<34x128xf32>
    %c0_71 = arith.constant 0 : index
    %c0_72 = arith.constant 0 : index
    %c0_73 = arith.constant 0 : index
    %220 = vector.load %arg9[%c0_71, %c0_72, %c0_73] : memref<1x1x128xf32, #tpu.memory_space<vmem>>, vector<1x1x128xf32>
    %221 = vector.shape_cast %220 : vector<1x1x128xf32> to vector<1x128xf32>
    %c0_74 = arith.constant 0 : index
    %c0_75 = arith.constant 0 : index
    %c0_76 = arith.constant 0 : index
    %222 = vector.load %arg10[%c0_74, %c0_75, %c0_76] : memref<1x1x128xf32, #tpu.memory_space<vmem>>, vector<1x1x128xf32>
    %223 = vector.shape_cast %222 : vector<1x1x128xf32> to vector<1x128xf32>
    %cst_77 = arith.constant dense<0.000000e+00> : vector<34xf32>
    %224 = vector.multi_reduction <add>, %219, %cst_77 [1] : vector<34x128xf32> to vector<34xf32>
    %225 = vector.shape_cast %224 : vector<34xf32> to vector<34x1xf32>
    %cst_78 = arith.constant 1.280000e+02 : f32
    %226 = vector.broadcast %cst_78 : f32 to vector<34x1xf32>
    %227 = arith.divf %225, %226 : vector<34x1xf32>
    %228 = vector.broadcast %227 : vector<34x1xf32> to vector<34x128xf32>
    %229 = arith.subf %219, %228 : vector<34x128xf32>
    %230 = arith.mulf %229, %229 : vector<34x128xf32>
    %cst_79 = arith.constant dense<0.000000e+00> : vector<34xf32>
    %231 = vector.multi_reduction <add>, %230, %cst_79 [1] : vector<34x128xf32> to vector<34xf32>
    %232 = vector.shape_cast %231 : vector<34xf32> to vector<34x1xf32>
    %cst_80 = arith.constant 1.280000e+02 : f32
    %233 = vector.broadcast %cst_80 : f32 to vector<34x1xf32>
    %234 = arith.divf %232, %233 : vector<34x1xf32>
    %235 = vector.broadcast %227 : vector<34x1xf32> to vector<34x128xf32>
    %236 = arith.subf %219, %235 : vector<34x128xf32>
    %cst_81 = arith.constant 9.99999974E-6 : f32
    %237 = vector.broadcast %cst_81 : f32 to vector<34x1xf32>
    %238 = arith.addf %234, %237 : vector<34x1xf32>
    %239 = math.rsqrt %238 : vector<34x1xf32>
    %240 = vector.broadcast %239 : vector<34x1xf32> to vector<34x128xf32>
    %241 = arith.mulf %236, %240 : vector<34x128xf32>
    %242 = vector.broadcast %221 : vector<1x128xf32> to vector<34x128xf32>
    %243 = arith.mulf %241, %242 : vector<34x128xf32>
    %244 = vector.broadcast %223 : vector<1x128xf32> to vector<34x128xf32>
    %245 = arith.addf %243, %244 : vector<34x128xf32>
    %246 = arith.truncf %245 : vector<34x128xf32> to vector<34x128xbf16>
    %c0_82 = arith.constant 0 : index
    %c0_83 = arith.constant 0 : index
    %c0_84 = arith.constant 0 : index
    %247 = vector.load %arg11[%c0_82, %c0_83, %c0_84] : memref<1x128x128xbf16, #tpu.memory_space<vmem>>, vector<1x128x128xbf16>
    %248 = vector.shape_cast %247 : vector<1x128x128xbf16> to vector<128x128xbf16>
    %cst_85 = arith.constant dense<0.000000e+00> : vector<34x128xf32>
    %249 = tpu.matmul %246, %248, %cst_85 {dimension_numbers = #tpu.dot_dimension_numbers<[1], [0], [0], [1], [0, 0, 1, 1], [], []>} : vector<34x128xbf16>, vector<128x128xbf16>, vector<34x128xf32> -> vector<34x128xf32>
    %c0_86 = arith.constant 0 : index
    %c0_87 = arith.constant 0 : index
    %c0_88 = arith.constant 0 : index
    %250 = vector.load %arg12[%c0_86, %c0_87, %c0_88] : memref<1x1x128xf32, #tpu.memory_space<vmem>>, vector<1x1x128xf32>
    %251 = vector.shape_cast %250 : vector<1x1x128xf32> to vector<1x128xf32>
    %252 = vector.broadcast %251 : vector<1x128xf32> to vector<34x128xf32>
    %253 = arith.addf %249, %252 : vector<34x128xf32>
    %cst_89 = arith.constant 5.000000e-01 : f32
    %254 = vector.broadcast %cst_89 : f32 to vector<34x128xf32>
    %255 = arith.mulf %254, %253 : vector<34x128xf32>
    %cst_90 = arith.constant 0.707106769 : f32
    %256 = vector.broadcast %cst_90 : f32 to vector<34x128xf32>
    %257 = arith.mulf %253, %256 : vector<34x128xf32>
    %258 = math.erf %257 : vector<34x128xf32>
    %cst_91 = arith.constant 1.000000e+00 : f32
    %259 = vector.broadcast %cst_91 : f32 to vector<34x128xf32>
    %260 = arith.addf %259, %258 : vector<34x128xf32>
    %261 = arith.mulf %255, %260 : vector<34x128xf32>
    %262 = arith.truncf %261 : vector<34x128xf32> to vector<34x128xbf16>
    %c0_92 = arith.constant 0 : index
    %c0_93 = arith.constant 0 : index
    %c0_94 = arith.constant 0 : index
    %263 = vector.load %arg13[%c0_92, %c0_93, %c0_94] : memref<1x128x128xbf16, #tpu.memory_space<vmem>>, vector<1x128x128xbf16>
    %264 = vector.shape_cast %263 : vector<1x128x128xbf16> to vector<128x128xbf16>
    %cst_95 = arith.constant dense<0.000000e+00> : vector<34x128xf32>
    %265 = tpu.matmul %262, %264, %cst_95 {dimension_numbers = #tpu.dot_dimension_numbers<[1], [0], [0], [1], [0, 0, 1, 1], [], []>} : vector<34x128xbf16>, vector<128x128xbf16>, vector<34x128xf32> -> vector<34x128xf32>
    %c0_96 = arith.constant 0 : index
    %c0_97 = arith.constant 0 : index
    %c0_98 = arith.constant 0 : index
    %266 = vector.load %arg14[%c0_96, %c0_97, %c0_98] : memref<1x1x128xf32, #tpu.memory_space<vmem>>, vector<1x1x128xf32>
    %267 = vector.shape_cast %266 : vector<1x1x128xf32> to vector<1x128xf32>
    %268 = vector.broadcast %267 : vector<1x128xf32> to vector<34x128xf32>
    %269 = arith.addf %265, %268 : vector<34x128xf32>
    %270 = arith.addf %219, %269 : vector<34x128xf32>
    %c0_99 = arith.constant 0 : index
    %c0_100 = arith.constant 0 : index
    %271 = vector.load %arg16[%c0_99, %c0_100] : memref<34x128xf32, #tpu.memory_space<vmem>>, vector<34x128xf32>
    tpu.vector_store %arg16[%c0_99, %c0_100], %270 {strides = array<i32>} : memref<34x128xf32, #tpu.memory_space<vmem>>, vector<34x128xf32>,
    %c1_i32 = arith.constant 1 : i32
    %272 = arith.cmpi eq, %arg1, %c1_i32 : i32
    %273 = arith.extui %272 : i1 to i32
    %c0_i32_101 = arith.constant 0 : i32
    %274 = arith.cmpi ne, %273, %c0_i32_101 : i32
    scf.if %274 {
      %c0_102 = arith.constant 0 : index
      %c0_103 = arith.constant 0 : index
      %c0_104 = arith.constant 0 : index
      %275 = vector.load %arg15[%c0_102, %c0_103, %c0_104] : memref<1x34x128xf32, #tpu.memory_space<vmem>>, vector<1x34x128xf32>
      %276 = vector.shape_cast %275 : vector<1x34x128xf32> to vector<34x128xf32>
      %277 = vector.shape_cast %270 : vector<34x128xf32> to vector<1x34x128xf32>
      tpu.vector_store %arg15[%c0_102, %c0_103, %c0_104], %277 {strides = array<i32>} : memref<1x34x128xf32, #tpu.memory_space<vmem>>, vector<1x34x128xf32>,
    } else {
    }
    return
  }
  func.func @transform_0(%arg0: i32, %arg1: i32) -> (i32, i32, i32) {
    %c0_i32 = arith.constant 0 : i32
    %c0_i32_0 = arith.constant 0 : i32
    %c0_i32_1 = arith.constant 0 : i32
    return %arg0, %c0_i32, %c0_i32_0 : i32, i32, i32
  }
  func.func @transform_1(%arg0: i32, %arg1: i32) -> (i32, i32, i32) {
    %c0_i32 = arith.constant 0 : i32
    %c0_i32_0 = arith.constant 0 : i32
    %c0_i32_1 = arith.constant 0 : i32
    return %arg1, %c0_i32, %c0_i32_0 : i32, i32, i32
  }
  func.func @transform_2(%arg0: i32, %arg1: i32) -> (i32, i32, i32) {
    %c0_i32 = arith.constant 0 : i32
    %c0_i32_0 = arith.constant 0 : i32
    %c0_i32_1 = arith.constant 0 : i32
    return %arg1, %c0_i32, %c0_i32_0 : i32, i32, i32
  }
  func.func @transform_3(%arg0: i32, %arg1: i32) -> (i32, i32, i32) {
    %c0_i32 = arith.constant 0 : i32
    %c0_i32_0 = arith.constant 0 : i32
    %c0_i32_1 = arith.constant 0 : i32
    return %arg1, %c0_i32, %c0_i32_0 : i32, i32, i32
  }
  func.func @transform_4(%arg0: i32, %arg1: i32) -> (i32, i32, i32) {
    %c0_i32 = arith.constant 0 : i32
    %c0_i32_0 = arith.constant 0 : i32
    %c0_i32_1 = arith.constant 0 : i32
    return %arg1, %c0_i32, %c0_i32_0 : i32, i32, i32
  }
  func.func @transform_5(%arg0: i32, %arg1: i32) -> (i32, i32, i32) {
    %c0_i32 = arith.constant 0 : i32
    %c0_i32_0 = arith.constant 0 : i32
    %c0_i32_1 = arith.constant 0 : i32
    return %arg1, %c0_i32, %c0_i32_0 : i32, i32, i32
  }
  func.func @transform_6(%arg0: i32, %arg1: i32) -> (i32, i32, i32) {
    %c0_i32 = arith.constant 0 : i32
    %c0_i32_0 = arith.constant 0 : i32
    %c0_i32_1 = arith.constant 0 : i32
    return %arg1, %c0_i32, %c0_i32_0 : i32, i32, i32
  }
  func.func @transform_7(%arg0: i32, %arg1: i32) -> (i32, i32, i32) {
    %c0_i32 = arith.constant 0 : i32
    %c0_i32_0 = arith.constant 0 : i32
    %c0_i32_1 = arith.constant 0 : i32
    return %arg1, %c0_i32, %c0_i32_0 : i32, i32, i32
  }
  func.func @transform_8(%arg0: i32, %arg1: i32) -> (i32, i32, i32) {
    %c0_i32 = arith.constant 0 : i32
    %c0_i32_0 = arith.constant 0 : i32
    %c0_i32_1 = arith.constant 0 : i32
    return %arg1, %c0_i32, %c0_i32_0 : i32, i32, i32
  }
  func.func @transform_9(%arg0: i32, %arg1: i32) -> (i32, i32, i32) {
    %c0_i32 = arith.constant 0 : i32
    %c0_i32_0 = arith.constant 0 : i32
    %c0_i32_1 = arith.constant 0 : i32
    return %arg1, %c0_i32, %c0_i32_0 : i32, i32, i32
  }
  func.func @transform_10(%arg0: i32, %arg1: i32) -> (i32, i32, i32) {
    %c0_i32 = arith.constant 0 : i32
    %c0_i32_0 = arith.constant 0 : i32
    %c0_i32_1 = arith.constant 0 : i32
    return %arg1, %c0_i32, %c0_i32_0 : i32, i32, i32
  }
  func.func @transform_11(%arg0: i32, %arg1: i32) -> (i32, i32, i32) {
    %c0_i32 = arith.constant 0 : i32
    %c0_i32_0 = arith.constant 0 : i32
    %c0_i32_1 = arith.constant 0 : i32
    return %arg1, %c0_i32, %c0_i32_0 : i32, i32, i32
  }
  func.func @transform_12(%arg0: i32, %arg1: i32) -> (i32, i32, i32) {
    %c0_i32 = arith.constant 0 : i32
    %c0_i32_0 = arith.constant 0 : i32
    %c0_i32_1 = arith.constant 0 : i32
    return %arg1, %c0_i32, %c0_i32_0 : i32, i32, i32
  }
  func.func @transform_13(%arg0: i32, %arg1: i32) -> (i32, i32, i32) {
    %c0_i32 = arith.constant 0 : i32
    %c0_i32_0 = arith.constant 0 : i32
    %c0_i32_1 = arith.constant 0 : i32
    return %arg0, %c0_i32, %c0_i32_0 : i32, i32, i32
  }
}

module attributes {stable_mosaic.version = 11 : i64} {
  func.func @classifier_kernel(%arg0: i32, %arg1: memref<2x128xf32, #tpu.memory_space<vmem>>, %arg2: memref<1x128xf32, #tpu.memory_space<vmem>>, %arg3: memref<1x128xf32, #tpu.memory_space<vmem>>, %arg4: memref<128x10xbf16, #tpu.memory_space<vmem>>, %arg5: memref<1x10xf32, #tpu.memory_space<vmem>>, %arg6: memref<2x10xf32, #tpu.memory_space<vmem>>) attributes {dimension_semantics = [#tpu.dimension_semantics<arbitrary>], iteration_bounds = array<i64: 1>, scalar_prefetch = 0 : i64, scratch_operands = 0 : i64, tpu.core_type = #tpu.core_type<tc>, window_params = [{pipeline_mode = #tpu.pipeline_mode<synchronous>, transform_indices = @transform_0, window_bounds = array<i64: 2, 128>}, {pipeline_mode = #tpu.pipeline_mode<synchronous>, transform_indices = @transform_1, window_bounds = array<i64: 1, 128>}, {pipeline_mode = #tpu.pipeline_mode<synchronous>, transform_indices = @transform_2, window_bounds = array<i64: 1, 128>}, {pipeline_mode = #tpu.pipeline_mode<synchronous>, transform_indices = @transform_3, window_bounds = array<i64: 128, 10>}, {pipeline_mode = #tpu.pipeline_mode<synchronous>, transform_indices = @transform_4, window_bounds = array<i64: 1, 10>}, {pipeline_mode = #tpu.pipeline_mode<synchronous>, transform_indices = @transform_5, window_bounds = array<i64: 2, 10>}]} {
    %c0 = arith.constant 0 : index
    %c0_0 = arith.constant 0 : index
    %0 = vector.load %arg1[%c0, %c0_0] : memref<2x128xf32, #tpu.memory_space<vmem>>, vector<2x128xf32>
    %c0_1 = arith.constant 0 : index
    %c0_2 = arith.constant 0 : index
    %1 = vector.load %arg2[%c0_1, %c0_2] : memref<1x128xf32, #tpu.memory_space<vmem>>, vector<1x128xf32>
    %c0_3 = arith.constant 0 : index
    %c0_4 = arith.constant 0 : index
    %2 = vector.load %arg3[%c0_3, %c0_4] : memref<1x128xf32, #tpu.memory_space<vmem>>, vector<1x128xf32>
    %cst = arith.constant dense<0.000000e+00> : vector<2xf32>
    %3 = vector.multi_reduction <add>, %0, %cst [1] : vector<2x128xf32> to vector<2xf32>
    %4 = vector.shape_cast %3 : vector<2xf32> to vector<2x1xf32>
    %cst_5 = arith.constant 1.280000e+02 : f32
    %5 = vector.broadcast %cst_5 : f32 to vector<2x1xf32>
    %6 = arith.divf %4, %5 : vector<2x1xf32>
    %7 = vector.broadcast %6 : vector<2x1xf32> to vector<2x128xf32>
    %8 = arith.subf %0, %7 : vector<2x128xf32>
    %9 = arith.mulf %8, %8 : vector<2x128xf32>
    %cst_6 = arith.constant dense<0.000000e+00> : vector<2xf32>
    %10 = vector.multi_reduction <add>, %9, %cst_6 [1] : vector<2x128xf32> to vector<2xf32>
    %11 = vector.shape_cast %10 : vector<2xf32> to vector<2x1xf32>
    %cst_7 = arith.constant 1.280000e+02 : f32
    %12 = vector.broadcast %cst_7 : f32 to vector<2x1xf32>
    %13 = arith.divf %11, %12 : vector<2x1xf32>
    %14 = vector.broadcast %6 : vector<2x1xf32> to vector<2x128xf32>
    %15 = arith.subf %0, %14 : vector<2x128xf32>
    %cst_8 = arith.constant 9.99999974E-6 : f32
    %16 = vector.broadcast %cst_8 : f32 to vector<2x1xf32>
    %17 = arith.addf %13, %16 : vector<2x1xf32>
    %18 = math.rsqrt %17 : vector<2x1xf32>
    %19 = vector.broadcast %18 : vector<2x1xf32> to vector<2x128xf32>
    %20 = arith.mulf %15, %19 : vector<2x128xf32>
    %21 = vector.broadcast %1 : vector<1x128xf32> to vector<2x128xf32>
    %22 = arith.mulf %20, %21 : vector<2x128xf32>
    %23 = vector.broadcast %2 : vector<1x128xf32> to vector<2x128xf32>
    %24 = arith.addf %22, %23 : vector<2x128xf32>
    %25 = arith.truncf %24 : vector<2x128xf32> to vector<2x128xbf16>
    %c0_9 = arith.constant 0 : index
    %c0_10 = arith.constant 0 : index
    %26 = vector.load %arg4[%c0_9, %c0_10] : memref<128x10xbf16, #tpu.memory_space<vmem>>, vector<128x10xbf16>
    %cst_11 = arith.constant dense<0.000000e+00> : vector<2x10xf32>
    %27 = tpu.matmul %25, %26, %cst_11 {dimension_numbers = #tpu.dot_dimension_numbers<[1], [0], [0], [1], [0, 0, 1, 1], [], []>} : vector<2x128xbf16>, vector<128x10xbf16>, vector<2x10xf32> -> vector<2x10xf32>
    %c0_12 = arith.constant 0 : index
    %c0_13 = arith.constant 0 : index
    %28 = vector.load %arg5[%c0_12, %c0_13] : memref<1x10xf32, #tpu.memory_space<vmem>>, vector<1x10xf32>
    %29 = vector.broadcast %28 : vector<1x10xf32> to vector<2x10xf32>
    %30 = arith.addf %27, %29 : vector<2x10xf32>
    %c0_14 = arith.constant 0 : index
    %c0_15 = arith.constant 0 : index
    %31 = vector.load %arg6[%c0_14, %c0_15] : memref<2x10xf32, #tpu.memory_space<vmem>>, vector<2x10xf32>
    tpu.vector_store %arg6[%c0_14, %c0_15], %30 {strides = array<i32>} : memref<2x10xf32, #tpu.memory_space<vmem>>, vector<2x10xf32>,
    return
  }
  func.func @transform_0(%arg0: i32) -> (i32, i32) {
    %c0_i32 = arith.constant 0 : i32
    %c0_i32_0 = arith.constant 0 : i32
    %c0_i32_1 = arith.constant 0 : i32
    return %c0_i32, %c0_i32_0 : i32, i32
  }
  func.func @transform_1(%arg0: i32) -> (i32, i32) {
    %c0_i32 = arith.constant 0 : i32
    %c0_i32_0 = arith.constant 0 : i32
    %c0_i32_1 = arith.constant 0 : i32
    return %c0_i32, %c0_i32_0 : i32, i32
  }
  func.func @transform_2(%arg0: i32) -> (i32, i32) {
    %c0_i32 = arith.constant 0 : i32
    %c0_i32_0 = arith.constant 0 : i32
    %c0_i32_1 = arith.constant 0 : i32
    return %c0_i32, %c0_i32_0 : i32, i32
  }
  func.func @transform_3(%arg0: i32) -> (i32, i32) {
    %c0_i32 = arith.constant 0 : i32
    %c0_i32_0 = arith.constant 0 : i32
    %c0_i32_1 = arith.constant 0 : i32
    return %c0_i32, %c0_i32_0 : i32, i32
  }
  func.func @transform_4(%arg0: i32) -> (i32, i32) {
    %c0_i32 = arith.constant 0 : i32
    %c0_i32_0 = arith.constant 0 : i32
    %c0_i32_1 = arith.constant 0 : i32
    return %c0_i32, %c0_i32_0 : i32, i32
  }
  func.func @transform_5(%arg0: i32) -> (i32, i32) {
    %c0_i32 = arith.constant 0 : i32
    %c0_i32_0 = arith.constant 0 : i32
    %c0_i32_1 = arith.constant 0 : i32
    return %c0_i32, %c0_i32_0 : i32, i32
  }
}

</mosaic_0001>

<llo_original>
// kernel: vit_forward.3
$region0: #{vit_forward.3}
  #allocation0 [shape = 'u32[]', space=smem, size = 0x4, offset = 0x4, fixed_abs, tag = 'smem constant byte address 0x4 - core index']
  #allocation1 [shape = 'u32[144,128]{1,0:T(1,128)}', space=vmem, size = 0x12000, scoped, tag = 'internal scratch']
  %s0 = inlined_call_operand.vmem [shape: bf16[32,48], index: 0, kind: input, shape index: {}]
  %s1 = inlined_call_operand.vmem [shape: bf16[48,128], index: 1, kind: input, shape index: {}]
  %s2 = inlined_call_operand.vmem [shape: f32[1,128], index: 2, kind: input, shape index: {}]
  %s3 = inlined_call_operand.vmem [shape: f32[32,128], index: 3, kind: output, shape index: {}]
  %s4 = sld [smem:[#allocation0]]
  $region22: #{vit_forward.3} parent=0
    _
  %s6 = ssub.s32 1, %s4
  %s7 = scalar_select 0, %s6, %s4
  // Predicated region
  $region2: #{vit_forward.3} parent=0 // pred_check
    _
  $region3: #{vit_forward.3} parent=0 // pred_check_branch
    %9 = sbr.rel (0) target = $region5
  $region4: #{vit_forward.3} parent=0 // pred_region
    _
  $region5: #{vit_forward.3} parent=0 // pred_fallthru
    _
  // Predicated region
  $region6: #{vit_forward.3} parent=0 // pred_check
    _
  $region7: #{vit_forward.3} parent=0 // pred_check_branch
    %11 = sbr.rel (0) target = $region9
  $region8: #{vit_forward.3} parent=0 // pred_region
    _
  $region9: #{vit_forward.3} parent=0 // pred_fallthru
    _
  // Predicated region
  $region10: #{vit_forward.3} parent=0 // pred_check
    _
  $region11: #{vit_forward.3} parent=0 // pred_check_branch
    %13 = sbr.rel (0) target = $region13
  $region12: #{vit_forward.3} parent=0 // pred_region
    _
  $region13: #{vit_forward.3} parent=0 // pred_fallthru
    _
  %v15 = vld [vmem:[%s0] sm:$0xf]
  %v16 = vld [vmem:[%s0 + $0x4] sm:$0xf]
  %v17 = vld [vmem:[%s0 + $0x8] sm:$0xf]
  %v18 = vld [vmem:[%s0 + $0xc] sm:$0xf]
  %v19 = vld [vmem:[%s1] sm:$0xf]
  %v20 = vld [vmem:[%s1 + $0x4] sm:$0xf]
  %v21 = vld [vmem:[%s1 + $0x8] sm:$0xf]
  %v22 = vld [vmem:[%s1 + $0xc] sm:$0xf]
  %v23 = vld [vmem:[%s1 + $0x10] sm:$0xf]
  %v24 = vld [vmem:[%s1 + $0x14] sm:$0xf]
  %v25 = vld [vmem:[%s2] sm:$0x1]
  %v27 = vlaneseq
  %v28 = vshrl.u32 %v27, 7
  %v29 = vsub.s32 0, %v28
  %v30 = vrot.slane %v25, %v29
  %v36 = vunpack.c.l.b16 %v15
  %v37 = vunpack.c.l.b16 %v16
  %v38 = vunpack.c.l.b16 %v17
  %v39 = vunpack.c.l.b16 %v18
  %v40 = vpack.c.b16 %v37, %v36
  %v41 = vpack.c.b16 %v39, %v38
  %v48 = vunpack.c.l.b16 %v19
  %v49 = vunpack.c.l.b16 %v20
  %v50 = vunpack.c.l.b16 %v21
  %v51 = vunpack.c.l.b16 %v22
  %v52 = vunpack.c.l.b16 %v23
  %v53 = vunpack.c.l.b16 %v24
  %v54 = vpack.c.b16 %v49, %v48
  %v55 = vpack.c.b16 %v51, %v50
  %v56 = vpack.c.b16 %v53, %v52
  %vm60 = vcmask 392192
  %v62 = vsel %vm60, %v40, 0
  %v65 = vsel %vm60, %v41, 0
  %67 = vmatprep.subr.bf16.mxu0 0
  %68 = vmatpush1.bf16.msra.mxu0 %v54
  %69 = vmatprep.subr.bf16.mxu0 0
  %70 = vmatpush1.bf16.msra.mxu0 %v55
  %71 = vmatprep.subr.bf16.mxu0 0
  %72 = vmatpush1.bf16.msra.mxu0 %v56
  %73 = vmatprep.subr.bf16.mxu0 0
  %74 = vmatpush1.bf16.msra.mxu0 0
  %75 = vmatprep.subr.bf16.mxu0 0
  %76 = vmatpush1.bf16.msra.mxu0 0
  %77 = vmatprep.subr.bf16.mxu0 0
  %78 = vmatpush1.bf16.msra.mxu0 0
  %79 = vmatprep.subr.bf16.mxu0 0
  %80 = vmatpush1.bf16.msra.mxu0 0
  %81 = vmatprep.subr.bf16.mxu0 0
  %82 = vmatpush1.bf16.msra.mxu0 0
  %83 = vmatprep.subr.bf16.mxu0 0
  %84 = vmatpush1.bf16.msra.mxu0 0
  %85 = vmatprep.subr.bf16.mxu0 0
  %86 = vmatpush1.bf16.msra.mxu0 0
  %87 = vmatprep.subr.bf16.mxu0 0
  %88 = vmatpush1.bf16.msra.mxu0 0
  %89 = vmatprep.subr.bf16.mxu0 0
  %90 = vmatpush1.bf16.msra.mxu0 0
  %91 = vmatprep.subr.bf16.mxu0 0
  %92 = vmatpush1.bf16.msra.mxu0 0
  %93 = vmatprep.subr.bf16.mxu0 0
  %94 = vmatpush1.bf16.msra.mxu0 0
  %95 = vmatprep.subr.bf16.mxu0 0
  %96 = vmatpush1.bf16.msra.mxu0 0
  %97 = vmatprep.subr.bf16.mxu0 0
  %98 = vmatpush1.bf16.msra.mxu0 0
  %99 = vmatprep.mubr.bf16.mxu0 0
  %100 = vmatmul.mubr.bf16.gmra.mrb[0].mxu0 %v62
  %v101 = vpop.f32.mrb[0].mxu0
  %v102 = vadd.f32 %v30, %v101
  %v103 = vpop.f32.mrb[0].mxu0
  %v104 = vpop.f32.mrb[0].mxu0
  %v105 = vadd.f32 %v30, %v104
  %v106 = vpop.f32.mrb[0].mxu0
  %107 = vmatprep.mubr.bf16.mxu0 0
  %108 = vmatmul.mubr.bf16.gmra.mrb[0].mxu0 %v65
  %v109 = vpop.f32.mrb[0].mxu0
  %v110 = vadd.f32 %v30, %v109
  %v111 = vpop.f32.mrb[0].mxu0
  %v112 = vpop.f32.mrb[0].mxu0
  %v113 = vadd.f32 %v30, %v112
  %v114 = vpop.f32.mrb[0].mxu0
  %115 = vdwg.mxu0
  %116 = vst [vmem:[%s3] sm:$0xff] %v102
  %117 = vst [vmem:[%s3 + $0x8] sm:$0xff] %v105
  %118 = vst [vmem:[%s3 + $0x10] sm:$0xff] %v110
  %119 = vst [vmem:[%s3 + $0x18] sm:$0xff] %v113
  // Predicated region
  $region14: #{vit_forward.3} parent=0 // pred_check
    _
  $region15: #{vit_forward.3} parent=0 // pred_check_branch
    %121 = sbr.rel (0) target = $region17
  $region16: #{vit_forward.3} parent=0 // pred_region
    _
  $region17: #{vit_forward.3} parent=0 // pred_fallthru
    _
  // Predicated region
  $region18: #{vit_forward.3} parent=0 // pred_check
    _
  $region19: #{vit_forward.3} parent=0 // pred_check_branch
    %123 = sbr.rel (0) target = $region21
  $region20: #{vit_forward.3} parent=0 // pred_region
    _
  $region21: #{vit_forward.3} parent=0 // pred_fallthru
    _

// kernel: vit_forward.5
$region0: #{vit_forward.5}
  #allocation0 [shape = 'u32[]', space=smem, size = 0x4, offset = 0x4, fixed_abs, tag = 'smem constant byte address 0x4 - core index']
  #allocation1 [shape = 'u32[144,128]{1,0:T(1,128)}', space=vmem, size = 0x12000, scoped, tag = 'internal scratch']
  %s0 = inlined_call_operand.vmem [shape: f32[2,128], index: 0, kind: input, shape index: {}]
  %s1 = inlined_call_operand.vmem [shape: f32[1,128], index: 1, kind: input, shape index: {}]
  %s2 = inlined_call_operand.vmem [shape: f32[1,128], index: 2, kind: input, shape index: {}]
  %s3 = inlined_call_operand.vmem [shape: bf16[128,10], index: 3, kind: input, shape index: {}]
  %s4 = inlined_call_operand.vmem [shape: f32[1,10], index: 4, kind: input, shape index: {}]
  %s5 = inlined_call_operand.hbm [shape: f32[2,10], index: 5, kind: output, shape index: {}]
  %s6 = sld [smem:[#allocation0]]
  $region30: #{vit_forward.5} parent=0
    _
  %s8 = ssub.s32 1, %s6
  %s9 = scalar_select 0, %s8, %s6
  $region1: #{vit_forward.5} parent=0
    #allocation2 [shape = 'u8[1024]{0}', space=vmem, size = 0x400, scoped, tag = 'output window, operand 0, single buffered']
    #allocation3 [shape = 's32[1]{0}', space=sflag, size = 0x4, scoped, tag = 'scoped memory for vit_forward.5']
    %10 = vsyncpa [#allocation3], 0
    // Predicated region
    $region2: #{vit_forward.5} parent=1 // pred_check
      _
    $region3: #{vit_forward.5} parent=1 // pred_check_branch
      %12 = sbr.rel (0) target = $region5
    $region4: #{vit_forward.5} parent=1 // pred_region
      _
    $region5: #{vit_forward.5} parent=1 // pred_fallthru
      _
    // Predicated region
    $region6: #{vit_forward.5} parent=1 // pred_check
      _
    $region7: #{vit_forward.5} parent=1 // pred_check_branch
      %14 = sbr.rel (0) target = $region9
    $region8: #{vit_forward.5} parent=1 // pred_region
      _
    $region9: #{vit_forward.5} parent=1 // pred_fallthru
      _
    // Predicated region
    $region10: #{vit_forward.5} parent=1 // pred_check
      _
    $region11: #{vit_forward.5} parent=1 // pred_check_branch
      %16 = sbr.rel (0) target = $region13
    $region12: #{vit_forward.5} parent=1 // pred_region
      _
    $region13: #{vit_forward.5} parent=1 // pred_fallthru
      _
    // Predicated region
    $region14: #{vit_forward.5} parent=1 // pred_check
      _
    $region15: #{vit_forward.5} parent=1 // pred_check_branch
      %18 = sbr.rel (0) target = $region17
    $region16: #{vit_forward.5} parent=1 // pred_region
      _
    $region17: #{vit_forward.5} parent=1 // pred_fallthru
      _
    // Predicated region
    $region18: #{vit_forward.5} parent=1 // pred_check
      _
    $region19: #{vit_forward.5} parent=1 // pred_check_branch
      %20 = sbr.rel (0) target = $region21
    $region20: #{vit_forward.5} parent=1 // pred_region
      _
    $region21: #{vit_forward.5} parent=1 // pred_fallthru
      _
    %v22 = vld [vmem:[%s0] sm:$0x3]
    %v23 = vld [vmem:[%s1] sm:$0x1]
    %v24 = vld [vmem:[%s2] sm:$0x1]
    %vm25 = vcmask 1041408
    %v26 = vsel %vm25, %v22, 0.0
    %27 = vadd.xlane.f32.xlu0 %v26
    %v28 = vpop.xlane.xlu0 %27
    %v29 = vrcp.pop 128.0
    %v30 = vmul.f32 %v28, %v29
    %v31 = vsub.f32 %v22, %v30
    %v32 = vmul.f32 %v31, %v31
    %v33 = vsel %vm25, %v32, 0.0
    %34 = vadd.xlane.f32.xlu0 %v33
    %v35 = vpop.xlane.xlu0 %34
    %v36 = vmul.f32 %v35, %v29
    %v37 = vadd.f32 %v36, 1e-05
    %v38 = vrsqrt.pop %v37
    %v39 = vmul.f32 %v31, %v38
    %v41 = vlaneseq
    %v42 = vshrl.u32 %v41, 7
    %v43 = vsub.s32 0, %v42
    %v44 = vrot.slane %v23, %v43
    %v46 = vmul.f32 %v39, %v44
    %v48 = vlaneseq
    %v49 = vshrl.u32 %v48, 7
    %v50 = vsub.s32 0, %v49
    %v51 = vrot.slane %v24, %v50
    %v53 = vadd.f32 %v46, %v51
    %v54 = vpack.c.bf16 %v53, %v53
    %v55 = vld [vmem:[%s3] sm:$0xf]
    %v56 = vld [vmem:[%s3 + $0x4] sm:$0xf]
    %v57 = vld [vmem:[%s3 + $0x8] sm:$0xf]
    %v58 = vld [vmem:[%s3 + $0xc] sm:$0xf]
    %v59 = vld [vmem:[%s3 + $0x10] sm:$0xf]
    %v60 = vld [vmem:[%s3 + $0x14] sm:$0xf]
    %v61 = vld [vmem:[%s3 + $0x18] sm:$0xf]
    %v62 = vld [vmem:[%s3 + $0x1c] sm:$0xf]
    %v63 = vld [vmem:[%s3 + $0x20] sm:$0xf]
    %v64 = vld [vmem:[%s3 + $0x24] sm:$0xf]
    %v65 = vld [vmem:[%s3 + $0x28] sm:$0xf]
    %v66 = vld [vmem:[%s3 + $0x2c] sm:$0xf]
    %v67 = vld [vmem:[%s3 + $0x30] sm:$0xf]
    %v68 = vld [vmem:[%s3 + $0x34] sm:$0xf]
    %v69 = vld [vmem:[%s3 + $0x38] sm:$0xf]
    %v70 = vld [vmem:[%s3 + $0x3c] sm:$0xf]
    %v71 = vld [vmem:[%s4] sm:$0x1]
    %v73 = vlaneseq
    %v74 = vshrl.u32 %v73, 7
    %v75 = vsub.s32 0, %v74
    %v76 = vrot.slane %v71, %v75
    %v94 = vunpack.c.l.b16 %v55
    %v95 = vunpack.c.l.b16 %v56
    %v96 = vunpack.c.l.b16 %v57
    %v97 = vunpack.c.l.b16 %v58
    %v98 = vunpack.c.l.b16 %v59
    %v99 = vunpack.c.l.b16 %v60
    %v100 = vunpack.c.l.b16 %v61
    %v101 = vunpack.c.l.b16 %v62
    %v102 = vunpack.c.l.b16 %v63
    %v103 = vunpack.c.l.b16 %v64
    %v104 = vunpack.c.l.b16 %v65
    %v105 = vunpack.c.l.b16 %v66
    %v106 = vunpack.c.l.b16 %v67
    %v107 = vunpack.c.l.b16 %v68
    %v108 = vunpack.c.l.b16 %v69
    %v109 = vunpack.c.l.b16 %v70
    %v110 = vpack.c.b16 %v95, %v94
    %v111 = vpack.c.b16 %v97, %v96
    %v112 = vpack.c.b16 %v99, %v98
    %v113 = vpack.c.b16 %v101, %v100
    %v114 = vpack.c.b16 %v103, %v102
    %v115 = vpack.c.b16 %v105, %v104
    %v116 = vpack.c.b16 %v107, %v106
    %v117 = vpack.c.b16 %v109, %v108
    %126 = vmatprep.subr.bf16.mxu0 0
    %127 = vmatpush1.bf16.msra.mxu0 %v110
    %128 = vmatprep.subr.bf16.mxu0 0
    %129 = vmatpush1.bf16.msra.mxu0 %v111
    %130 = vmatprep.subr.bf16.mxu0 0
    %131 = vmatpush1.bf16.msra.mxu0 %v112
    %132 = vmatprep.subr.bf16.mxu0 0
    %133 = vmatpush1.bf16.msra.mxu0 %v113
    %134 = vmatprep.subr.bf16.mxu0 0
    %135 = vmatpush1.bf16.msra.mxu0 %v114
    %136 = vmatprep.subr.bf16.mxu0 0
    %137 = vmatpush1.bf16.msra.mxu0 %v115
    %138 = vmatprep.subr.bf16.mxu0 0
    %139 = vmatpush1.bf16.msra.mxu0 %v116
    %140 = vmatprep.subr.bf16.mxu0 0
    %141 = vmatpush1.bf16.msra.mxu0 %v117
    %142 = vmatprep.subr.bf16.mxu0 0
    %143 = vmatpush1.bf16.msra.mxu0 0
    %144 = vmatprep.subr.bf16.mxu0 0
    %145 = vmatpush1.bf16.msra.mxu0 0
    %146 = vmatprep.subr.bf16.mxu0 0
    %147 = vmatpush1.bf16.msra.mxu0 0
    %148 = vmatprep.subr.bf16.mxu0 0
    %149 = vmatpush1.bf16.msra.mxu0 0
    %150 = vmatprep.subr.bf16.mxu0 0
    %151 = vmatpush1.bf16.msra.mxu0 0
    %152 = vmatprep.subr.bf16.mxu0 0
    %153 = vmatpush1.bf16.msra.mxu0 0
    %154 = vmatprep.subr.bf16.mxu0 0
    %155 = vmatpush1.bf16.msra.mxu0 0
    %156 = vmatprep.subr.bf16.mxu0 0
    %157 = vmatpush1.bf16.msra.mxu0 0
    %158 = vmatprep.mubr.bf16.mxu0 0
    %159 = vmatmul.mubr.bf16.gmra.mrb[0].mxu0 %v54
    %v160 = vpop.f32.mrb[0].mxu0
    %v161 = vadd.f32 %v76, %v160
    %v162 = vpop.f32.mrb[0].mxu0
    %v163 = vpop.f32.mrb[0].mxu0
    %v164 = vpop.f32.mrb[0].mxu0
    %165 = vdwg.mxu0
    %vm166 = vcmask 74752
    %167 = vst.msk [vmem:[#allocation2] sm:$0x3] %vm166, %v161
    // Predicated region
    $region22: #{vit_forward.5} parent=1 // pred_check
      _
    $region23: #{vit_forward.5} parent=1 // pred_check_branch
      %169 = sbr.rel (0) target = $region25
    $region24: #{vit_forward.5} parent=1 // pred_region
      %s171 = ssub.s32 32, 32
      %172 = vsyncadd [#allocation3], %s171
      %s174 = sshll.u32 [#allocation2], 4
      %s175 = int_to_ptr.vmem [resolvable:$true] %s174
      %177 = dma.vmem_to_hbm [thread:$0]  %s175, 32, %s5, [#allocation3]
    $region25: #{vit_forward.5} parent=1 // pred_fallthru
      _
    // Predicated region
    $region26: #{vit_forward.5} parent=1 // pred_check
      _
    $region27: #{vit_forward.5} parent=1 // pred_check_branch
      %179 = sbr.rel (0) target = $region29
    $region28: #{vit_forward.5} parent=1 // pred_region
      %180 = dma.done [#allocation3], 32
    $region29: #{vit_forward.5} parent=1 // pred_fallthru
      _
    %181 = vsyncpa [#allocation3], 1

// kernel: vit_forward.4
$region0: #{vit_forward.4}
  #allocation0 [shape = 'u32[]', space=smem, size = 0x4, offset = 0x4, fixed_abs, tag = 'smem constant byte address 0x4 - core index']
  #allocation1 [shape = 'u32[144,128]{1,0:T(1,128)}', space=vmem, size = 0x12000, scoped, tag = 'internal scratch']
  #allocation2 [shape = 'f32[34,128]{1,0:T(8,128)}', space=vmem, size = 0x5000, scoped, tag = 'scratch operand']
  #allocation3 [shape = 'f32[34,128]{1,0:T(8,128)}', space=vmem, size = 0x5000, scoped, tag = 'scratch operand']
  %s0 = inlined_call_operand.vmem [shape: f32[1,34,128], index: 0, kind: input, shape index: {}]
  %s1 = inlined_call_operand.vmem [shape: f32[2,1,128], index: 1, kind: input, shape index: {}]
  %s2 = inlined_call_operand.vmem [shape: f32[2,1,128], index: 2, kind: input, shape index: {}]
  %s3 = inlined_call_operand.vmem [shape: bf16[2,128,384], index: 3, kind: input, shape index: {}]
  %s4 = inlined_call_operand.vmem [shape: f32[2,1,384], index: 4, kind: input, shape index: {}]
  %s5 = inlined_call_operand.vmem [shape: bf16[2,128,128], index: 5, kind: input, shape index: {}]
  %s6 = inlined_call_operand.vmem [shape: f32[2,1,128], index: 6, kind: input, shape index: {}]
  %s7 = inlined_call_operand.vmem [shape: f32[2,1,128], index: 7, kind: input, shape index: {}]
  %s8 = inlined_call_operand.vmem [shape: f32[2,1,128], index: 8, kind: input, shape index: {}]
  %s9 = inlined_call_operand.vmem [shape: bf16[2,128,128], index: 9, kind: input, shape index: {}]
  %s10 = inlined_call_operand.vmem [shape: f32[2,1,128], index: 10, kind: input, shape index: {}]
  %s11 = inlined_call_operand.vmem [shape: bf16[2,128,128], index: 11, kind: input, shape index: {}]
  %s12 = inlined_call_operand.vmem [shape: f32[2,1,128], index: 12, kind: input, shape index: {}]
  %s13 = inlined_call_operand.vmem [shape: f32[1,34,128], index: 13, kind: output, shape index: {}]
  %s14 = sld [smem:[#allocation0]]
  $region93: #{vit_forward.4} parent=0
    _
  %s16 = ssub.s32 1, %s14
  %s17 = scalar_select 0, %s16, %s14
  loop: start=0, step=1, limit=4
  $region2: #{vit_forward.4} parent=0 // loop_pre_header
    _
  $region3: #{vit_forward.4} parent=0 // loop_header
    %s19 = sphi 0, %s23
    %p20 = scmp.ge.s32.totalorder %s19, 4
    %s26 = sphi 0, %s38
    %s27 = sphi 0, %s34
    %s28 = sphi 0, %s26
    %s29 = sphi 0, %s27
    %s30 = sphi 0, %s28
    %s31 = sphi 0, %s29
    %s41 = sphi 0, %s43
    %s44 = sphi 0, %s41
    %s45 = sphi 0, %s44
    %s61 = sphi 0, %s45
    %s67 = sphi 0, %s69
    %s70 = sphi 0, %s67
    %s71 = sphi 0, %s70
    %s87 = sphi 0, %s71
    %s93 = sphi 0, %s95
    %s96 = sphi 0, %s93
    %s97 = sphi 0, %s96
    %s113 = sphi 0, %s97
    %s119 = sphi 0, %s121
    %s122 = sphi 0, %s119
    %s123 = sphi 0, %s122
    %s139 = sphi 0, %s123
    %s145 = sphi 0, %s147
    %s148 = sphi 0, %s145
    %s149 = sphi 0, %s148
    %s165 = sphi 0, %s149
    %s171 = sphi 0, %s173
    %s174 = sphi 0, %s171
    %s175 = sphi 0, %s174
    %s191 = sphi 0, %s175
    %s197 = sphi 0, %s199
    %s200 = sphi 0, %s197
    %s201 = sphi 0, %s200
    %s217 = sphi 0, %s201
    %s223 = sphi 0, %s225
    %s226 = sphi 0, %s223
    %s227 = sphi 0, %s226
    %s243 = sphi 0, %s227
    %s249 = sphi 0, %s251
    %s252 = sphi 0, %s249
    %s253 = sphi 0, %s252
    %s269 = sphi 0, %s253
    %s275 = sphi 0, %s277
    %s278 = sphi 0, %s275
    %s279 = sphi 0, %s278
    %s295 = sphi 0, %s279
    %s301 = sphi 0, %s303
    %s304 = sphi 0, %s301
    %s305 = sphi 0, %s304
    %s321 = sphi 0, %s305
    %s327 = sphi 0, %s329
    %s330 = sphi 0, %s327
    %s331 = sphi 0, %s330
    %s347 = sphi 0, %s331
    %s353 = sphi 0, %s355
    %s356 = sphi 0, %s353
    %s357 = sphi 0, %s356
    %s373 = sphi 0, %s357
    %s379 = sphi 0, %s381
    %s382 = sphi 0, %s379
    %s383 = sphi 0, %s382
    %s399 = sphi 0, %s383
  $region4: #{vit_forward.4} parent=0 // loop_header_branch
    %22 = sbr.rel (%p20) target = $region8
  $region5: #{vit_forward.4} parent=0 // loop_body
    %s24 = ssub.s32 %s19, 1
    %s25 = ssub.s32 %s19, 2
    %s32 = sadd.s32 1, %s27
    %p33 = scmp.ge.s32.totalorder %s32, 2
    %s34 = scalar_select %p33, 0, %s32
    %s35 = sadd.s32 1, %s26
    %s36 = scalar_select %p33, %s35, %s26
    %p37 = scmp.ge.s32.totalorder %s36, 1
    %s38 = scalar_select %p37, 0, %s36
    %s39 = ssub.s32 %s26, %s38
    %p40 = scmp.eq.s32.totalorder %s39, 0
    %s42 = sadd.s32 %s41, 1
    %s43 = scalar_select %p40, %s41, %s42
    %p46 = pneg %p40
    %p47 = scmp.eq.s32.totalorder %s19, 1
    %p48 = por %p46, %p47
    %p49 = scmp.ne.s32.totalorder %s41, %s44
    %p50 = scmp.eq.s32.totalorder %s19, 0
    %p51 = por %p49, %p50
    %p52 = scmp.ne.s32.totalorder %s41, %s44
    %p53 = scmp.eq.s32.totalorder %s24, 1
    %p54 = por %p52, %p53
    %p55 = scmp.ne.s32.totalorder %s44, %s45
    %p56 = scmp.eq.s32.totalorder %s24, 0
    %p57 = por %p55, %p56
    %p58 = scmp.ne.s32.totalorder %s44, %s45
    %p59 = scmp.eq.s32.totalorder %s25, 1
    %p60 = por %p58, %p59
    %p62 = scmp.ne.s32.totalorder %s45, %s61
    %p63 = scmp.eq.s32.totalorder %s25, 0
    %p64 = por %p62, %p63
    %s65 = ssub.s32 %s27, %s34
    %p66 = scmp.eq.s32.totalorder %s65, 0
    %s68 = sadd.s32 %s67, 1
    %s69 = scalar_select %p66, %s67, %s68
    %p72 = pneg %p66
    %p73 = scmp.eq.s32.totalorder %s19, 1
    %p74 = por %p72, %p73
    %p75 = scmp.ne.s32.totalorder %s67, %s70
    %p76 = scmp.eq.s32.totalorder %s19, 0
    %p77 = por %p75, %p76
    %p78 = scmp.ne.s32.totalorder %s67, %s70
    %p79 = scmp.eq.s32.totalorder %s24, 1
    %p80 = por %p78, %p79
    %p81 = scmp.ne.s32.totalorder %s70, %s71
    %p82 = scmp.eq.s32.totalorder %s24, 0
    %p83 = por %p81, %p82
    %p84 = scmp.ne.s32.totalorder %s70, %s71
    %p85 = scmp.eq.s32.totalorder %s25, 1
    %p86 = por %p84, %p85
    %p88 = scmp.ne.s32.totalorder %s71, %s87
    %p89 = scmp.eq.s32.totalorder %s25, 0
    %p90 = por %p88, %p89
    %s91 = ssub.s32 %s27, %s34
    %p92 = scmp.eq.s32.totalorder %s91, 0
    %s94 = sadd.s32 %s93, 1
    %s95 = scalar_select %p92, %s93, %s94
    %p98 = pneg %p92
    %p99 = scmp.eq.s32.totalorder %s19, 1
    %p100 = por %p98, %p99
    %p101 = scmp.ne.s32.totalorder %s93, %s96
    %p102 = scmp.eq.s32.totalorder %s19, 0
    %p103 = por %p101, %p102
    %p104 = scmp.ne.s32.totalorder %s93, %s96
    %p105 = scmp.eq.s32.totalorder %s24, 1
    %p106 = por %p104, %p105
    %p107 = scmp.ne.s32.totalorder %s96, %s97
    %p108 = scmp.eq.s32.totalorder %s24, 0
    %p109 = por %p107, %p108
    %p110 = scmp.ne.s32.totalorder %s96, %s97
    %p111 = scmp.eq.s32.totalorder %s25, 1
    %p112 = por %p110, %p111
    %p114 = scmp.ne.s32.totalorder %s97, %s113
    %p115 = scmp.eq.s32.totalorder %s25, 0
    %p116 = por %p114, %p115
    %s117 = ssub.s32 %s27, %s34
    %p118 = scmp.eq.s32.totalorder %s117, 0
    %s120 = sadd.s32 %s119, 1
    %s121 = scalar_select %p118, %s119, %s120
    %p124 = pneg %p118
    %p125 = scmp.eq.s32.totalorder %s19, 1
    %p126 = por %p124, %p125
    %p127 = scmp.ne.s32.totalorder %s119, %s122
    %p128 = scmp.eq.s32.totalorder %s19, 0
    %p129 = por %p127, %p128
    %p130 = scmp.ne.s32.totalorder %s119, %s122
    %p131 = scmp.eq.s32.totalorder %s24, 1
    %p132 = por %p130, %p131
    %p133 = scmp.ne.s32.totalorder %s122, %s123
    %p134 = scmp.eq.s32.totalorder %s24, 0
    %p135 = por %p133, %p134
    %p136 = scmp.ne.s32.totalorder %s122, %s123
    %p137 = scmp.eq.s32.totalorder %s25, 1
    %p138 = por %p136, %p137
    %p140 = scmp.ne.s32.totalorder %s123, %s139
    %p141 = scmp.eq.s32.totalorder %s25, 0
    %p142 = por %p140, %p141
    %s143 = ssub.s32 %s27, %s34
    %p144 = scmp.eq.s32.totalorder %s143, 0
    %s146 = sadd.s32 %s145, 1
    %s147 = scalar_select %p144, %s145, %s146
    %p150 = pneg %p144
    %p151 = scmp.eq.s32.totalorder %s19, 1
    %p152 = por %p150, %p151
    %p153 = scmp.ne.s32.totalorder %s145, %s148
    %p154 = scmp.eq.s32.totalorder %s19, 0
    %p155 = por %p153, %p154
    %p156 = scmp.ne.s32.totalorder %s145, %s148
    %p157 = scmp.eq.s32.totalorder %s24, 1
    %p158 = por %p156, %p157
    %p159 = scmp.ne.s32.totalorder %s148, %s149
    %p160 = scmp.eq.s32.totalorder %s24, 0
    %p161 = por %p159, %p160
    %p162 = scmp.ne.s32.totalorder %s148, %s149
    %p163 = scmp.eq.s32.totalorder %s25, 1
    %p164 = por %p162, %p163
    %p166 = scmp.ne.s32.totalorder %s149, %s165
    %p167 = scmp.eq.s32.totalorder %s25, 0
    %p168 = por %p166, %p167
    %s169 = ssub.s32 %s27, %s34
    %p170 = scmp.eq.s32.totalorder %s169, 0
    %s172 = sadd.s32 %s171, 1
    %s173 = scalar_select %p170, %s171, %s172
    %p176 = pneg %p170
    %p177 = scmp.eq.s32.totalorder %s19, 1
    %p178 = por %p176, %p177
    %p179 = scmp.ne.s32.totalorder %s171, %s174
    %p180 = scmp.eq.s32.totalorder %s19, 0
    %p181 = por %p179, %p180
    %p182 = scmp.ne.s32.totalorder %s171, %s174
    %p183 = scmp.eq.s32.totalorder %s24, 1
    %p184 = por %p182, %p183
    %p185 = scmp.ne.s32.totalorder %s174, %s175
    %p186 = scmp.eq.s32.totalorder %s24, 0
    %p187 = por %p185, %p186
    %p188 = scmp.ne.s32.totalorder %s174, %s175
    %p189 = scmp.eq.s32.totalorder %s25, 1
    %p190 = por %p188, %p189
    %p192 = scmp.ne.s32.totalorder %s175, %s191
    %p193 = scmp.eq.s32.totalorder %s25, 0
    %p194 = por %p192, %p193
    %s195 = ssub.s32 %s27, %s34
    %p196 = scmp.eq.s32.totalorder %s195, 0
    %s198 = sadd.s32 %s197, 1
    %s199 = scalar_select %p196, %s197, %s198
    %p202 = pneg %p196
    %p203 = scmp.eq.s32.totalorder %s19, 1
    %p204 = por %p202, %p203
    %p205 = scmp.ne.s32.totalorder %s197, %s200
    %p206 = scmp.eq.s32.totalorder %s19, 0
    %p207 = por %p205, %p206
    %p208 = scmp.ne.s32.totalorder %s197, %s200
    %p209 = scmp.eq.s32.totalorder %s24, 1
    %p210 = por %p208, %p209
    %p211 = scmp.ne.s32.totalorder %s200, %s201
    %p212 = scmp.eq.s32.totalorder %s24, 0
    %p213 = por %p211, %p212
    %p214 = scmp.ne.s32.totalorder %s200, %s201
    %p215 = scmp.eq.s32.totalorder %s25, 1
    %p216 = por %p214, %p215
    %p218 = scmp.ne.s32.totalorder %s201, %s217
    %p219 = scmp.eq.s32.totalorder %s25, 0
    %p220 = por %p218, %p219
    %s221 = ssub.s32 %s27, %s34
    %p222 = scmp.eq.s32.totalorder %s221, 0
    %s224 = sadd.s32 %s223, 1
    %s225 = scalar_select %p222, %s223, %s224
    %p228 = pneg %p222
    %p229 = scmp.eq.s32.totalorder %s19, 1
    %p230 = por %p228, %p229
    %p231 = scmp.ne.s32.totalorder %s223, %s226
    %p232 = scmp.eq.s32.totalorder %s19, 0
    %p233 = por %p231, %p232
    %p234 = scmp.ne.s32.totalorder %s223, %s226
    %p235 = scmp.eq.s32.totalorder %s24, 1
    %p236 = por %p234, %p235
    %p237 = scmp.ne.s32.totalorder %s226, %s227
    %p238 = scmp.eq.s32.totalorder %s24, 0
    %p239 = por %p237, %p238
    %p240 = scmp.ne.s32.totalorder %s226, %s227
    %p241 = scmp.eq.s32.totalorder %s25, 1
    %p242 = por %p240, %p241
    %p244 = scmp.ne.s32.totalorder %s227, %s243
    %p245 = scmp.eq.s32.totalorder %s25, 0
    %p246 = por %p244, %p245
    %s247 = ssub.s32 %s27, %s34
    %p248 = scmp.eq.s32.totalorder %s247, 0
    %s250 = sadd.s32 %s249, 1
    %s251 = scalar_select %p248, %s249, %s250
    %p254 = pneg %p248
    %p255 = scmp.eq.s32.totalorder %s19, 1
    %p256 = por %p254, %p255
    %p257 = scmp.ne.s32.totalorder %s249, %s252
    %p258 = scmp.eq.s32.totalorder %s19, 0
    %p259 = por %p257, %p258
    %p260 = scmp.ne.s32.totalorder %s249, %s252
    %p261 = scmp.eq.s32.totalorder %s24, 1
    %p262 = por %p260, %p261
    %p263 = scmp.ne.s32.totalorder %s252, %s253
    %p264 = scmp.eq.s32.totalorder %s24, 0
    %p265 = por %p263, %p264
    %p266 = scmp.ne.s32.totalorder %s252, %s253
    %p267 = scmp.eq.s32.totalorder %s25, 1
    %p268 = por %p266, %p267
    %p270 = scmp.ne.s32.totalorder %s253, %s269
    %p271 = scmp.eq.s32.totalorder %s25, 0
    %p272 = por %p270, %p271
    %s273 = ssub.s32 %s27, %s34
    %p274 = scmp.eq.s32.totalorder %s273, 0
    %s276 = sadd.s32 %s275, 1
    %s277 = scalar_select %p274, %s275, %s276
    %p280 = pneg %p274
    %p281 = scmp.eq.s32.totalorder %s19, 1
    %p282 = por %p280, %p281
    %p283 = scmp.ne.s32.totalorder %s275, %s278
    %p284 = scmp.eq.s32.totalorder %s19, 0
    %p285 = por %p283, %p284
    %p286 = scmp.ne.s32.totalorder %s275, %s278
    %p287 = scmp.eq.s32.totalorder %s24, 1
    %p288 = por %p286, %p287
    %p289 = scmp.ne.s32.totalorder %s278, %s279
    %p290 = scmp.eq.s32.totalorder %s24, 0
    %p291 = por %p289, %p290
    %p292 = scmp.ne.s32.totalorder %s278, %s279
    %p293 = scmp.eq.s32.totalorder %s25, 1
    %p294 = por %p292, %p293
    %p296 = scmp.ne.s32.totalorder %s279, %s295
    %p297 = scmp.eq.s32.totalorder %s25, 0
    %p298 = por %p296, %p297
    %s299 = ssub.s32 %s27, %s34
    %p300 = scmp.eq.s32.totalorder %s299, 0
    %s302 = sadd.s32 %s301, 1
    %s303 = scalar_select %p300, %s301, %s302
    %p306 = pneg %p300
    %p307 = scmp.eq.s32.totalorder %s19, 1
    %p308 = por %p306, %p307
    %p309 = scmp.ne.s32.totalorder %s301, %s304
    %p310 = scmp.eq.s32.totalorder %s19, 0
    %p311 = por %p309, %p310
    %p312 = scmp.ne.s32.totalorder %s301, %s304
    %p313 = scmp.eq.s32.totalorder %s24, 1
    %p314 = por %p312, %p313
    %p315 = scmp.ne.s32.totalorder %s304, %s305
    %p316 = scmp.eq.s32.totalorder %s24, 0
    %p317 = por %p315, %p316
    %p318 = scmp.ne.s32.totalorder %s304, %s305
    %p319 = scmp.eq.s32.totalorder %s25, 1
    %p320 = por %p318, %p319
    %p322 = scmp.ne.s32.totalorder %s305, %s321
    %p323 = scmp.eq.s32.totalorder %s25, 0
    %p324 = por %p322, %p323
    %s325 = ssub.s32 %s27, %s34
    %p326 = scmp.eq.s32.totalorder %s325, 0
    %s328 = sadd.s32 %s327, 1
    %s329 = scalar_select %p326, %s327, %s328
    %p332 = pneg %p326
    %p333 = scmp.eq.s32.totalorder %s19, 1
    %p334 = por %p332, %p333
    %p335 = scmp.ne.s32.totalorder %s327, %s330
    %p336 = scmp.eq.s32.totalorder %s19, 0
    %p337 = por %p335, %p336
    %p338 = scmp.ne.s32.totalorder %s327, %s330
    %p339 = scmp.eq.s32.totalorder %s24, 1
    %p340 = por %p338, %p339
    %p341 = scmp.ne.s32.totalorder %s330, %s331
    %p342 = scmp.eq.s32.totalorder %s24, 0
    %p343 = por %p341, %p342
    %p344 = scmp.ne.s32.totalorder %s330, %s331
    %p345 = scmp.eq.s32.totalorder %s25, 1
    %p346 = por %p344, %p345
    %p348 = scmp.ne.s32.totalorder %s331, %s347
    %p349 = scmp.eq.s32.totalorder %s25, 0
    %p350 = por %p348, %p349
    %s351 = ssub.s32 %s27, %s34
    %p352 = scmp.eq.s32.totalorder %s351, 0
    %s354 = sadd.s32 %s353, 1
    %s355 = scalar_select %p352, %s353, %s354
    %p358 = pneg %p352
    %p359 = scmp.eq.s32.totalorder %s19, 1
    %p360 = por %p358, %p359
    %p361 = scmp.ne.s32.totalorder %s353, %s356
    %p362 = scmp.eq.s32.totalorder %s19, 0
    %p363 = por %p361, %p362
    %p364 = scmp.ne.s32.totalorder %s353, %s356
    %p365 = scmp.eq.s32.totalorder %s24, 1
    %p366 = por %p364, %p365
    %p367 = scmp.ne.s32.totalorder %s356, %s357
    %p368 = scmp.eq.s32.totalorder %s24, 0
    %p369 = por %p367, %p368
    %p370 = scmp.ne.s32.totalorder %s356, %s357
    %p371 = scmp.eq.s32.totalorder %s25, 1
    %p372 = por %p370, %p371
    %p374 = scmp.ne.s32.totalorder %s357, %s373
    %p375 = scmp.eq.s32.totalorder %s25, 0
    %p376 = por %p374, %p375
    %s377 = ssub.s32 %s26, %s38
    %p378 = scmp.eq.s32.totalorder %s377, 0
    %s380 = sadd.s32 %s379, 1
    %s381 = scalar_select %p378, %s379, %s380
    %p384 = pneg %p378
    %p385 = scmp.eq.s32.totalorder %s19, 1
    %p386 = por %p384, %p385
    %p387 = scmp.ne.s32.totalorder %s379, %s382
    %p388 = scmp.eq.s32.totalorder %s19, 0
    %p389 = por %p387, %p388
    %p390 = scmp.ne.s32.totalorder %s379, %s382
    %p391 = scmp.eq.s32.totalorder %s24, 1
    %p392 = por %p390, %p391
    %p393 = scmp.ne.s32.totalorder %s382, %s383
    %p394 = scmp.eq.s32.totalorder %s24, 0
    %p395 = por %p393, %p394
    %p396 = scmp.ne.s32.totalorder %s382, %s383
    %p397 = scmp.eq.s32.totalorder %s25, 1
    %p398 = por %p396, %p397
    %p400 = scmp.ne.s32.totalorder %s383, %s399
    %p401 = scmp.eq.s32.totalorder %s25, 0
    %p402 = por %p400, %p401
    %p403 = scmp.le.s32.totalorder 1, %s19
    %p404 = scmp.lt.s32.totalorder %s19, 3
    %p405 = pnand %p403, %p404
    %p406 = pneg %p405
    // Predicated region
    $region9: #{vit_forward.4} parent=5 // pred_check
      _
    $region10: #{vit_forward.4} parent=5 // pred_check_branch
      %408 = sbr.rel (%p405) target = $region12
    $region11: #{vit_forward.4} parent=5 // pred_region
      %s409 = ssub.s32 %s19, 1
      // Predicated region
      $region13: #{vit_forward.4} parent=11 // pred_check
        %p410 = pneg %p57
      $region14: #{vit_forward.4} parent=11 // pred_check_branch
        %412 = sbr.rel (%p410) target = $region16
      $region15: #{vit_forward.4} parent=11 // pred_region
        %p413 = scmp.lt.s32.totalorder %s28, 0
        %s414 = scalar_select %p413, %s28, 0
        %s415 = smul.addr %s414, 5
        %s416 = smul.addr %s415, 8
        %s417 = scalar_lea.vmem %s0, %s416
      $region16: #{vit_forward.4} parent=11 // pred_fallthru
        _
    $region12: #{vit_forward.4} parent=5 // pred_fallthru
      _
    %p418 = scmp.lt.s32.totalorder %s19, 2
    // Predicated region
    $region17: #{vit_forward.4} parent=5 // pred_check
      %p419 = pneg %p418
    $region18: #{vit_forward.4} parent=5 // pred_check_branch
      %421 = sbr.rel (%p419) target = $region20
    $region19: #{vit_forward.4} parent=5 // pred_region
      // Predicated region
      $region21: #{vit_forward.4} parent=19 // pred_check
        %p422 = pneg %p77
      $region22: #{vit_forward.4} parent=19 // pred_check_branch
        %424 = sbr.rel (%p422) target = $region24
      $region23: #{vit_forward.4} parent=19 // pred_region
        %p425 = scmp.lt.s32.totalorder %s27, 1
        %s426 = scalar_select %p425, %s27, 1
        %s427 = scalar_lea.vmem %s1, %s426
      $region24: #{vit_forward.4} parent=19 // pred_fallthru
        _
      // Predicated region
      $region25: #{vit_forward.4} parent=19 // pred_check
        %p428 = pneg %p103
      $region26: #{vit_forward.4} parent=19 // pred_check_branch
        %430 = sbr.rel (%p428) target = $region28
      $region27: #{vit_forward.4} parent=19 // pred_region
        %p431 = scmp.lt.s32.totalorder %s27, 1
        %s432 = scalar_select %p431, %s27, 1
        %s433 = scalar_lea.vmem %s2, %s432
      $region28: #{vit_forward.4} parent=19 // pred_fallthru
        _
      // Predicated region
      $region29: #{vit_forward.4} parent=19 // pred_check
        %p434 = pneg %p129
      $region30: #{vit_forward.4} parent=19 // pred_check_branch
        %436 = sbr.rel (%p434) target = $region32
      $region31: #{vit_forward.4} parent=19 // pred_region
        %p437 = scmp.lt.s32.totalorder %s27, 1
        %s438 = scalar_select %p437, %s27, 1
        %s439 = smul.addr %s438, 48
        %s440 = smul.addr %s439, 4
        %s441 = scalar_lea.vmem %s3, %s440
      $region32: #{vit_forward.4} parent=19 // pred_fallthru
        _
      // Predicated region
      $region33: #{vit_forward.4} parent=19 // pred_check
        %p442 = pneg %p155
      $region34: #{vit_forward.4} parent=19 // pred_check_branch
        %444 = sbr.rel (%p442) target = $region36
      $region35: #{vit_forward.4} parent=19 // pred_region
        %p445 = scmp.lt.s32.totalorder %s27, 1
        %s446 = scalar_select %p445, %s27, 1
        %s447 = smul.addr %s446, 3
        %s448 = scalar_lea.vmem %s4, %s447
      $region36: #{vit_forward.4} parent=19 // pred_fallthru
        _
      // Predicated region
      $region37: #{vit_forward.4} parent=19 // pred_check
        %p449 = pneg %p181
      $region38: #{vit_forward.4} parent=19 // pred_check_branch
        %451 = sbr.rel (%p449) target = $region40
      $region39: #{vit_forward.4} parent=19 // pred_region
        %p452 = scmp.lt.s32.totalorder %s27, 1
        %s453 = scalar_select %p452, %s27, 1
        %s454 = smul.addr %s453, 16
        %s455 = smul.addr %s454, 4
        %s456 = scalar_lea.vmem %s5, %s455
      $region40: #{vit_forward.4} parent=19 // pred_fallthru
        _
      // Predicated region
      $region41: #{vit_forward.4} parent=19 // pred_check
        %p457 = pneg %p207
      $region42: #{vit_forward.4} parent=19 // pred_check_branch
        %459 = sbr.rel (%p457) target = $region44
      $region43: #{vit_forward.4} parent=19 // pred_region
        %p460 = scmp.lt.s32.totalorder %s27, 1
        %s461 = scalar_select %p460, %s27, 1
        %s462 = scalar_lea.vmem %s6, %s461
      $region44: #{vit_forward.4} parent=19 // pred_fallthru
        _
      // Predicated region
      $region45: #{vit_forward.4} parent=19 // pred_check
        %p463 = pneg %p233
      $region46: #{vit_forward.4} parent=19 // pred_check_branch
        %465 = sbr.rel (%p463) target = $region48
      $region47: #{vit_forward.4} parent=19 // pred_region
        %p466 = scmp.lt.s32.totalorder %s27, 1
        %s467 = scalar_select %p466, %s27, 1
        %s468 = scalar_lea.vmem %s7, %s467
      $region48: #{vit_forward.4} parent=19 // pred_fallthru
        _
      // Predicated region
      $region49: #{vit_forward.4} parent=19 // pred_check
        %p469 = pneg %p259
      $region50: #{vit_forward.4} parent=19 // pred_check_branch
        %471 = sbr.rel (%p469) target = $region52
      $region51: #{vit_forward.4} parent=19 // pred_region
        %p472 = scmp.lt.s32.totalorder %s27, 1
        %s473 = scalar_select %p472, %s27, 1
        %s474 = scalar_lea.vmem %s8, %s473
      $region52: #{vit_forward.4} parent=19 // pred_fallthru
        _
      // Predicated region
      $region53: #{vit_forward.4} parent=19 // pred_check
        %p475 = pneg %p285
      $region54: #{vit_forward.4} parent=19 // pred_check_branch
        %477 = sbr.rel (%p475) target = $region56
      $region55: #{vit_forward.4} parent=19 // pred_region
        %p478 = scmp.lt.s32.totalorder %s27, 1
        %s479 = scalar_select %p478, %s27, 1
        %s480 = smul.addr %s479, 16
        %s481 = smul.addr %s480, 4
        %s482 = scalar_lea.vmem %s9, %s481
      $region56: #{vit_forward.4} parent=19 // pred_fallthru
        _
      // Predicated region
      $region57: #{vit_forward.4} parent=19 // pred_check
        %p483 = pneg %p311
      $region58: #{vit_forward.4} parent=19 // pred_check_branch
        %485 = sbr.rel (%p483) target = $region60
      $region59: #{vit_forward.4} parent=19 // pred_region
        %p486 = scmp.lt.s32.totalorder %s27, 1
        %s487 = scalar_select %p486, %s27, 1
        %s488 = scalar_lea.vmem %s10, %s487
      $region60: #{vit_forward.4} parent=19 // pred_fallthru
        _
      // Predicated region
      $region61: #{vit_forward.4} parent=19 // pred_check
        %p489 = pneg %p337
      $region62: #{vit_forward.4} parent=19 // pred_check_branch
        %491 = sbr.rel (%p489) target = $region64
      $region63: #{vit_forward.4} parent=19 // pred_region
        %p492 = scmp.lt.s32.totalorder %s27, 1
        %s493 = scalar_select %p492, %s27, 1
        %s494 = smul.addr %s493, 16
        %s495 = smul.addr %s494, 4
        %s496 = scalar_lea.vmem %s11, %s495
      $region64: #{vit_forward.4} parent=19 // pred_fallthru
        _
      // Predicated region
      $region65: #{vit_forward.4} parent=19 // pred_check
        %p497 = pneg %p363
      $region66: #{vit_forward.4} parent=19 // pred_check_branch
        %499 = sbr.rel (%p497) target = $region68
      $region67: #{vit_forward.4} parent=19 // pred_region
        %p500 = scmp.lt.s32.totalorder %s27, 1
        %s501 = scalar_select %p500, %s27, 1
        %s502 = scalar_lea.vmem %s12, %s501
      $region68: #{vit_forward.4} parent=19 // pred_fallthru
        _
    $region20: #{vit_forward.4} parent=5 // pred_fallthru
      _
    %p503 = scmp.le.s32.totalorder 1, %s19
    %p504 = scmp.lt.s32.totalorder %s19, 3
    %p505 = pnand %p503, %p504
    %p506 = pneg %p505
    // Predicated region
    $region69: #{vit_forward.4} parent=5 // pred_check
      _
    $region70: #{vit_forward.4} parent=5 // pred_check_branch
      %508 = sbr.rel (%p505) target = $region72
    $region71: #{vit_forward.4} parent=5 // pred_region
      %s509 = ssub.s32 %s19, 1
      %p510 = scmp.lt.s32.totalorder %s28, 0
      %s511 = scalar_select %p510, %s28, 0
      %s512 = smul.addr %s511, 5
      %s513 = smul.addr %s512, 8
      %s514 = scalar_lea.vmem %s0, %s513
      %p515 = pneg %p57
      %p516 = pneg %p54
      %p517 = scmp.lt.s32.totalorder %s29, 1
      %s518 = scalar_select %p517, %s29, 1
      %s519 = scalar_lea.vmem %s1, %s518
      %p520 = pneg %p83
      %p521 = pneg %p80
      %p522 = scmp.lt.s32.totalorder %s29, 1
      %s523 = scalar_select %p522, %s29, 1
      %s524 = scalar_lea.vmem %s2, %s523
      %p525 = pneg %p109
      %p526 = pneg %p106
      %p527 = scmp.lt.s32.totalorder %s29, 1
      %s528 = scalar_select %p527, %s29, 1
      %s529 = smul.addr %s528, 48
      %s530 = smul.addr %s529, 4
      %s531 = scalar_lea.vmem %s3, %s530
      %p532 = pneg %p135
      %p533 = pneg %p132
      %p534 = scmp.lt.s32.totalorder %s29, 1
      %s535 = scalar_select %p534, %s29, 1
      %s536 = smul.addr %s535, 3
      %s537 = scalar_lea.vmem %s4, %s536
      %p538 = pneg %p161
      %p539 = pneg %p158
      %p540 = scmp.lt.s32.totalorder %s29, 1
      %s541 = scalar_select %p540, %s29, 1
      %s542 = smul.addr %s541, 16
      %s543 = smul.addr %s542, 4
      %s544 = scalar_lea.vmem %s5, %s543
      %p545 = pneg %p187
      %p546 = pneg %p184
      %p547 = scmp.lt.s32.totalorder %s29, 1
      %s548 = scalar_select %p547, %s29, 1
      %s549 = scalar_lea.vmem %s6, %s548
      %p550 = pneg %p213
      %p551 = pneg %p210
      %p552 = scmp.lt.s32.totalorder %s29, 1
      %s553 = scalar_select %p552, %s29, 1
      %s554 = scalar_lea.vmem %s7, %s553
      %p555 = pneg %p239
      %p556 = pneg %p236
      %p557 = scmp.lt.s32.totalorder %s29, 1
      %s558 = scalar_select %p557, %s29, 1
      %s559 = scalar_lea.vmem %s8, %s558
      %p560 = pneg %p265
      %p561 = pneg %p262
      %p562 = scmp.lt.s32.totalorder %s29, 1
      %s563 = scalar_select %p562, %s29, 1
      %s564 = smul.addr %s563, 16
      %s565 = smul.addr %s564, 4
      %s566 = scalar_lea.vmem %s9, %s565
      %p567 = pneg %p291
      %p568 = pneg %p288
      %p569 = scmp.lt.s32.totalorder %s29, 1
      %s570 = scalar_select %p569, %s29, 1
      %s571 = scalar_lea.vmem %s10, %s570
      %p572 = pneg %p317
      %p573 = pneg %p314
      %p574 = scmp.lt.s32.totalorder %s29, 1
      %s575 = scalar_select %p574, %s29, 1
      %s576 = smul.addr %s575, 16
      %s577 = smul.addr %s576, 4
      %s578 = scalar_lea.vmem %s11, %s577
      %p579 = pneg %p343
      %p580 = pneg %p340
      %p581 = scmp.lt.s32.totalorder %s29, 1
      %s582 = scalar_select %p581, %s29, 1
      %s583 = scalar_lea.vmem %s12, %s582
      %p584 = pneg %p369
      %p585 = pneg %p366
      %p586 = pneg %p395
      %p587 = pneg %p392
      %p588 = scmp.lt.s32.totalorder %s28, 0
      %s589 = scalar_select %p588, %s28, 0
      %s590 = smul.addr %s589, 5
      %s591 = smul.addr %s590, 8
      %s592 = scalar_lea.vmem %s13, %s591
      %p593 = scmp.lt.s32.totalorder %s28, 0
      %s594 = scalar_select %p593, %s28, 0
      %s595 = smul.addr %s594, 5
      %s596 = smul.addr %s595, 8
      %s597 = scalar_lea.vmem %s0, %s596
      %p598 = scmp.lt.s32.totalorder %s29, 1
      %s599 = scalar_select %p598, %s29, 1
      %s600 = scalar_lea.vmem %s1, %s599
      %p601 = scmp.lt.s32.totalorder %s29, 1
      %s602 = scalar_select %p601, %s29, 1
      %s603 = scalar_lea.vmem %s2, %s602
      %p604 = scmp.lt.s32.totalorder %s29, 1
      %s605 = scalar_select %p604, %s29, 1
      %s606 = smul.addr %s605, 48
      %s607 = smul.addr %s606, 4
      %s608 = scalar_lea.vmem %s3, %s607
      %p609 = scmp.lt.s32.totalorder %s29, 1
      %s610 = scalar_select %p609, %s29, 1
      %s611 = smul.addr %s610, 3
      %s612 = scalar_lea.vmem %s4, %s611
      %p613 = scmp.lt.s32.totalorder %s29, 1
      %s614 = scalar_select %p613, %s29, 1
      %s615 = smul.addr %s614, 16
      %s616 = smul.addr %s615, 4
      %s617 = scalar_lea.vmem %s5, %s616
      %p618 = scmp.lt.s32.totalorder %s29, 1
      %s619 = scalar_select %p618, %s29, 1
      %s620 = scalar_lea.vmem %s6, %s619
      %p621 = scmp.lt.s32.totalorder %s29, 1
      %s622 = scalar_select %p621, %s29, 1
      %s623 = scalar_lea.vmem %s7, %s622
      %p624 = scmp.lt.s32.totalorder %s29, 1
      %s625 = scalar_select %p624, %s29, 1
      %s626 = scalar_lea.vmem %s8, %s625
      %p627 = scmp.lt.s32.totalorder %s29, 1
      %s628 = scalar_select %p627, %s29, 1
      %s629 = smul.addr %s628, 16
      %s630 = smul.addr %s629, 4
      %s631 = scalar_lea.vmem %s9, %s630
      %p632 = scmp.lt.s32.totalorder %s29, 1
      %s633 = scalar_select %p632, %s29, 1
      %s634 = scalar_lea.vmem %s10, %s633
      %p635 = scmp.lt.s32.totalorder %s29, 1
      %s636 = scalar_select %p635, %s29, 1
      %s637 = smul.addr %s636, 16
      %s638 = smul.addr %s637, 4
      %s639 = scalar_lea.vmem %s11, %s638
      %p640 = scmp.lt.s32.totalorder %s29, 1
      %s641 = scalar_select %p640, %s29, 1
      %s642 = scalar_lea.vmem %s12, %s641
      %p643 = scmp.lt.s32.totalorder %s28, 0
      %s644 = scalar_select %p643, %s28, 0
      %s645 = smul.addr %s644, 5
      %s646 = smul.addr %s645, 8
      %s647 = scalar_lea.vmem %s13, %s646
      %p649 = scmp.eq.s32.totalorder %s29, 0
      // Predicated region
      $region73: #{vit_forward.4} parent=71 // pred_check
        %p650 = pneg %p649
      $region74: #{vit_forward.4} parent=71 // pred_check_branch
        %652 = sbr.rel (%p650) target = $region76
      $region75: #{vit_forward.4} parent=71 // pred_region
        %v653 = vld [vmem:[%s597] sm:$0xff]
        %v654 = vld [vmem:[%s597 + $0x8] sm:$0xff]
        %v655 = vld [vmem:[%s597 + $0x10] sm:$0xff]
        %v656 = vld [vmem:[%s597 + $0x18] sm:$0xff]
        %v657 = vld [vmem:[%s597 + $0x20] sm:$0x3]
        %658 = vst [vmem:[#allocation2] sm:$0xff] %v653
        %659 = vst [vmem:[#allocation2 + $0x8] sm:$0xff] %v654
        %660 = vst [vmem:[#allocation2 + $0x10] sm:$0xff] %v655
        %661 = vst [vmem:[#allocation2 + $0x18] sm:$0xff] %v656
        %662 = vst [vmem:[#allocation2 + $0x20] sm:$0x3] %v657
      $region76: #{vit_forward.4} parent=71 // pred_fallthru
        _
      %v663 = vld [vmem:[#allocation2] sm:$0xff]
      %v664 = vld [vmem:[#allocation2 + $0x8] sm:$0xff]
      %v665 = vld [vmem:[#allocation2 + $0x10] sm:$0xff]
      %v666 = vld [vmem:[#allocation2 + $0x18] sm:$0xff]
      %v667 = vld [vmem:[#allocation2 + $0x20] sm:$0x3]
      %v668 = vld [vmem:[%s600] sm:$0x1]
      %v669 = vld [vmem:[%s603] sm:$0x1]
      %670 = vadd.xlane.f32.xlu0 %v663
      %v671 = vpop.xlane.xlu0 %670
      %672 = vadd.xlane.f32.xlu0 %v664
      %v673 = vpop.xlane.xlu0 %672
      %674 = vadd.xlane.f32.xlu0 %v665
      %v675 = vpop.xlane.xlu0 %674
      %676 = vadd.xlane.f32.xlu0 %v666
      %v677 = vpop.xlane.xlu0 %676
      %vm678 = vcmask 1041408
      %v679 = vsel %vm678, %v667, 0.0
      %680 = vadd.xlane.f32.xlu0 %v679
      %v681 = vpop.xlane.xlu0 %680
      %v682 = vrcp.pop 128.0
      %v683 = vmul.f32 %v671, %v682
      %v684 = vmul.f32 %v673, %v682
      %v685 = vmul.f32 %v675, %v682
      %v686 = vmul.f32 %v677, %v682
      %v687 = vmul.f32 %v681, %v682
      %v688 = vsub.f32 %v663, %v683
      %v689 = vsub.f32 %v664, %v684
      %v690 = vsub.f32 %v665, %v685
      %v691 = vsub.f32 %v666, %v686
      %v692 = vsub.f32 %v667, %v687
      %v693 = vmul.f32 %v688, %v688
      %v694 = vmul.f32 %v689, %v689
      %v695 = vmul.f32 %v690, %v690
      %v696 = vmul.f32 %v691, %v691
      %v697 = vmul.f32 %v692, %v692
      %698 = vadd.xlane.f32.xlu0 %v693
      %v699 = vpop.xlane.xlu0 %698
      %700 = vadd.xlane.f32.xlu0 %v694
      %v701 = vpop.xlane.xlu0 %700
      %702 = vadd.xlane.f32.xlu0 %v695
      %v703 = vpop.xlane.xlu0 %702
      %704 = vadd.xlane.f32.xlu0 %v696
      %v705 = vpop.xlane.xlu0 %704
      %v706 = vsel %vm678, %v697, 0.0
      %707 = vadd.xlane.f32.xlu0 %v706
      %v708 = vpop.xlane.xlu0 %707
      %v709 = vmul.f32 %v699, %v682
      %v710 = vmul.f32 %v701, %v682
      %v711 = vmul.f32 %v703, %v682
      %v712 = vmul.f32 %v705, %v682
      %v713 = vmul.f32 %v708, %v682
      %v714 = vadd.f32 %v709, 1e-05
      %v715 = vadd.f32 %v710, 1e-05
      %v716 = vadd.f32 %v711, 1e-05
      %v717 = vadd.f32 %v712, 1e-05
      %v718 = vadd.f32 %v713, 1e-05
      %v719 = vrsqrt.pop %v714
      %v720 = vrsqrt.pop %v715
      %v721 = vrsqrt.pop %v716
      %v722 = vrsqrt.pop %v717
      %v723 = vrsqrt.pop %v718
      %v724 = vmul.f32 %v688, %v719
      %v725 = vmul.f32 %v689, %v720
      %v726 = vmul.f32 %v690, %v721
      %v727 = vmul.f32 %v691, %v722
      %v728 = vmul.f32 %v692, %v723
      %v730 = vlaneseq
      %v731 = vshrl.u32 %v730, 7
      %v732 = vsub.s32 0, %v731
      %v733 = vrot.slane %v668, %v732
      %v735 = vmul.f32 %v724, %v733
      %v736 = vmul.f32 %v725, %v733
      %v737 = vmul.f32 %v726, %v733
      %v738 = vmul.f32 %v727, %v733
      %v739 = vmul.f32 %v728, %v733
      %v741 = vlaneseq
      %v742 = vshrl.u32 %v741, 7
      %v743 = vsub.s32 0, %v742
      %v744 = vrot.slane %v669, %v743
      %v746 = vadd.f32 %v735, %v744
      %v747 = vadd.f32 %v736, %v744
      %v748 = vadd.f32 %v737, %v744
      %v749 = vadd.f32 %v738, %v744
      %v750 = vadd.f32 %v739, %v744
      %v751 = vpack.c.bf16 %v747, %v746
      %v752 = vpack.c.bf16 %v749, %v748
      %v753 = vpack.c.bf16 %v750, %v750
      %v754 = vld [vmem:[%s608] sm:$0xff]
      %v755 = vld [vmem:[%s608 + $0x8] sm:$0xf]
      %v756 = vld [vmem:[%s608 + $0xc] sm:$0xff]
      %v757 = vld [vmem:[%s608 + $0x14] sm:$0xf]
      %v758 = vld [vmem:[%s608 + $0x18] sm:$0xff]
      %v759 = vld [vmem:[%s608 + $0x20] sm:$0xf]
      %v760 = vld [vmem:[%s608 + $0x24] sm:$0xff]
      %v761 = vld [vmem:[%s608 + $0x2c] sm:$0xf]
      %v762 = vld [vmem:[%s608 + $0x30] sm:$0xff]
      %v763 = vld [vmem:[%s608 + $0x38] sm:$0xf]
      %v764 = vld [vmem:[%s608 + $0x3c] sm:$0xff]
      %v765 = vld [vmem:[%s608 + $0x44] sm:$0xf]
      %v766 = vld [vmem:[%s608 + $0x48] sm:$0xff]
      %v767 = vld [vmem:[%s608 + $0x50] sm:$0xf]
      %v768 = vld [vmem:[%s608 + $0x54] sm:$0xff]
      %v769 = vld [vmem:[%s608 + $0x5c] sm:$0xf]
      %v770 = vld [vmem:[%s608 + $0x60] sm:$0xff]
      %v771 = vld [vmem:[%s608 + $0x68] sm:$0xf]
      %v772 = vld [vmem:[%s608 + $0x6c] sm:$0xff]
      %v773 = vld [vmem:[%s608 + $0x74] sm:$0xf]
      %v774 = vld [vmem:[%s608 + $0x78] sm:$0xff]
      %v775 = vld [vmem:[%s608 + $0x80] sm:$0xf]
      %v776 = vld [vmem:[%s608 + $0x84] sm:$0xff]
      %v777 = vld [vmem:[%s608 + $0x8c] sm:$0xf]
      %v778 = vld [vmem:[%s608 + $0x90] sm:$0xff]
      %v779 = vld [vmem:[%s608 + $0x98] sm:$0xf]
      %v780 = vld [vmem:[%s608 + $0x9c] sm:$0xff]
      %v781 = vld [vmem:[%s608 + $0xa4] sm:$0xf]
      %v782 = vld [vmem:[%s608 + $0xa8] sm:$0xff]
      %v783 = vld [vmem:[%s608 + $0xb0] sm:$0xf]
      %v784 = vld [vmem:[%s608 + $0xb4] sm:$0xff]
      %v785 = vld [vmem:[%s608 + $0xbc] sm:$0xf]
      %v786 = vld [vmem:[%s612] sm:$0x7]
      %v788 = vlaneseq
      %v789 = vshrl.u32 %v788, 7
      %v790 = vsub.s32 0, %v789
      %v791 = vrot.slane %v786, %v790
      %v792 = vlaneseq
      %v793 = vshrl.u32 %v792, 7
      %v794 = vsub.s32 1, %v793
      %v795 = vrot.slane %v786, %v794
      %v796 = vlaneseq
      %v797 = vshrl.u32 %v796, 7
      %v798 = vsub.s32 2, %v797
      %v799 = vrot.slane %v786, %v798
      %v835 = vunpack.c.l.b16 %v754
      %v836 = vunpack.c.h.b16 %v754
      %v837 = vunpack.c.l.b16 %v755
      %v838 = vunpack.c.l.b16 %v756
      %v839 = vunpack.c.h.b16 %v756
      %v840 = vunpack.c.l.b16 %v757
      %v841 = vunpack.c.l.b16 %v758
      %v842 = vunpack.c.h.b16 %v758
      %v843 = vunpack.c.l.b16 %v759
      %v844 = vunpack.c.l.b16 %v760
      %v845 = vunpack.c.h.b16 %v760
      %v846 = vunpack.c.l.b16 %v761
      %v847 = vunpack.c.l.b16 %v762
      %v848 = vunpack.c.h.b16 %v762
      %v849 = vunpack.c.l.b16 %v763
      %v850 = vunpack.c.l.b16 %v764
      %v851 = vunpack.c.h.b16 %v764
      %v852 = vunpack.c.l.b16 %v765
      %v853 = vunpack.c.l.b16 %v766
      %v854 = vunpack.c.h.b16 %v766
      %v855 = vunpack.c.l.b16 %v767
      %v856 = vunpack.c.l.b16 %v768
      %v857 = vunpack.c.h.b16 %v768
      %v858 = vunpack.c.l.b16 %v769
      %v859 = vunpack.c.l.b16 %v770
      %v860 = vunpack.c.h.b16 %v770
      %v861 = vunpack.c.l.b16 %v771
      %v862 = vunpack.c.l.b16 %v772
      %v863 = vunpack.c.h.b16 %v772
      %v864 = vunpack.c.l.b16 %v773
      %v865 = vunpack.c.l.b16 %v774
      %v866 = vunpack.c.h.b16 %v774
      %v867 = vunpack.c.l.b16 %v775
      %v868 = vunpack.c.l.b16 %v776
      %v869 = vunpack.c.h.b16 %v776
      %v870 = vunpack.c.l.b16 %v777
      %v871 = vunpack.c.l.b16 %v778
      %v872 = vunpack.c.h.b16 %v778
      %v873 = vunpack.c.l.b16 %v779
      %v874 = vunpack.c.l.b16 %v780
      %v875 = vunpack.c.h.b16 %v780
      %v876 = vunpack.c.l.b16 %v781
      %v877 = vunpack.c.l.b16 %v782
      %v878 = vunpack.c.h.b16 %v782
      %v879 = vunpack.c.l.b16 %v783
      %v880 = vunpack.c.l.b16 %v784
      %v881 = vunpack.c.h.b16 %v784
      %v882 = vunpack.c.l.b16 %v785
      %v883 = vpack.c.b16 %v838, %v835
      %v884 = vpack.c.b16 %v839, %v836
      %v885 = vpack.c.b16 %v840, %v837
      %v886 = vpack.c.b16 %v844, %v841
      %v887 = vpack.c.b16 %v845, %v842
      %v888 = vpack.c.b16 %v846, %v843
      %v889 = vpack.c.b16 %v850, %v847
      %v890 = vpack.c.b16 %v851, %v848
      %v891 = vpack.c.b16 %v852, %v849
      %v892 = vpack.c.b16 %v856, %v853
      %v893 = vpack.c.b16 %v857, %v854
      %v894 = vpack.c.b16 %v858, %v855
      %v895 = vpack.c.b16 %v862, %v859
      %v896 = vpack.c.b16 %v863, %v860
      %v897 = vpack.c.b16 %v864, %v861
      %v898 = vpack.c.b16 %v868, %v865
      %v899 = vpack.c.b16 %v869, %v866
      %v900 = vpack.c.b16 %v870, %v867
      %v901 = vpack.c.b16 %v874, %v871
      %v902 = vpack.c.b16 %v875, %v872
      %v903 = vpack.c.b16 %v876, %v873
      %v904 = vpack.c.b16 %v880, %v877
      %v905 = vpack.c.b16 %v881, %v878
      %v906 = vpack.c.b16 %v882, %v879
      %931 = vmatprep.subr.bf16.mxu0 %v884
      %932 = vmatpush1.bf16.msra.mxu0 %v883
      %933 = vmatprep.subr.bf16.mxu0 %v887
      %934 = vmatpush1.bf16.msra.mxu0 %v886
      %935 = vmatprep.subr.bf16.mxu0 %v890
      %936 = vmatpush1.bf16.msra.mxu0 %v889
      %937 = vmatprep.subr.bf16.mxu0 %v893
      %938 = vmatpush1.bf16.msra.mxu0 %v892
      %939 = vmatprep.subr.bf16.mxu0 %v896
      %940 = vmatpush1.bf16.msra.mxu0 %v895
      %941 = vmatprep.subr.bf16.mxu0 %v899
      %942 = vmatpush1.bf16.msra.mxu0 %v898
      %943 = vmatprep.subr.bf16.mxu0 %v902
      %944 = vmatpush1.bf16.msra.mxu0 %v901
      %945 = vmatprep.subr.bf16.mxu0 %v905
      %946 = vmatpush1.bf16.msra.mxu0 %v904
      %947 = vmatprep.subr.bf16.mxu0 0
      %948 = vmatpush1.bf16.msra.mxu0 0
      %949 = vmatprep.subr.bf16.mxu0 0
      %950 = vmatpush1.bf16.msra.mxu0 0
      %951 = vmatprep.subr.bf16.mxu0 0
      %952 = vmatpush1.bf16.msra.mxu0 0
      %953 = vmatprep.subr.bf16.mxu0 0
      %954 = vmatpush1.bf16.msra.mxu0 0
      %955 = vmatprep.subr.bf16.mxu0 0
      %956 = vmatpush1.bf16.msra.mxu0 0
      %957 = vmatprep.subr.bf16.mxu0 0
      %958 = vmatpush1.bf16.msra.mxu0 0
      %959 = vmatprep.subr.bf16.mxu0 0
      %960 = vmatpush1.bf16.msra.mxu0 0
      %961 = vmatprep.subr.bf16.mxu0 0
      %962 = vmatpush1.bf16.msra.mxu0 0
      %963 = vmatprep.mubr.bf16.mxu0 0
      %964 = vmatmul.mubr.bf16.gmra.mrb[0].mxu0 %v751
      %v965 = vpop.f32.mrb[0].mxu0
      %v966 = vadd.f32 %v791, %v965
      %v967 = vpop.f32.mrb[0].mxu0
      %v968 = vadd.f32 %v795, %v967
      %v969 = vpop.f32.mrb[0].mxu0
      %v970 = vadd.f32 %v791, %v969
      %v971 = vpop.f32.mrb[0].mxu0
      %v972 = vadd.f32 %v795, %v971
      %973 = vmatprep.mubr.bf16.mxu0 0
      %974 = vmatmul.mubr.bf16.gmra.mrb[0].mxu0 %v752
      %v975 = vpop.f32.mrb[0].mxu0
      %v976 = vadd.f32 %v791, %v975
      %v977 = vpop.f32.mrb[0].mxu0
      %v978 = vadd.f32 %v795, %v977
      %v979 = vpop.f32.mrb[0].mxu0
      %v980 = vadd.f32 %v791, %v979
      %v981 = vpop.f32.mrb[0].mxu0
      %v982 = vadd.f32 %v795, %v981
      %983 = vmatprep.mubr.bf16.mxu0 0
      %984 = vmatmul.mubr.bf16.gmra.mrb[0].mxu0 %v753
      %v985 = vpop.f32.mrb[0].mxu0
      %v986 = vadd.f32 %v791, %v985
      %v987 = vpop.f32.mrb[0].mxu0
      %v988 = vadd.f32 %v795, %v987
      %v989 = vpop.f32.mrb[0].mxu0
      %v990 = vpop.f32.mrb[0].mxu0
      %991 = vdwg.mxu0
      %992 = vmatprep.subr.bf16.mxu0 0
      %993 = vmatpush1.bf16.msra.mxu0 %v885
      %994 = vmatprep.subr.bf16.mxu0 0
      %995 = vmatpush1.bf16.msra.mxu0 %v888
      %996 = vmatprep.subr.bf16.mxu0 0
      %997 = vmatpush1.bf16.msra.mxu0 %v891
      %998 = vmatprep.subr.bf16.mxu0 0
      %999 = vmatpush1.bf16.msra.mxu0 %v894
      %1000 = vmatprep.subr.bf16.mxu0 0
      %1001 = vmatpush1.bf16.msra.mxu0 %v897
      %1002 = vmatprep.subr.bf16.mxu0 0
      %1003 = vmatpush1.bf16.msra.mxu0 %v900
      %1004 = vmatprep.subr.bf16.mxu0 0
      %1005 = vmatpush1.bf16.msra.mxu0 %v903
      %1006 = vmatprep.subr.bf16.mxu0 0
      %1007 = vmatpush1.bf16.msra.mxu0 %v906
      %1008 = vmatprep.subr.bf16.mxu0 0
      %1009 = vmatpush1.bf16.msra.mxu0 0
      %1010 = vmatprep.subr.bf16.mxu0 0
      %1011 = vmatpush1.bf16.msra.mxu0 0
      %1012 = vmatprep.subr.bf16.mxu0 0
      %1013 = vmatpush1.bf16.msra.mxu0 0
      %1014 = vmatprep.subr.bf16.mxu0 0
      %1015 = vmatpush1.bf16.msra.mxu0 0
      %1016 = vmatprep.subr.bf16.mxu0 0
      %1017 = vmatpush1.bf16.msra.mxu0 0
      %1018 = vmatprep.subr.bf16.mxu0 0
      %1019 = vmatpush1.bf16.msra.mxu0 0
      %1020 = vmatprep.subr.bf16.mxu0 0
      %1021 = vmatpush1.bf16.msra.mxu0 0
      %1022 = vmatprep.subr.bf16.mxu0 0
      %1023 = vmatpush1.bf16.msra.mxu0 0
      %1024 = vmatprep.mubr.bf16.mxu0 0
      %1025 = vmatmul.mubr.bf16.gmra.mrb[0].mxu0 %v751
      %v1026 = vpop.f32.mrb[0].mxu0
      %v1027 = vadd.f32 %v799, %v1026
      %v1028 = vpop.f32.mrb[0].mxu0
      %v1029 = vpop.f32.mrb[0].mxu0
      %v1030 = vadd.f32 %v799, %v1029
      %v1031 = vpop.f32.mrb[0].mxu0
      %1032 = vmatprep.mubr.bf16.mxu0 0
      %1033 = vmatmul.mubr.bf16.gmra.mrb[0].mxu0 %v752
      %v1034 = vpop.f32.mrb[0].mxu0
      %v1035 = vadd.f32 %v799, %v1034
      %v1036 = vpop.f32.mrb[0].mxu0
      %v1037 = vpop.f32.mrb[0].mxu0
      %v1038 = vadd.f32 %v799, %v1037
      %v1039 = vpop.f32.mrb[0].mxu0
      %1040 = vmatprep.mubr.bf16.mxu0 0
      %1041 = vmatmul.mubr.bf16.gmra.mrb[0].mxu0 %v753
      %v1042 = vpop.f32.mrb[0].mxu0
      %v1043 = vadd.f32 %v799, %v1042
      %v1044 = vpop.f32.mrb[0].mxu0
      %v1045 = vpop.f32.mrb[0].mxu0
      %v1046 = vpop.f32.mrb[0].mxu0
      %1047 = vdwg.mxu0
      %v1048 = vpack.c.bf16 %v970, %v966
      %v1049 = vpack.c.bf16 %v976, %v976
      %v1050 = vpack.c.bf16 %v972, %v968
      %v1051 = vpack.c.bf16 %v978, %v978
      %v1052 = vpack.c.bf16 %v1030, %v1027
      %v1053 = vpack.c.bf16 %v1035, %v1035
      %vm1054 = vcmask 261120
      %v1056 = vsel %vm1054, %v1048, 0
      %v1059 = vsel %vm1054, %v1049, 0
      %v1062 = vsel %vm1054, %v1050, 0
      %v1065 = vsel %vm1054, %v1051, 0
      %1067 = vmatprep.subr.bf16.mxu0 0
      %1068 = vmatpush1.bf16.xpose.msra.mxu0 %v1062
      %1069 = vmatprep.subr.bf16.mxu0 0
      %1070 = vmatpush1.bf16.xpose.msra.mxu0 %v1065
      %1071 = vmatprep.subr.bf16.mxu0 0
      %1072 = vmatpush1.bf16.xpose.msra.mxu0 0
      %1073 = vmatprep.subr.bf16.mxu0 0
      %1074 = vmatpush1.bf16.xpose.msra.mxu0 0
      %1075 = vmatprep.subr.bf16.mxu0 0
      %1076 = vmatpush1.bf16.xpose.msra.mxu0 0
      %1077 = vmatprep.subr.bf16.mxu0 0
      %1078 = vmatpush1.bf16.xpose.msra.mxu0 0
      %1079 = vmatprep.subr.bf16.mxu0 0
      %1080 = vmatpush1.bf16.xpose.msra.mxu0 0
      %1081 = vmatprep.subr.bf16.mxu0 0
      %1082 = vmatpush1.bf16.xpose.msra.mxu0 0
      %1083 = vmatprep.subr.bf16.mxu0 0
      %1084 = vmatpush1.bf16.xpose.msra.mxu0 0
      %1085 = vmatprep.subr.bf16.mxu0 0
      %1086 = vmatpush1.bf16.xpose.msra.mxu0 0
      %1087 = vmatprep.subr.bf16.mxu0 0
      %1088 = vmatpush1.bf16.xpose.msra.mxu0 0
      %1089 = vmatprep.subr.bf16.mxu0 0
      %1090 = vmatpush1.bf16.xpose.msra.mxu0 0
      %1091 = vmatprep.subr.bf16.mxu0 0
      %1092 = vmatpush1.bf16.xpose.msra.mxu0 0
      %1093 = vmatprep.subr.bf16.mxu0 0
      %1094 = vmatpush1.bf16.xpose.msra.mxu0 0
      %1095 = vmatprep.subr.bf16.mxu0 0
      %1096 = vmatpush1.bf16.xpose.msra.mxu0 0
      %1097 = vmatprep.subr.bf16.mxu0 0
      %1098 = vmatpush1.bf16.xpose.msra.mxu0 0
      %1099 = vmatprep.mubr.bf16.mxu0 0
      %1100 = vmatmul.mubr.bf16.gmra.mrb[0].mxu0 %v1056
      %v1101 = vpop.f32.mrb[0].mxu0
      %v1102 = vadd.f32 0.0, %v1101
      %v1103 = vpop.f32.mrb[0].mxu0
      %v1104 = vpop.f32.mrb[0].mxu0
      %v1105 = vadd.f32 0.0, %v1104
      %v1106 = vpop.f32.mrb[0].mxu0
      %1107 = vmatprep.mubr.bf16.mxu0 0
      %1108 = vmatmul.mubr.bf16.gmra.mrb[0].mxu0 %v1059
      %v1109 = vpop.f32.mrb[0].mxu0
      %v1110 = vadd.f32 0.0, %v1109
      %v1111 = vpop.f32.mrb[0].mxu0
      %v1112 = vpop.f32.mrb[0].mxu0
      %v1113 = vpop.f32.mrb[0].mxu0
      %1114 = vdwg.mxu0
      %v1115 = vmul.f32 %v1102, 0.17677669
      %v1116 = vmul.f32 %v1105, 0.17677669
      %v1117 = vmul.f32 %v1110, 0.17677669
      %vm1118 = vcmask 138240
      %v1119 = vsel %vm1118, %v1115, -inf
      %1120 = vmax.xlane.f32.xlu0 %v1119
      %v1121 = vpop.xlane.xlu0 %1120
      %v1122 = vsel %vm1118, %v1116, -inf
      %1123 = vmax.xlane.f32.xlu0 %v1122
      %v1124 = vpop.xlane.xlu0 %1123
      %vm1125 = vcmask 131072
      %v1126 = vsel %vm1125, %v1117, -inf
      %1127 = vmax.xlane.f32.xlu0 %v1126
      %v1128 = vpop.xlane.xlu0 %1127
      %v1129 = vsub.f32 %v1115, %v1121
      %v1130 = vsub.f32 %v1116, %v1124
      %v1131 = vsub.f32 %v1117, %v1128
      %v1132 = vmul.f32 %v1129, 1.442695
      %v1133 = vpow.pop %v1132
      %v1134 = vmul.f32 %v1130, 1.442695
      %v1135 = vpow.pop %v1134
      %v1136 = vmul.f32 %v1131, 1.442695
      %v1137 = vpow.pop %v1136
      %v1138 = vsel %vm1118, %v1133, 0.0
      %1139 = vadd.xlane.f32.xlu0 %v1138
      %v1140 = vpop.xlane.xlu0 %1139
      %v1141 = vsel %vm1118, %v1135, 0.0
      %1142 = vadd.xlane.f32.xlu0 %v1141
      %v1143 = vpop.xlane.xlu0 %1142
      %v1144 = vsel %vm1125, %v1137, 0.0
      %1145 = vadd.xlane.f32.xlu0 %v1144
      %v1146 = vpop.xlane.xlu0 %1145
      %v1147 = vrcp.pop %v1140
      %v1148 = vrcp.pop %v1143
      %v1149 = vrcp.pop %v1146
      %v1150 = vmul.f32 %v1133, %v1147
      %v1151 = vmul.f32 %v1135, %v1148
      %v1152 = vmul.f32 %v1137, %v1149
      %v1153 = vpack.c.bf16 %v1151, %v1150
      %v1154 = vpack.c.bf16 %v1152, %v1152
      %v1156 = vsel %vm1118, %v1153, 0
      %v1159 = vsel %vm1118, %v1154, 0
      %vm1161 = vcmask 1040384
      %v1162 = vsel 0, 4294967295, 65535
      %v1163 = vsel %vm1161, %v1162, 0
      %v1165 = vand.u32 %v1053, %v1163
      %1167 = vmatprep.subr.bf16.mxu0 0
      %1168 = vmatpush1.bf16.msra.mxu0 %v1052
      %1169 = vmatprep.subr.bf16.mxu0 0
      %1170 = vmatpush1.bf16.msra.mxu0 %v1165
      %1171 = vmatprep.subr.bf16.mxu0 0
      %1172 = vmatpush1.bf16.msra.mxu0 0
      %1173 = vmatprep.subr.bf16.mxu0 0
      %1174 = vmatpush1.bf16.msra.mxu0 0
      %1175 = vmatprep.subr.bf16.mxu0 0
      %1176 = vmatpush1.bf16.msra.mxu0 0
      %1177 = vmatprep.subr.bf16.mxu0 0
      %1178 = vmatpush1.bf16.msra.mxu0 0
      %1179 = vmatprep.subr.bf16.mxu0 0
      %1180 = vmatpush1.bf16.msra.mxu0 0
      %1181 = vmatprep.subr.bf16.mxu0 0
      %1182 = vmatpush1.bf16.msra.mxu0 0
      %1183 = vmatprep.subr.bf16.mxu0 0
      %1184 = vmatpush1.bf16.msra.mxu0 0
      %1185 = vmatprep.subr.bf16.mxu0 0
      %1186 = vmatpush1.bf16.msra.mxu0 0
      %1187 = vmatprep.subr.bf16.mxu0 0
      %1188 = vmatpush1.bf16.msra.mxu0 0
      %1189 = vmatprep.subr.bf16.mxu0 0
      %1190 = vmatpush1.bf16.msra.mxu0 0
      %1191 = vmatprep.subr.bf16.mxu0 0
      %1192 = vmatpush1.bf16.msra.mxu0 0
      %1193 = vmatprep.subr.bf16.mxu0 0
      %1194 = vmatpush1.bf16.msra.mxu0 0
      %1195 = vmatprep.subr.bf16.mxu0 0
      %1196 = vmatpush1.bf16.msra.mxu0 0
      %1197 = vmatprep.subr.bf16.mxu0 0
      %1198 = vmatpush1.bf16.msra.mxu0 0
      %1199 = vmatprep.mubr.bf16.mxu0 0
      %1200 = vmatmul.mubr.bf16.gmra.mrb[0].mxu0 %v1156
      %v1201 = vpop.f32.mrb[0].mxu0
      %v1202 = vadd.f32 0.0, %v1201
      %v1203 = vpop.f32.mrb[0].mxu0
      %v1204 = vpop.f32.mrb[0].mxu0
      %v1205 = vadd.f32 0.0, %v1204
      %v1206 = vpop.f32.mrb[0].mxu0
      %1207 = vmatprep.mubr.bf16.mxu0 0
      %1208 = vmatmul.mubr.bf16.gmra.mrb[0].mxu0 %v1159
      %v1209 = vpop.f32.mrb[0].mxu0
      %v1210 = vadd.f32 0.0, %v1209
      %v1211 = vpop.f32.mrb[0].mxu0
      %v1212 = vpop.f32.mrb[0].mxu0
      %v1213 = vpop.f32.mrb[0].mxu0
      %1214 = vdwg.mxu0
      %1217 = vrot.lane.b32.xlu0 %v1048, 96
      %v1218 = vpop.permute.xlu0 %1217
      %1219 = vrot.lane.b32.xlu0 %v1049, 96
      %v1220 = vpop.permute.xlu0 %1219
      %1223 = vrot.lane.b32.xlu0 %v1050, 96
      %v1224 = vpop.permute.xlu0 %1223
      %1225 = vrot.lane.b32.xlu0 %v1051, 96
      %v1226 = vpop.permute.xlu0 %1225
      %v1228 = vsel %vm1054, %v1218, 0
      %v1231 = vsel %vm1054, %v1220, 0
      %v1234 = vsel %vm1054, %v1224, 0
      %v1237 = vsel %vm1054, %v1226, 0
      %1239 = vmatprep.subr.bf16.mxu0 0
      %1240 = vmatpush1.bf16.xpose.msra.mxu0 %v1234
      %1241 = vmatprep.subr.bf16.mxu0 0
      %1242 = vmatpush1.bf16.xpose.msra.mxu0 %v1237
      %1243 = vmatprep.subr.bf16.mxu0 0
      %1244 = vmatpush1.bf16.xpose.msra.mxu0 0
      %1245 = vmatprep.subr.bf16.mxu0 0
      %1246 = vmatpush1.bf16.xpose.msra.mxu0 0
      %1247 = vmatprep.subr.bf16.mxu0 0
      %1248 = vmatpush1.bf16.xpose.msra.mxu0 0
      %1249 = vmatprep.subr.bf16.mxu0 0
      %1250 = vmatpush1.bf16.xpose.msra.mxu0 0
      %1251 = vmatprep.subr.bf16.mxu0 0
      %1252 = vmatpush1.bf16.xpose.msra.mxu0 0
      %1253 = vmatprep.subr.bf16.mxu0 0
      %1254 = vmatpush1.bf16.xpose.msra.mxu0 0
      %1255 = vmatprep.subr.bf16.mxu0 0
      %1256 = vmatpush1.bf16.xpose.msra.mxu0 0
      %1257 = vmatprep.subr.bf16.mxu0 0
      %1258 = vmatpush1.bf16.xpose.msra.mxu0 0
      %1259 = vmatprep.subr.bf16.mxu0 0
      %1260 = vmatpush1.bf16.xpose.msra.mxu0 0
      %1261 = vmatprep.subr.bf16.mxu0 0
      %1262 = vmatpush1.bf16.xpose.msra.mxu0 0
      %1263 = vmatprep.subr.bf16.mxu0 0
      %1264 = vmatpush1.bf16.xpose.msra.mxu0 0
      %1265 = vmatprep.subr.bf16.mxu0 0
      %1266 = vmatpush1.bf16.xpose.msra.mxu0 0
      %1267 = vmatprep.subr.bf16.mxu0 0
      %1268 = vmatpush1.bf16.xpose.msra.mxu0 0
      %1269 = vmatprep.subr.bf16.mxu0 0
      %1270 = vmatpush1.bf16.xpose.msra.mxu0 0
      %1271 = vmatprep.mubr.bf16.mxu0 0
      %1272 = vmatmul.mubr.bf16.gmra.mrb[0].mxu0 %v1228
      %v1273 = vpop.f32.mrb[0].mxu0
      %v1274 = vadd.f32 0.0, %v1273
      %v1275 = vpop.f32.mrb[0].mxu0
      %v1276 = vpop.f32.mrb[0].mxu0
      %v1277 = vadd.f32 0.0, %v1276
      %v1278 = vpop.f32.mrb[0].mxu0
      %1279 = vmatprep.mubr.bf16.mxu0 0
      %1280 = vmatmul.mubr.bf16.gmra.mrb[0].mxu0 %v1231
      %v1281 = vpop.f32.mrb[0].mxu0
      %v1282 = vadd.f32 0.0, %v1281
      %v1283 = vpop.f32.mrb[0].mxu0
      %v1284 = vpop.f32.mrb[0].mxu0
      %v1285 = vpop.f32.mrb[0].mxu0
      %1286 = vdwg.mxu0
      %v1287 = vmul.f32 %v1274, 0.17677669
      %v1288 = vmul.f32 %v1277, 0.17677669
      %v1289 = vmul.f32 %v1282, 0.17677669
      %v1290 = vsel %vm1118, %v1287, -inf
      %1291 = vmax.xlane.f32.xlu0 %v1290
      %v1292 = vpop.xlane.xlu0 %1291
      %v1293 = vsel %vm1118, %v1288, -inf
      %1294 = vmax.xlane.f32.xlu0 %v1293
      %v1295 = vpop.xlane.xlu0 %1294
      %v1296 = vsel %vm1125, %v1289, -inf
      %1297 = vmax.xlane.f32.xlu0 %v1296
      %v1298 = vpop.xlane.xlu0 %1297
      %v1299 = vsub.f32 %v1287, %v1292
      %v1300 = vsub.f32 %v1288, %v1295
      %v1301 = vsub.f32 %v1289, %v1298
      %v1302 = vmul.f32 %v1299, 1.442695
      %v1303 = vpow.pop %v1302
      %v1304 = vmul.f32 %v1300, 1.442695
      %v1305 = vpow.pop %v1304
      %v1306 = vmul.f32 %v1301, 1.442695
      %v1307 = vpow.pop %v1306
      %v1308 = vsel %vm1118, %v1303, 0.0
      %1309 = vadd.xlane.f32.xlu0 %v1308
      %v1310 = vpop.xlane.xlu0 %1309
      %v1311 = vsel %vm1118, %v1305, 0.0
      %1312 = vadd.xlane.f32.xlu0 %v1311
      %v1313 = vpop.xlane.xlu0 %1312
      %v1314 = vsel %vm1125, %v1307, 0.0
      %1315 = vadd.xlane.f32.xlu0 %v1314
      %v1316 = vpop.xlane.xlu0 %1315
      %v1317 = vrcp.pop %v1310
      %v1318 = vrcp.pop %v1313
      %v1319 = vrcp.pop %v1316
      %v1320 = vmul.f32 %v1303, %v1317
      %v1321 = vmul.f32 %v1305, %v1318
      %v1322 = vmul.f32 %v1307, %v1319
      %v1323 = vpack.c.bf16 %v1321, %v1320
      %v1324 = vpack.c.bf16 %v1322, %v1322
      %1327 = vrot.lane.b32.xlu0 %v1052, 96
      %v1328 = vpop.permute.xlu0 %1327
      %1329 = vrot.lane.b32.xlu0 %v1053, 96
      %v1330 = vpop.permute.xlu0 %1329
      %v1333 = vsel %vm1118, %v1323, 0
      %v1336 = vsel %vm1118, %v1324, 0
      %v1339 = vand.u32 %v1330, %v1163
      %1341 = vmatprep.subr.bf16.mxu0 0
      %1342 = vmatpush1.bf16.msra.mxu0 %v1328
      %1343 = vmatprep.subr.bf16.mxu0 0
      %1344 = vmatpush1.bf16.msra.mxu0 %v1339
      %1345 = vmatprep.subr.bf16.mxu0 0
      %1346 = vmatpush1.bf16.msra.mxu0 0
      %1347 = vmatprep.subr.bf16.mxu0 0
      %1348 = vmatpush1.bf16.msra.mxu0 0
      %1349 = vmatprep.subr.bf16.mxu0 0
      %1350 = vmatpush1.bf16.msra.mxu0 0
      %1351 = vmatprep.subr.bf16.mxu0 0
      %1352 = vmatpush1.bf16.msra.mxu0 0
      %1353 = vmatprep.subr.bf16.mxu0 0
      %1354 = vmatpush1.bf16.msra.mxu0 0
      %1355 = vmatprep.subr.bf16.mxu0 0
      %1356 = vmatpush1.bf16.msra.mxu0 0
      %1357 = vmatprep.subr.bf16.mxu0 0
      %1358 = vmatpush1.bf16.msra.mxu0 0
      %1359 = vmatprep.subr.bf16.mxu0 0
      %1360 = vmatpush1.bf16.msra.mxu0 0
      %1361 = vmatprep.subr.bf16.mxu0 0
      %1362 = vmatpush1.bf16.msra.mxu0 0
      %1363 = vmatprep.subr.bf16.mxu0 0
      %1364 = vmatpush1.bf16.msra.mxu0 0
      %1365 = vmatprep.subr.bf16.mxu0 0
      %1366 = vmatpush1.bf16.msra.mxu0 0
      %1367 = vmatprep.subr.bf16.mxu0 0
      %1368 = vmatpush1.bf16.msra.mxu0 0
      %1369 = vmatprep.subr.bf16.mxu0 0
      %1370 = vmatpush1.bf16.msra.mxu0 0
      %1371 = vmatprep.subr.bf16.mxu0 0
      %1372 = vmatpush1.bf16.msra.mxu0 0
      %1373 = vmatprep.mubr.bf16.mxu0 0
      %1374 = vmatmul.mubr.bf16.gmra.mrb[0].mxu0 %v1333
      %v1375 = vpop.f32.mrb[0].mxu0
      %v1376 = vadd.f32 0.0, %v1375
      %v1377 = vpop.f32.mrb[0].mxu0
      %v1378 = vpop.f32.mrb[0].mxu0
      %v1379 = vadd.f32 0.0, %v1378
      %v1380 = vpop.f32.mrb[0].mxu0
      %1381 = vmatprep.mubr.bf16.mxu0 0
      %1382 = vmatmul.mubr.bf16.gmra.mrb[0].mxu0 %v1336
      %v1383 = vpop.f32.mrb[0].mxu0
      %v1384 = vadd.f32 0.0, %v1383
      %v1385 = vpop.f32.mrb[0].mxu0
      %v1386 = vpop.f32.mrb[0].mxu0
      %v1387 = vpop.f32.mrb[0].mxu0
      %1388 = vdwg.mxu0
      %1389 = vrot.lane.b32.xlu0 %v1048, 64
      %v1390 = vpop.permute.xlu0 %1389
      %1391 = vrot.lane.b32.xlu0 %v1049, 64
      %v1392 = vpop.permute.xlu0 %1391
      %1393 = vrot.lane.b32.xlu0 %v1050, 64
      %v1394 = vpop.permute.xlu0 %1393
      %1395 = vrot.lane.b32.xlu0 %v1051, 64
      %v1396 = vpop.permute.xlu0 %1395
      %v1398 = vsel %vm1054, %v1390, 0
      %v1401 = vsel %vm1054, %v1392, 0
      %v1404 = vsel %vm1054, %v1394, 0
      %v1407 = vsel %vm1054, %v1396, 0
      %1409 = vmatprep.subr.bf16.mxu0 0
      %1410 = vmatpush1.bf16.xpose.msra.mxu0 %v1404
      %1411 = vmatprep.subr.bf16.mxu0 0
      %1412 = vmatpush1.bf16.xpose.msra.mxu0 %v1407
      %1413 = vmatprep.subr.bf16.mxu0 0
      %1414 = vmatpush1.bf16.xpose.msra.mxu0 0
      %1415 = vmatprep.subr.bf16.mxu0 0
      %1416 = vmatpush1.bf16.xpose.msra.mxu0 0
      %1417 = vmatprep.subr.bf16.mxu0 0
      %1418 = vmatpush1.bf16.xpose.msra.mxu0 0
      %1419 = vmatprep.subr.bf16.mxu0 0
      %1420 = vmatpush1.bf16.xpose.msra.mxu0 0
      %1421 = vmatprep.subr.bf16.mxu0 0
      %1422 = vmatpush1.bf16.xpose.msra.mxu0 0
      %1423 = vmatprep.subr.bf16.mxu0 0
      %1424 = vmatpush1.bf16.xpose.msra.mxu0 0
      %1425 = vmatprep.subr.bf16.mxu0 0
      %1426 = vmatpush1.bf16.xpose.msra.mxu0 0
      %1427 = vmatprep.subr.bf16.mxu0 0
      %1428 = vmatpush1.bf16.xpose.msra.mxu0 0
      %1429 = vmatprep.subr.bf16.mxu0 0
      %1430 = vmatpush1.bf16.xpose.msra.mxu0 0
      %1431 = vmatprep.subr.bf16.mxu0 0
      %1432 = vmatpush1.bf16.xpose.msra.mxu0 0
      %1433 = vmatprep.subr.bf16.mxu0 0
      %1434 = vmatpush1.bf16.xpose.msra.mxu0 0
      %1435 = vmatprep.subr.bf16.mxu0 0
      %1436 = vmatpush1.bf16.xpose.msra.mxu0 0
      %1437 = vmatprep.subr.bf16.mxu0 0
      %1438 = vmatpush1.bf16.xpose.msra.mxu0 0
      %1439 = vmatprep.subr.bf16.mxu0 0
      %1440 = vmatpush1.bf16.xpose.msra.mxu0 0
      %1441 = vmatprep.mubr.bf16.mxu0 0
      %1442 = vmatmul.mubr.bf16.gmra.mrb[0].mxu0 %v1398
      %v1443 = vpop.f32.mrb[0].mxu0
      %v1444 = vadd.f32 0.0, %v1443
      %v1445 = vpop.f32.mrb[0].mxu0
      %v1446 = vpop.f32.mrb[0].mxu0
      %v1447 = vadd.f32 0.0, %v1446
      %v1448 = vpop.f32.mrb[0].mxu0
      %1449 = vmatprep.mubr.bf16.mxu0 0
      %1450 = vmatmul.mubr.bf16.gmra.mrb[0].mxu0 %v1401
      %v1451 = vpop.f32.mrb[0].mxu0
      %v1452 = vadd.f32 0.0, %v1451
      %v1453 = vpop.f32.mrb[0].mxu0
      %v1454 = vpop.f32.mrb[0].mxu0
      %v1455 = vpop.f32.mrb[0].mxu0
      %1456 = vdwg.mxu0
      %v1457 = vmul.f32 %v1444, 0.17677669
      %v1458 = vmul.f32 %v1447, 0.17677669
      %v1459 = vmul.f32 %v1452, 0.17677669
      %v1460 = vsel %vm1118, %v1457, -inf
      %1461 = vmax.xlane.f32.xlu0 %v1460
      %v1462 = vpop.xlane.xlu0 %1461
      %v1463 = vsel %vm1118, %v1458, -inf
      %1464 = vmax.xlane.f32.xlu0 %v1463
      %v1465 = vpop.xlane.xlu0 %1464
      %v1466 = vsel %vm1125, %v1459, -inf
      %1467 = vmax.xlane.f32.xlu0 %v1466
      %v1468 = vpop.xlane.xlu0 %1467
      %v1469 = vsub.f32 %v1457, %v1462
      %v1470 = vsub.f32 %v1458, %v1465
      %v1471 = vsub.f32 %v1459, %v1468
      %v1472 = vmul.f32 %v1469, 1.442695
      %v1473 = vpow.pop %v1472
      %v1474 = vmul.f32 %v1470, 1.442695
      %v1475 = vpow.pop %v1474
      %v1476 = vmul.f32 %v1471, 1.442695
      %v1477 = vpow.pop %v1476
      %v1478 = vsel %vm1118, %v1473, 0.0
      %1479 = vadd.xlane.f32.xlu0 %v1478
      %v1480 = vpop.xlane.xlu0 %1479
      %v1481 = vsel %vm1118, %v1475, 0.0
      %1482 = vadd.xlane.f32.xlu0 %v1481
      %v1483 = vpop.xlane.xlu0 %1482
      %v1484 = vsel %vm1125, %v1477, 0.0
      %1485 = vadd.xlane.f32.xlu0 %v1484
      %v1486 = vpop.xlane.xlu0 %1485
      %v1487 = vrcp.pop %v1480
      %v1488 = vrcp.pop %v1483
      %v1489 = vrcp.pop %v1486
      %v1490 = vmul.f32 %v1473, %v1487
      %v1491 = vmul.f32 %v1475, %v1488
      %v1492 = vmul.f32 %v1477, %v1489
      %v1493 = vpack.c.bf16 %v1491, %v1490
      %v1494 = vpack.c.bf16 %v1492, %v1492
      %1495 = vrot.lane.b32.xlu0 %v1052, 64
      %v1496 = vpop.permute.xlu0 %1495
      %1497 = vrot.lane.b32.xlu0 %v1053, 64
      %v1498 = vpop.permute.xlu0 %1497
      %v1501 = vsel %vm1118, %v1493, 0
      %v1504 = vsel %vm1118, %v1494, 0
      %v1507 = vand.u32 %v1498, %v1163
      %1509 = vmatprep.subr.bf16.mxu0 0
      %1510 = vmatpush1.bf16.msra.mxu0 %v1496
      %1511 = vmatprep.subr.bf16.mxu0 0
      %1512 = vmatpush1.bf16.msra.mxu0 %v1507
      %1513 = vmatprep.subr.bf16.mxu0 0
      %1514 = vmatpush1.bf16.msra.mxu0 0
      %1515 = vmatprep.subr.bf16.mxu0 0
      %1516 = vmatpush1.bf16.msra.mxu0 0
      %1517 = vmatprep.subr.bf16.mxu0 0
      %1518 = vmatpush1.bf16.msra.mxu0 0
      %1519 = vmatprep.subr.bf16.mxu0 0
      %1520 = vmatpush1.bf16.msra.mxu0 0
      %1521 = vmatprep.subr.bf16.mxu0 0
      %1522 = vmatpush1.bf16.msra.mxu0 0
      %1523 = vmatprep.subr.bf16.mxu0 0
      %1524 = vmatpush1.bf16.msra.mxu0 0
      %1525 = vmatprep.subr.bf16.mxu0 0
      %1526 = vmatpush1.bf16.msra.mxu0 0
      %1527 = vmatprep.subr.bf16.mxu0 0
      %1528 = vmatpush1.bf16.msra.mxu0 0
      %1529 = vmatprep.subr.bf16.mxu0 0
      %1530 = vmatpush1.bf16.msra.mxu0 0
      %1531 = vmatprep.subr.bf16.mxu0 0
      %1532 = vmatpush1.bf16.msra.mxu0 0
      %1533 = vmatprep.subr.bf16.mxu0 0
      %1534 = vmatpush1.bf16.msra.mxu0 0
      %1535 = vmatprep.subr.bf16.mxu0 0
      %1536 = vmatpush1.bf16.msra.mxu0 0
      %1537 = vmatprep.subr.bf16.mxu0 0
      %1538 = vmatpush1.bf16.msra.mxu0 0
      %1539 = vmatprep.subr.bf16.mxu0 0
      %1540 = vmatpush1.bf16.msra.mxu0 0
      %1541 = vmatprep.mubr.bf16.mxu0 0
      %1542 = vmatmul.mubr.bf16.gmra.mrb[0].mxu0 %v1501
      %v1543 = vpop.f32.mrb[0].mxu0
      %v1544 = vadd.f32 0.0, %v1543
      %v1545 = vpop.f32.mrb[0].mxu0
      %v1546 = vpop.f32.mrb[0].mxu0
      %v1547 = vadd.f32 0.0, %v1546
      %v1548 = vpop.f32.mrb[0].mxu0
      %1549 = vmatprep.mubr.bf16.mxu0 0
      %1550 = vmatmul.mubr.bf16.gmra.mrb[0].mxu0 %v1504
      %v1551 = vpop.f32.mrb[0].mxu0
      %v1552 = vadd.f32 0.0, %v1551
      %v1553 = vpop.f32.mrb[0].mxu0
      %v1554 = vpop.f32.mrb[0].mxu0
      %v1555 = vpop.f32.mrb[0].mxu0
      %1556 = vdwg.mxu0
      %1557 = vrot.lane.b32.xlu0 %v1048, 32
      %v1558 = vpop.permute.xlu0 %1557
      %1559 = vrot.lane.b32.xlu0 %v1049, 32
      %v1560 = vpop.permute.xlu0 %1559
      %1561 = vrot.lane.b32.xlu0 %v1050, 32
      %v1562 = vpop.permute.xlu0 %1561
      %1563 = vrot.lane.b32.xlu0 %v1051, 32
      %v1564 = vpop.permute.xlu0 %1563
      %v1566 = vsel %vm1054, %v1558, 0
      %v1569 = vsel %vm1054, %v1560, 0
      %v1572 = vsel %vm1054, %v1562, 0
      %v1575 = vsel %vm1054, %v1564, 0
      %1577 = vmatprep.subr.bf16.mxu0 0
      %1578 = vmatpush1.bf16.xpose.msra.mxu0 %v1572
      %1579 = vmatprep.subr.bf16.mxu0 0
      %1580 = vmatpush1.bf16.xpose.msra.mxu0 %v1575
      %1581 = vmatprep.subr.bf16.mxu0 0
      %1582 = vmatpush1.bf16.xpose.msra.mxu0 0
      %1583 = vmatprep.subr.bf16.mxu0 0
      %1584 = vmatpush1.bf16.xpose.msra.mxu0 0
      %1585 = vmatprep.subr.bf16.mxu0 0
      %1586 = vmatpush1.bf16.xpose.msra.mxu0 0
      %1587 = vmatprep.subr.bf16.mxu0 0
      %1588 = vmatpush1.bf16.xpose.msra.mxu0 0
      %1589 = vmatprep.subr.bf16.mxu0 0
      %1590 = vmatpush1.bf16.xpose.msra.mxu0 0
      %1591 = vmatprep.subr.bf16.mxu0 0
      %1592 = vmatpush1.bf16.xpose.msra.mxu0 0
      %1593 = vmatprep.subr.bf16.mxu0 0
      %1594 = vmatpush1.bf16.xpose.msra.mxu0 0
      %1595 = vmatprep.subr.bf16.mxu0 0
      %1596 = vmatpush1.bf16.xpose.msra.mxu0 0
      %1597 = vmatprep.subr.bf16.mxu0 0
      %1598 = vmatpush1.bf16.xpose.msra.mxu0 0
      %1599 = vmatprep.subr.bf16.mxu0 0
      %1600 = vmatpush1.bf16.xpose.msra.mxu0 0
      %1601 = vmatprep.subr.bf16.mxu0 0
      %1602 = vmatpush1.bf16.xpose.msra.mxu0 0
      %1603 = vmatprep.subr.bf16.mxu0 0
      %1604 = vmatpush1.bf16.xpose.msra.mxu0 0
      %1605 = vmatprep.subr.bf16.mxu0 0
      %1606 = vmatpush1.bf16.xpose.msra.mxu0 0
      %1607 = vmatprep.subr.bf16.mxu0 0
      %1608 = vmatpush1.bf16.xpose.msra.mxu0 0
      %1609 = vmatprep.mubr.bf16.mxu0 0
      %1610 = vmatmul.mubr.bf16.gmra.mrb[0].mxu0 %v1566
      %v1611 = vpop.f32.mrb[0].mxu0
      %v1612 = vadd.f32 0.0, %v1611
      %v1613 = vpop.f32.mrb[0].mxu0
      %v1614 = vpop.f32.mrb[0].mxu0
      %v1615 = vadd.f32 0.0, %v1614
      %v1616 = vpop.f32.mrb[0].mxu0
      %1617 = vmatprep.mubr.bf16.mxu0 0
      %1618 = vmatmul.mubr.bf16.gmra.mrb[0].mxu0 %v1569
      %v1619 = vpop.f32.mrb[0].mxu0
      %v1620 = vadd.f32 0.0, %v1619
      %v1621 = vpop.f32.mrb[0].mxu0
      %v1622 = vpop.f32.mrb[0].mxu0
      %v1623 = vpop.f32.mrb[0].mxu0
      %1624 = vdwg.mxu0
      %v1625 = vmul.f32 %v1612, 0.17677669
      %v1626 = vmul.f32 %v1615, 0.17677669
      %v1627 = vmul.f32 %v1620, 0.17677669
      %v1628 = vsel %vm1118, %v1625, -inf
      %1629 = vmax.xlane.f32.xlu0 %v1628
      %v1630 = vpop.xlane.xlu0 %1629
      %v1631 = vsel %vm1118, %v1626, -inf
      %1632 = vmax.xlane.f32.xlu0 %v1631
      %v1633 = vpop.xlane.xlu0 %1632
      %v1634 = vsel %vm1125, %v1627, -inf
      %1635 = vmax.xlane.f32.xlu0 %v1634
      %v1636 = vpop.xlane.xlu0 %1635
      %v1637 = vsub.f32 %v1625, %v1630
      %v1638 = vsub.f32 %v1626, %v1633
      %v1639 = vsub.f32 %v1627, %v1636
      %v1640 = vmul.f32 %v1637, 1.442695
      %v1641 = vpow.pop %v1640
      %v1642 = vmul.f32 %v1638, 1.442695
      %v1643 = vpow.pop %v1642
      %v1644 = vmul.f32 %v1639, 1.442695
      %v1645 = vpow.pop %v1644
      %v1646 = vsel %vm1118, %v1641, 0.0
      %1647 = vadd.xlane.f32.xlu0 %v1646
      %v1648 = vpop.xlane.xlu0 %1647
      %v1649 = vsel %vm1118, %v1643, 0.0
      %1650 = vadd.xlane.f32.xlu0 %v1649
      %v1651 = vpop.xlane.xlu0 %1650
      %v1652 = vsel %vm1125, %v1645, 0.0
      %1653 = vadd.xlane.f32.xlu0 %v1652
      %v1654 = vpop.xlane.xlu0 %1653
      %v1655 = vrcp.pop %v1648
      %v1656 = vrcp.pop %v1651
      %v1657 = vrcp.pop %v1654
      %v1658 = vmul.f32 %v1641, %v1655
      %v1659 = vmul.f32 %v1643, %v1656
      %v1660 = vmul.f32 %v1645, %v1657
      %v1661 = vpack.c.bf16 %v1659, %v1658
      %v1662 = vpack.c.bf16 %v1660, %v1660
      %1663 = vrot.lane.b32.xlu0 %v1052, 32
      %v1664 = vpop.permute.xlu0 %1663
      %1665 = vrot.lane.b32.xlu0 %v1053, 32
      %v1666 = vpop.permute.xlu0 %1665
      %v1669 = vsel %vm1118, %v1661, 0
      %v1672 = vsel %vm1118, %v1662, 0
      %v1675 = vand.u32 %v1666, %v1163
      %1677 = vmatprep.subr.bf16.mxu0 0
      %1678 = vmatpush1.bf16.msra.mxu0 %v1664
      %1679 = vmatprep.subr.bf16.mxu0 0
      %1680 = vmatpush1.bf16.msra.mxu0 %v1675
      %1681 = vmatprep.subr.bf16.mxu0 0
      %1682 = vmatpush1.bf16.msra.mxu0 0
      %1683 = vmatprep.subr.bf16.mxu0 0
      %1684 = vmatpush1.bf16.msra.mxu0 0
      %1685 = vmatprep.subr.bf16.mxu0 0
      %1686 = vmatpush1.bf16.msra.mxu0 0
      %1687 = vmatprep.subr.bf16.mxu0 0
      %1688 = vmatpush1.bf16.msra.mxu0 0
      %1689 = vmatprep.subr.bf16.mxu0 0
      %1690 = vmatpush1.bf16.msra.mxu0 0
      %1691 = vmatprep.subr.bf16.mxu0 0
      %1692 = vmatpush1.bf16.msra.mxu0 0
      %1693 = vmatprep.subr.bf16.mxu0 0
      %1694 = vmatpush1.bf16.msra.mxu0 0
      %1695 = vmatprep.subr.bf16.mxu0 0
      %1696 = vmatpush1.bf16.msra.mxu0 0
      %1697 = vmatprep.subr.bf16.mxu0 0
      %1698 = vmatpush1.bf16.msra.mxu0 0
      %1699 = vmatprep.subr.bf16.mxu0 0
      %1700 = vmatpush1.bf16.msra.mxu0 0
      %1701 = vmatprep.subr.bf16.mxu0 0
      %1702 = vmatpush1.bf16.msra.mxu0 0
      %1703 = vmatprep.subr.bf16.mxu0 0
      %1704 = vmatpush1.bf16.msra.mxu0 0
      %1705 = vmatprep.subr.bf16.mxu0 0
      %1706 = vmatpush1.bf16.msra.mxu0 0
      %1707 = vmatprep.subr.bf16.mxu0 0
      %1708 = vmatpush1.bf16.msra.mxu0 0
      %1709 = vmatprep.mubr.bf16.mxu0 0
      %1710 = vmatmul.mubr.bf16.gmra.mrb[0].mxu0 %v1669
      %v1711 = vpop.f32.mrb[0].mxu0
      %v1712 = vadd.f32 0.0, %v1711
      %v1713 = vpop.f32.mrb[0].mxu0
      %v1714 = vpop.f32.mrb[0].mxu0
      %v1715 = vadd.f32 0.0, %v1714
      %v1716 = vpop.f32.mrb[0].mxu0
      %1717 = vmatprep.mubr.bf16.mxu0 0
      %1718 = vmatmul.mubr.bf16.gmra.mrb[0].mxu0 %v1672
      %v1719 = vpop.f32.mrb[0].mxu0
      %v1720 = vadd.f32 0.0, %v1719
      %v1721 = vpop.f32.mrb[0].mxu0
      %v1722 = vpop.f32.mrb[0].mxu0
      %v1723 = vpop.f32.mrb[0].mxu0
      %1724 = vdwg.mxu0
      %1728 = vrot.lane.b32.xlu0 %v1376, 32
      %v1729 = vpop.permute.xlu0 %1728
      %1730 = vrot.lane.b32.xlu0 %v1379, 32
      %v1731 = vpop.permute.xlu0 %1730
      %1732 = vrot.lane.b32.xlu0 %v1384, 32
      %v1733 = vpop.permute.xlu0 %1732
      %1740 = vrot.lane.b32.xlu0 %v1544, 64
      %v1741 = vpop.permute.xlu0 %1740
      %1742 = vrot.lane.b32.xlu0 %v1547, 64
      %v1743 = vpop.permute.xlu0 %1742
      %1744 = vrot.lane.b32.xlu0 %v1552, 64
      %v1745 = vpop.permute.xlu0 %1744
      %1752 = vrot.lane.b32.xlu0 %v1712, 96
      %v1753 = vpop.permute.xlu0 %1752
      %1754 = vrot.lane.b32.xlu0 %v1715, 96
      %v1755 = vpop.permute.xlu0 %1754
      %1756 = vrot.lane.b32.xlu0 %v1720, 96
      %v1757 = vpop.permute.xlu0 %1756
      %v1761 = vsel %vm1054, %v1202, %v1729
      %v1762 = vsel %vm1054, %v1205, %v1731
      %v1763 = vsel %vm1054, %v1210, %v1733
      %vm1764 = vcmask 523264
      %v1765 = vsel %vm1764, %v1761, %v1741
      %v1766 = vsel %vm1764, %v1762, %v1743
      %v1767 = vsel %vm1764, %v1763, %v1745
      %vm1768 = vcmask 785408
      %v1769 = vsel %vm1768, %v1765, %v1753
      %v1770 = vsel %vm1768, %v1766, %v1755
      %v1771 = vsel %vm1768, %v1767, %v1757
      %1772 = vst [vmem:[#allocation3] sm:$0xff] %v1769
      %1773 = vst [vmem:[#allocation3 + $0x8] sm:$0xff] %v1770
      %1774 = vst [vmem:[#allocation3 + $0x10] sm:$0x1] %v1771
      %v1775 = vpack.c.bf16 %v980, %v976
      %v1776 = vpack.c.bf16 %v986, %v986
      %v1777 = vpack.c.bf16 %v982, %v978
      %v1778 = vpack.c.bf16 %v988, %v988
      %v1779 = vpack.c.bf16 %v1038, %v1035
      %v1780 = vpack.c.bf16 %v1043, %v1043
      %vm1781 = vsmask.f32 7424
      %v1783 = vshrl.u32 %v1775, 16
      %v1785 = vshll.u32 %v1775, 16
      %v1787 = vrot.slane %v1785, 1
      %v1788 = vor.u32 %v1783, %v1787
      %v1790 = vshll.u32 %v1776, 16
      %v1792 = vrot.slane %v1790, 1
      %v1793 = vsel %vm1781, %v1788, %v1792
      %v1794 = vshrl.u32 %v1776, 16
      %v1797 = vshrl.u32 %v1777, 16
      %v1799 = vshll.u32 %v1777, 16
      %v1801 = vrot.slane %v1799, 1
      %v1802 = vor.u32 %v1797, %v1801
      %v1804 = vshll.u32 %v1778, 16
      %v1806 = vrot.slane %v1804, 1
      %v1807 = vsel %vm1781, %v1802, %v1806
      %v1808 = vshrl.u32 %v1778, 16
      %v1811 = vsel %vm1054, %v1793, 0
      %v1814 = vsel %vm1054, %v1794, 0
      %v1817 = vsel %vm1054, %v1807, 0
      %v1820 = vsel %vm1054, %v1808, 0
      %1822 = vmatprep.subr.bf16.mxu0 0
      %1823 = vmatpush1.bf16.xpose.msra.mxu0 %v1817
      %1824 = vmatprep.subr.bf16.mxu0 0
      %1825 = vmatpush1.bf16.xpose.msra.mxu0 %v1820
      %1826 = vmatprep.subr.bf16.mxu0 0
      %1827 = vmatpush1.bf16.xpose.msra.mxu0 0
      %1828 = vmatprep.subr.bf16.mxu0 0
      %1829 = vmatpush1.bf16.xpose.msra.mxu0 0
      %1830 = vmatprep.subr.bf16.mxu0 0
      %1831 = vmatpush1.bf16.xpose.msra.mxu0 0
      %1832 = vmatprep.subr.bf16.mxu0 0
      %1833 = vmatpush1.bf16.xpose.msra.mxu0 0
      %1834 = vmatprep.subr.bf16.mxu0 0
      %1835 = vmatpush1.bf16.xpose.msra.mxu0 0
      %1836 = vmatprep.subr.bf16.mxu0 0
      %1837 = vmatpush1.bf16.xpose.msra.mxu0 0
      %1838 = vmatprep.subr.bf16.mxu0 0
      %1839 = vmatpush1.bf16.xpose.msra.mxu0 0
      %1840 = vmatprep.subr.bf16.mxu0 0
      %1841 = vmatpush1.bf16.xpose.msra.mxu0 0
      %1842 = vmatprep.subr.bf16.mxu0 0
      %1843 = vmatpush1.bf16.xpose.msra.mxu0 0
      %1844 = vmatprep.subr.bf16.mxu0 0
      %1845 = vmatpush1.bf16.xpose.msra.mxu0 0
      %1846 = vmatprep.subr.bf16.mxu0 0
      %1847 = vmatpush1.bf16.xpose.msra.mxu0 0
      %1848 = vmatprep.subr.bf16.mxu0 0
      %1849 = vmatpush1.bf16.xpose.msra.mxu0 0
      %1850 = vmatprep.subr.bf16.mxu0 0
      %1851 = vmatpush1.bf16.xpose.msra.mxu0 0
      %1852 = vmatprep.subr.bf16.mxu0 0
      %1853 = vmatpush1.bf16.xpose.msra.mxu0 0
      %1854 = vmatprep.mubr.bf16.mxu0 0
      %1855 = vmatmul.mubr.bf16.gmra.mrb[0].mxu0 %v1811
      %v1856 = vpop.f32.mrb[0].mxu0
      %v1857 = vadd.f32 0.0, %v1856
      %v1858 = vpop.f32.mrb[0].mxu0
      %v1859 = vpop.f32.mrb[0].mxu0
      %v1860 = vadd.f32 0.0, %v1859
      %v1861 = vpop.f32.mrb[0].mxu0
      %1862 = vmatprep.mubr.bf16.mxu0 0
      %1863 = vmatmul.mubr.bf16.gmra.mrb[0].mxu0 %v1814
      %v1864 = vpop.f32.mrb[0].mxu0
      %v1865 = vadd.f32 0.0, %v1864
      %v1866 = vpop.f32.mrb[0].mxu0
      %v1867 = vpop.f32.mrb[0].mxu0
      %v1868 = vpop.f32.mrb[0].mxu0
      %1869 = vdwg.mxu0
      %v1870 = vmul.f32 %v1857, 0.17677669
      %v1871 = vmul.f32 %v1860, 0.17677669
      %v1872 = vmul.f32 %v1865, 0.17677669
      %v1873 = vsel %vm1118, %v1870, -inf
      %1874 = vmax.xlane.f32.xlu0 %v1873
      %v1875 = vpop.xlane.xlu0 %1874
      %v1876 = vsel %vm1118, %v1871, -inf
      %1877 = vmax.xlane.f32.xlu0 %v1876
      %v1878 = vpop.xlane.xlu0 %1877
      %v1879 = vsel %vm1125, %v1872, -inf
      %1880 = vmax.xlane.f32.xlu0 %v1879
      %v1881 = vpop.xlane.xlu0 %1880
      %v1882 = vsub.f32 %v1870, %v1875
      %v1883 = vsub.f32 %v1871, %v1878
      %v1884 = vsub.f32 %v1872, %v1881
      %v1885 = vmul.f32 %v1882, 1.442695
      %v1886 = vpow.pop %v1885
      %v1887 = vmul.f32 %v1883, 1.442695
      %v1888 = vpow.pop %v1887
      %v1889 = vmul.f32 %v1884, 1.442695
      %v1890 = vpow.pop %v1889
      %v1891 = vsel %vm1118, %v1886, 0.0
      %1892 = vadd.xlane.f32.xlu0 %v1891
      %v1893 = vpop.xlane.xlu0 %1892
      %v1894 = vsel %vm1118, %v1888, 0.0
      %1895 = vadd.xlane.f32.xlu0 %v1894
      %v1896 = vpop.xlane.xlu0 %1895
      %v1897 = vsel %vm1125, %v1890, 0.0
      %1898 = vadd.xlane.f32.xlu0 %v1897
      %v1899 = vpop.xlane.xlu0 %1898
      %v1900 = vrcp.pop %v1893
      %v1901 = vrcp.pop %v1896
      %v1902 = vrcp.pop %v1899
      %v1903 = vmul.f32 %v1886, %v1900
      %v1904 = vmul.f32 %v1888, %v1901
      %v1905 = vmul.f32 %v1890, %v1902
      %v1906 = vpack.c.bf16 %v1904, %v1903
      %v1907 = vpack.c.bf16 %v1905, %v1905
      %v1909 = vshrl.u32 %v1779, 16
      %v1911 = vshll.u32 %v1779, 16
      %v1913 = vrot.slane %v1911, 1
      %v1914 = vor.u32 %v1909, %v1913
      %v1916 = vshll.u32 %v1780, 16
      %v1918 = vrot.slane %v1916, 1
      %v1919 = vsel %vm1781, %v1914, %v1918
      %v1920 = vshrl.u32 %v1780, 16
      %v1924 = vsel %vm1118, %v1906, 0
      %v1927 = vsel %vm1118, %v1907, 0
      %v1930 = vand.u32 %v1920, %v1163
      %1932 = vmatprep.subr.bf16.mxu0 0
      %1933 = vmatpush1.bf16.msra.mxu0 %v1919
      %1934 = vmatprep.subr.bf16.mxu0 0
      %1935 = vmatpush1.bf16.msra.mxu0 %v1930
      %1936 = vmatprep.subr.bf16.mxu0 0
      %1937 = vmatpush1.bf16.msra.mxu0 0
      %1938 = vmatprep.subr.bf16.mxu0 0
      %1939 = vmatpush1.bf16.msra.mxu0 0
      %1940 = vmatprep.subr.bf16.mxu0 0
      %1941 = vmatpush1.bf16.msra.mxu0 0
      %1942 = vmatprep.subr.bf16.mxu0 0
      %1943 = vmatpush1.bf16.msra.mxu0 0
      %1944 = vmatprep.subr.bf16.mxu0 0
      %1945 = vmatpush1.bf16.msra.mxu0 0
      %1946 = vmatprep.subr.bf16.mxu0 0
      %1947 = vmatpush1.bf16.msra.mxu0 0
      %1948 = vmatprep.subr.bf16.mxu0 0
      %1949 = vmatpush1.bf16.msra.mxu0 0
      %1950 = vmatprep.subr.bf16.mxu0 0
      %1951 = vmatpush1.bf16.msra.mxu0 0
      %1952 = vmatprep.subr.bf16.mxu0 0
      %1953 = vmatpush1.bf16.msra.mxu0 0
      %1954 = vmatprep.subr.bf16.mxu0 0
      %1955 = vmatpush1.bf16.msra.mxu0 0
      %1956 = vmatprep.subr.bf16.mxu0 0
      %1957 = vmatpush1.bf16.msra.mxu0 0
      %1958 = vmatprep.subr.bf16.mxu0 0
      %1959 = vmatpush1.bf16.msra.mxu0 0
      %1960 = vmatprep.subr.bf16.mxu0 0
      %1961 = vmatpush1.bf16.msra.mxu0 0
      %1962 = vmatprep.subr.bf16.mxu0 0
      %1963 = vmatpush1.bf16.msra.mxu0 0
      %1964 = vmatprep.mubr.bf16.mxu0 0
      %1965 = vmatmul.mubr.bf16.gmra.mrb[0].mxu0 %v1924
      %v1966 = vpop.f32.mrb[0].mxu0
      %v1967 = vadd.f32 0.0, %v1966
      %v1968 = vpop.f32.mrb[0].mxu0
      %v1969 = vpop.f32.mrb[0].mxu0
      %v1970 = vadd.f32 0.0, %v1969
      %v1971 = vpop.f32.mrb[0].mxu0
      %1972 = vmatprep.mubr.bf16.mxu0 0
      %1973 = vmatmul.mubr.bf16.gmra.mrb[0].mxu0 %v1927
      %v1974 = vpop.f32.mrb[0].mxu0
      %v1975 = vadd.f32 0.0, %v1974
      %v1976 = vpop.f32.mrb[0].mxu0
      %v1977 = vpop.f32.mrb[0].mxu0
      %v1978 = vpop.f32.mrb[0].mxu0
      %1979 = vdwg.mxu0
      %1980 = vrot.lane.b32.xlu0 %v1793, 96
      %v1981 = vpop.permute.xlu0 %1980
      %1982 = vrot.lane.b32.xlu0 %v1794, 96
      %v1983 = vpop.permute.xlu0 %1982
      %1984 = vrot.lane.b32.xlu0 %v1807, 96
      %v1985 = vpop.permute.xlu0 %1984
      %1986 = vrot.lane.b32.xlu0 %v1808, 96
      %v1987 = vpop.permute.xlu0 %1986
      %v1989 = vsel %vm1054, %v1981, 0
      %v1992 = vsel %vm1054, %v1983, 0
      %v1995 = vsel %vm1054, %v1985, 0
      %v1998 = vsel %vm1054, %v1987, 0
      %2000 = vmatprep.subr.bf16.mxu0 0
      %2001 = vmatpush1.bf16.xpose.msra.mxu0 %v1995
      %2002 = vmatprep.subr.bf16.mxu0 0
      %2003 = vmatpush1.bf16.xpose.msra.mxu0 %v1998
      %2004 = vmatprep.subr.bf16.mxu0 0
      %2005 = vmatpush1.bf16.xpose.msra.mxu0 0
      %2006 = vmatprep.subr.bf16.mxu0 0
      %2007 = vmatpush1.bf16.xpose.msra.mxu0 0
      %2008 = vmatprep.subr.bf16.mxu0 0
      %2009 = vmatpush1.bf16.xpose.msra.mxu0 0
      %2010 = vmatprep.subr.bf16.mxu0 0
      %2011 = vmatpush1.bf16.xpose.msra.mxu0 0
      %2012 = vmatprep.subr.bf16.mxu0 0
      %2013 = vmatpush1.bf16.xpose.msra.mxu0 0
      %2014 = vmatprep.subr.bf16.mxu0 0
      %2015 = vmatpush1.bf16.xpose.msra.mxu0 0
      %2016 = vmatprep.subr.bf16.mxu0 0
      %2017 = vmatpush1.bf16.xpose.msra.mxu0 0
      %2018 = vmatprep.subr.bf16.mxu0 0
      %2019 = vmatpush1.bf16.xpose.msra.mxu0 0
      %2020 = vmatprep.subr.bf16.mxu0 0
      %2021 = vmatpush1.bf16.xpose.msra.mxu0 0
      %2022 = vmatprep.subr.bf16.mxu0 0
      %2023 = vmatpush1.bf16.xpose.msra.mxu0 0
      %2024 = vmatprep.subr.bf16.mxu0 0
      %2025 = vmatpush1.bf16.xpose.msra.mxu0 0
      %2026 = vmatprep.subr.bf16.mxu0 0
      %2027 = vmatpush1.bf16.xpose.msra.mxu0 0
      %2028 = vmatprep.subr.bf16.mxu0 0
      %2029 = vmatpush1.bf16.xpose.msra.mxu0 0
      %2030 = vmatprep.subr.bf16.mxu0 0
      %2031 = vmatpush1.bf16.xpose.msra.mxu0 0
      %2032 = vmatprep.mubr.bf16.mxu0 0
      %2033 = vmatmul.mubr.bf16.gmra.mrb[0].mxu0 %v1989
      %v2034 = vpop.f32.mrb[0].mxu0
      %v2035 = vadd.f32 0.0, %v2034
      %v2036 = vpop.f32.mrb[0].mxu0
      %v2037 = vpop.f32.mrb[0].mxu0
      %v2038 = vadd.f32 0.0, %v2037
      %v2039 = vpop.f32.mrb[0].mxu0
      %2040 = vmatprep.mubr.bf16.mxu0 0
      %2041 = vmatmul.mubr.bf16.gmra.mrb[0].mxu0 %v1992
      %v2042 = vpop.f32.mrb[0].mxu0
      %v2043 = vadd.f32 0.0, %v2042
      %v2044 = vpop.f32.mrb[0].mxu0
      %v2045 = vpop.f32.mrb[0].mxu0
      %v2046 = vpop.f32.mrb[0].mxu0
      %2047 = vdwg.mxu0
      %v2048 = vmul.f32 %v2035, 0.17677669
      %v2049 = vmul.f32 %v2038, 0.17677669
      %v2050 = vmul.f32 %v2043, 0.17677669
      %v2051 = vsel %vm1118, %v2048, -inf
      %2052 = vmax.xlane.f32.xlu0 %v2051
      %v2053 = vpop.xlane.xlu0 %2052
      %v2054 = vsel %vm1118, %v2049, -inf
      %2055 = vmax.xlane.f32.xlu0 %v2054
      %v2056 = vpop.xlane.xlu0 %2055
      %v2057 = vsel %vm1125, %v2050, -inf
      %2058 = vmax.xlane.f32.xlu0 %v2057
      %v2059 = vpop.xlane.xlu0 %2058
      %v2060 = vsub.f32 %v2048, %v2053
      %v2061 = vsub.f32 %v2049, %v2056
      %v2062 = vsub.f32 %v2050, %v2059
      %v2063 = vmul.f32 %v2060, 1.442695
      %v2064 = vpow.pop %v2063
      %v2065 = vmul.f32 %v2061, 1.442695
      %v2066 = vpow.pop %v2065
      %v2067 = vmul.f32 %v2062, 1.442695
      %v2068 = vpow.pop %v2067
      %v2069 = vsel %vm1118, %v2064, 0.0
      %2070 = vadd.xlane.f32.xlu0 %v2069
      %v2071 = vpop.xlane.xlu0 %2070
      %v2072 = vsel %vm1118, %v2066, 0.0
      %2073 = vadd.xlane.f32.xlu0 %v2072
      %v2074 = vpop.xlane.xlu0 %2073
      %v2075 = vsel %vm1125, %v2068, 0.0
      %2076 = vadd.xlane.f32.xlu0 %v2075
      %v2077 = vpop.xlane.xlu0 %2076
      %v2078 = vrcp.pop %v2071
      %v2079 = vrcp.pop %v2074
      %v2080 = vrcp.pop %v2077
      %v2081 = vmul.f32 %v2064, %v2078
      %v2082 = vmul.f32 %v2066, %v2079
      %v2083 = vmul.f32 %v2068, %v2080
      %v2084 = vpack.c.bf16 %v2082, %v2081
      %v2085 = vpack.c.bf16 %v2083, %v2083
      %2086 = vrot.lane.b32.xlu0 %v1919, 96
      %v2087 = vpop.permute.xlu0 %2086
      %2088 = vrot.lane.b32.xlu0 %v1920, 96
      %v2089 = vpop.permute.xlu0 %2088
      %v2092 = vsel %vm1118, %v2084, 0
      %v2095 = vsel %vm1118, %v2085, 0
      %v2098 = vand.u32 %v2089, %v1163
      %2100 = vmatprep.subr.bf16.mxu0 0
      %2101 = vmatpush1.bf16.msra.mxu0 %v2087
      %2102 = vmatprep.subr.bf16.mxu0 0
      %2103 = vmatpush1.bf16.msra.mxu0 %v2098
      %2104 = vmatprep.subr.bf16.mxu0 0
      %2105 = vmatpush1.bf16.msra.mxu0 0
      %2106 = vmatprep.subr.bf16.mxu0 0
      %2107 = vmatpush1.bf16.msra.mxu0 0
      %2108 = vmatprep.subr.bf16.mxu0 0
      %2109 = vmatpush1.bf16.msra.mxu0 0
      %2110 = vmatprep.subr.bf16.mxu0 0
      %2111 = vmatpush1.bf16.msra.mxu0 0
      %2112 = vmatprep.subr.bf16.mxu0 0
      %2113 = vmatpush1.bf16.msra.mxu0 0
      %2114 = vmatprep.subr.bf16.mxu0 0
      %2115 = vmatpush1.bf16.msra.mxu0 0
      %2116 = vmatprep.subr.bf16.mxu0 0
      %2117 = vmatpush1.bf16.msra.mxu0 0
      %2118 = vmatprep.subr.bf16.mxu0 0
      %2119 = vmatpush1.bf16.msra.mxu0 0
      %2120 = vmatprep.subr.bf16.mxu0 0
      %2121 = vmatpush1.bf16.msra.mxu0 0
      %2122 = vmatprep.subr.bf16.mxu0 0
      %2123 = vmatpush1.bf16.msra.mxu0 0
      %2124 = vmatprep.subr.bf16.mxu0 0
      %2125 = vmatpush1.bf16.msra.mxu0 0
      %2126 = vmatprep.subr.bf16.mxu0 0
      %2127 = vmatpush1.bf16.msra.mxu0 0
      %2128 = vmatprep.subr.bf16.mxu0 0
      %2129 = vmatpush1.bf16.msra.mxu0 0
      %2130 = vmatprep.subr.bf16.mxu0 0
      %2131 = vmatpush1.bf16.msra.mxu0 0
      %2132 = vmatprep.mubr.bf16.mxu0 0
      %2133 = vmatmul.mubr.bf16.gmra.mrb[0].mxu0 %v2092
      %v2134 = vpop.f32.mrb[0].mxu0
      %v2135 = vadd.f32 0.0, %v2134
      %v2136 = vpop.f32.mrb[0].mxu0
      %v2137 = vpop.f32.mrb[0].mxu0
      %v2138 = vadd.f32 0.0, %v2137
      %v2139 = vpop.f32.mrb[0].mxu0
      %2140 = vmatprep.mubr.bf16.mxu0 0
      %2141 = vmatmul.mubr.bf16.gmra.mrb[0].mxu0 %v2095
      %v2142 = vpop.f32.mrb[0].mxu0
      %v2143 = vadd.f32 0.0, %v2142
      %v2144 = vpop.f32.mrb[0].mxu0
      %v2145 = vpop.f32.mrb[0].mxu0
      %v2146 = vpop.f32.mrb[0].mxu0
      %2147 = vdwg.mxu0
      %2148 = vrot.lane.b32.xlu0 %v1793, 64
      %v2149 = vpop.permute.xlu0 %2148
      %2150 = vrot.lane.b32.xlu0 %v1794, 64
      %v2151 = vpop.permute.xlu0 %2150
      %2152 = vrot.lane.b32.xlu0 %v1807, 64
      %v2153 = vpop.permute.xlu0 %2152
      %2154 = vrot.lane.b32.xlu0 %v1808, 64
      %v2155 = vpop.permute.xlu0 %2154
      %v2157 = vsel %vm1054, %v2149, 0
      %v2160 = vsel %vm1054, %v2151, 0
      %v2163 = vsel %vm1054, %v2153, 0
      %v2166 = vsel %vm1054, %v2155, 0
      %2168 = vmatprep.subr.bf16.mxu0 0
      %2169 = vmatpush1.bf16.xpose.msra.mxu0 %v2163
      %2170 = vmatprep.subr.bf16.mxu0 0
      %2171 = vmatpush1.bf16.xpose.msra.mxu0 %v2166
      %2172 = vmatprep.subr.bf16.mxu0 0
      %2173 = vmatpush1.bf16.xpose.msra.mxu0 0
      %2174 = vmatprep.subr.bf16.mxu0 0
      %2175 = vmatpush1.bf16.xpose.msra.mxu0 0
      %2176 = vmatprep.subr.bf16.mxu0 0
      %2177 = vmatpush1.bf16.xpose.msra.mxu0 0
      %2178 = vmatprep.subr.bf16.mxu0 0
      %2179 = vmatpush1.bf16.xpose.msra.mxu0 0
      %2180 = vmatprep.subr.bf16.mxu0 0
      %2181 = vmatpush1.bf16.xpose.msra.mxu0 0
      %2182 = vmatprep.subr.bf16.mxu0 0
      %2183 = vmatpush1.bf16.xpose.msra.mxu0 0
      %2184 = vmatprep.subr.bf16.mxu0 0
      %2185 = vmatpush1.bf16.xpose.msra.mxu0 0
      %2186 = vmatprep.subr.bf16.mxu0 0
      %2187 = vmatpush1.bf16.xpose.msra.mxu0 0
      %2188 = vmatprep.subr.bf16.mxu0 0
      %2189 = vmatpush1.bf16.xpose.msra.mxu0 0
      %2190 = vmatprep.subr.bf16.mxu0 0
      %2191 = vmatpush1.bf16.xpose.msra.mxu0 0
      %2192 = vmatprep.subr.bf16.mxu0 0
      %2193 = vmatpush1.bf16.xpose.msra.mxu0 0
      %2194 = vmatprep.subr.bf16.mxu0 0
      %2195 = vmatpush1.bf16.xpose.msra.mxu0 0
      %2196 = vmatprep.subr.bf16.mxu0 0
      %2197 = vmatpush1.bf16.xpose.msra.mxu0 0
      %2198 = vmatprep.subr.bf16.mxu0 0
      %2199 = vmatpush1.bf16.xpose.msra.mxu0 0
      %2200 = vmatprep.mubr.bf16.mxu0 0
      %2201 = vmatmul.mubr.bf16.gmra.mrb[0].mxu0 %v2157
      %v2202 = vpop.f32.mrb[0].mxu0
      %v2203 = vadd.f32 0.0, %v2202
      %v2204 = vpop.f32.mrb[0].mxu0
      %v2205 = vpop.f32.mrb[0].mxu0
      %v2206 = vadd.f32 0.0, %v2205
      %v2207 = vpop.f32.mrb[0].mxu0
      %2208 = vmatprep.mubr.bf16.mxu0 0
      %2209 = vmatmul.mubr.bf16.gmra.mrb[0].mxu0 %v2160
      %v2210 = vpop.f32.mrb[0].mxu0
      %v2211 = vadd.f32 0.0, %v2210
      %v2212 = vpop.f32.mrb[0].mxu0
      %v2213 = vpop.f32.mrb[0].mxu0
      %v2214 = vpop.f32.mrb[0].mxu0
      %2215 = vdwg.mxu0
      %v2216 = vmul.f32 %v2203, 0.17677669
      %v2217 = vmul.f32 %v2206, 0.17677669
      %v2218 = vmul.f32 %v2211, 0.17677669
      %v2219 = vsel %vm1118, %v2216, -inf
      %2220 = vmax.xlane.f32.xlu0 %v2219
      %v2221 = vpop.xlane.xlu0 %2220
      %v2222 = vsel %vm1118, %v2217, -inf
      %2223 = vmax.xlane.f32.xlu0 %v2222
      %v2224 = vpop.xlane.xlu0 %2223
      %v2225 = vsel %vm1125, %v2218, -inf
      %2226 = vmax.xlane.f32.xlu0 %v2225
      %v2227 = vpop.xlane.xlu0 %2226
      %v2228 = vsub.f32 %v2216, %v2221
      %v2229 = vsub.f32 %v2217, %v2224
      %v2230 = vsub.f32 %v2218, %v2227
      %v2231 = vmul.f32 %v2228, 1.442695
      %v2232 = vpow.pop %v2231
      %v2233 = vmul.f32 %v2229, 1.442695
      %v2234 = vpow.pop %v2233
      %v2235 = vmul.f32 %v2230, 1.442695
      %v2236 = vpow.pop %v2235
      %v2237 = vsel %vm1118, %v2232, 0.0
      %2238 = vadd.xlane.f32.xlu0 %v2237
      %v2239 = vpop.xlane.xlu0 %2238
      %v2240 = vsel %vm1118, %v2234, 0.0
      %2241 = vadd.xlane.f32.xlu0 %v2240
      %v2242 = vpop.xlane.xlu0 %2241
      %v2243 = vsel %vm1125, %v2236, 0.0
      %2244 = vadd.xlane.f32.xlu0 %v2243
      %v2245 = vpop.xlane.xlu0 %2244
      %v2246 = vrcp.pop %v2239
      %v2247 = vrcp.pop %v2242
      %v2248 = vrcp.pop %v2245
      %v2249 = vmul.f32 %v2232, %v2246
      %v2250 = vmul.f32 %v2234, %v2247
      %v2251 = vmul.f32 %v2236, %v2248
      %v2252 = vpack.c.bf16 %v2250, %v2249
      %v2253 = vpack.c.bf16 %v2251, %v2251
      %2254 = vrot.lane.b32.xlu0 %v1919, 64
      %v2255 = vpop.permute.xlu0 %2254
      %2256 = vrot.lane.b32.xlu0 %v1920, 64
      %v2257 = vpop.permute.xlu0 %2256
      %v2260 = vsel %vm1118, %v2252, 0
      %v2263 = vsel %vm1118, %v2253, 0
      %v2266 = vand.u32 %v2257, %v1163
      %2268 = vmatprep.subr.bf16.mxu0 0
      %2269 = vmatpush1.bf16.msra.mxu0 %v2255
      %2270 = vmatprep.subr.bf16.mxu0 0
      %2271 = vmatpush1.bf16.msra.mxu0 %v2266
      %2272 = vmatprep.subr.bf16.mxu0 0
      %2273 = vmatpush1.bf16.msra.mxu0 0
      %2274 = vmatprep.subr.bf16.mxu0 0
      %2275 = vmatpush1.bf16.msra.mxu0 0
      %2276 = vmatprep.subr.bf16.mxu0 0
      %2277 = vmatpush1.bf16.msra.mxu0 0
      %2278 = vmatprep.subr.bf16.mxu0 0
      %2279 = vmatpush1.bf16.msra.mxu0 0
      %2280 = vmatprep.subr.bf16.mxu0 0
      %2281 = vmatpush1.bf16.msra.mxu0 0
      %2282 = vmatprep.subr.bf16.mxu0 0
      %2283 = vmatpush1.bf16.msra.mxu0 0
      %2284 = vmatprep.subr.bf16.mxu0 0
      %2285 = vmatpush1.bf16.msra.mxu0 0
      %2286 = vmatprep.subr.bf16.mxu0 0
      %2287 = vmatpush1.bf16.msra.mxu0 0
      %2288 = vmatprep.subr.bf16.mxu0 0
      %2289 = vmatpush1.bf16.msra.mxu0 0
      %2290 = vmatprep.subr.bf16.mxu0 0
      %2291 = vmatpush1.bf16.msra.mxu0 0
      %2292 = vmatprep.subr.bf16.mxu0 0
      %2293 = vmatpush1.bf16.msra.mxu0 0
      %2294 = vmatprep.subr.bf16.mxu0 0
      %2295 = vmatpush1.bf16.msra.mxu0 0
      %2296 = vmatprep.subr.bf16.mxu0 0
      %2297 = vmatpush1.bf16.msra.mxu0 0
      %2298 = vmatprep.subr.bf16.mxu0 0
      %2299 = vmatpush1.bf16.msra.mxu0 0
      %2300 = vmatprep.mubr.bf16.mxu0 0
      %2301 = vmatmul.mubr.bf16.gmra.mrb[0].mxu0 %v2260
      %v2302 = vpop.f32.mrb[0].mxu0
      %v2303 = vadd.f32 0.0, %v2302
      %v2304 = vpop.f32.mrb[0].mxu0
      %v2305 = vpop.f32.mrb[0].mxu0
      %v2306 = vadd.f32 0.0, %v2305
      %v2307 = vpop.f32.mrb[0].mxu0
      %2308 = vmatprep.mubr.bf16.mxu0 0
      %2309 = vmatmul.mubr.bf16.gmra.mrb[0].mxu0 %v2263
      %v2310 = vpop.f32.mrb[0].mxu0
      %v2311 = vadd.f32 0.0, %v2310
      %v2312 = vpop.f32.mrb[0].mxu0
      %v2313 = vpop.f32.mrb[0].mxu0
      %v2314 = vpop.f32.mrb[0].mxu0
      %2315 = vdwg.mxu0
      %2316 = vrot.lane.b32.xlu0 %v1793, 32
      %v2317 = vpop.permute.xlu0 %2316
      %2318 = vrot.lane.b32.xlu0 %v1794, 32
      %v2319 = vpop.permute.xlu0 %2318
      %2320 = vrot.lane.b32.xlu0 %v1807, 32
      %v2321 = vpop.permute.xlu0 %2320
      %2322 = vrot.lane.b32.xlu0 %v1808, 32
      %v2323 = vpop.permute.xlu0 %2322
      %v2325 = vsel %vm1054, %v2317, 0
      %v2328 = vsel %vm1054, %v2319, 0
      %v2331 = vsel %vm1054, %v2321, 0
      %v2334 = vsel %vm1054, %v2323, 0
      %2336 = vmatprep.subr.bf16.mxu0 0
      %2337 = vmatpush1.bf16.xpose.msra.mxu0 %v2331
      %2338 = vmatprep.subr.bf16.mxu0 0
      %2339 = vmatpush1.bf16.xpose.msra.mxu0 %v2334
      %2340 = vmatprep.subr.bf16.mxu0 0
      %2341 = vmatpush1.bf16.xpose.msra.mxu0 0
      %2342 = vmatprep.subr.bf16.mxu0 0
      %2343 = vmatpush1.bf16.xpose.msra.mxu0 0
      %2344 = vmatprep.subr.bf16.mxu0 0
      %2345 = vmatpush1.bf16.xpose.msra.mxu0 0
      %2346 = vmatprep.subr.bf16.mxu0 0
      %2347 = vmatpush1.bf16.xpose.msra.mxu0 0
      %2348 = vmatprep.subr.bf16.mxu0 0
      %2349 = vmatpush1.bf16.xpose.msra.mxu0 0
      %2350 = vmatprep.subr.bf16.mxu0 0
      %2351 = vmatpush1.bf16.xpose.msra.mxu0 0
      %2352 = vmatprep.subr.bf16.mxu0 0
      %2353 = vmatpush1.bf16.xpose.msra.mxu0 0
      %2354 = vmatprep.subr.bf16.mxu0 0
      %2355 = vmatpush1.bf16.xpose.msra.mxu0 0
      %2356 = vmatprep.subr.bf16.mxu0 0
      %2357 = vmatpush1.bf16.xpose.msra.mxu0 0
      %2358 = vmatprep.subr.bf16.mxu0 0
      %2359 = vmatpush1.bf16.xpose.msra.mxu0 0
      %2360 = vmatprep.subr.bf16.mxu0 0
      %2361 = vmatpush1.bf16.xpose.msra.mxu0 0
      %2362 = vmatprep.subr.bf16.mxu0 0
      %2363 = vmatpush1.bf16.xpose.msra.mxu0 0
      %2364 = vmatprep.subr.bf16.mxu0 0
      %2365 = vmatpush1.bf16.xpose.msra.mxu0 0
      %2366 = vmatprep.subr.bf16.mxu0 0
      %2367 = vmatpush1.bf16.xpose.msra.mxu0 0
      %2368 = vmatprep.mubr.bf16.mxu0 0
      %2369 = vmatmul.mubr.bf16.gmra.mrb[0].mxu0 %v2325
      %v2370 = vpop.f32.mrb[0].mxu0
      %v2371 = vadd.f32 0.0, %v2370
      %v2372 = vpop.f32.mrb[0].mxu0
      %v2373 = vpop.f32.mrb[0].mxu0
      %v2374 = vadd.f32 0.0, %v2373
      %v2375 = vpop.f32.mrb[0].mxu0
      %2376 = vmatprep.mubr.bf16.mxu0 0
      %2377 = vmatmul.mubr.bf16.gmra.mrb[0].mxu0 %v2328
      %v2378 = vpop.f32.mrb[0].mxu0
      %v2379 = vadd.f32 0.0, %v2378
      %v2380 = vpop.f32.mrb[0].mxu0
      %v2381 = vpop.f32.mrb[0].mxu0
      %v2382 = vpop.f32.mrb[0].mxu0
      %2383 = vdwg.mxu0
      %v2384 = vmul.f32 %v2371, 0.17677669
      %v2385 = vmul.f32 %v2374, 0.17677669
      %v2386 = vmul.f32 %v2379, 0.17677669
      %v2387 = vsel %vm1118, %v2384, -inf
      %2388 = vmax.xlane.f32.xlu0 %v2387
      %v2389 = vpop.xlane.xlu0 %2388
      %v2390 = vsel %vm1118, %v2385, -inf
      %2391 = vmax.xlane.f32.xlu0 %v2390
      %v2392 = vpop.xlane.xlu0 %2391
      %v2393 = vsel %vm1125, %v2386, -inf
      %2394 = vmax.xlane.f32.xlu0 %v2393
      %v2395 = vpop.xlane.xlu0 %2394
      %v2396 = vsub.f32 %v2384, %v2389
      %v2397 = vsub.f32 %v2385, %v2392
      %v2398 = vsub.f32 %v2386, %v2395
      %v2399 = vmul.f32 %v2396, 1.442695
      %v2400 = vpow.pop %v2399
      %v2401 = vmul.f32 %v2397, 1.442695
      %v2402 = vpow.pop %v2401
      %v2403 = vmul.f32 %v2398, 1.442695
      %v2404 = vpow.pop %v2403
      %v2405 = vsel %vm1118, %v2400, 0.0
      %2406 = vadd.xlane.f32.xlu0 %v2405
      %v2407 = vpop.xlane.xlu0 %2406
      %v2408 = vsel %vm1118, %v2402, 0.0
      %2409 = vadd.xlane.f32.xlu0 %v2408
      %v2410 = vpop.xlane.xlu0 %2409
      %v2411 = vsel %vm1125, %v2404, 0.0
      %2412 = vadd.xlane.f32.xlu0 %v2411
      %v2413 = vpop.xlane.xlu0 %2412
      %v2414 = vrcp.pop %v2407
      %v2415 = vrcp.pop %v2410
      %v2416 = vrcp.pop %v2413
      %v2417 = vmul.f32 %v2400, %v2414
      %v2418 = vmul.f32 %v2402, %v2415
      %v2419 = vmul.f32 %v2404, %v2416
      %v2420 = vpack.c.bf16 %v2418, %v2417
      %v2421 = vpack.c.bf16 %v2419, %v2419
      %2422 = vrot.lane.b32.xlu0 %v1919, 32
      %v2423 = vpop.permute.xlu0 %2422
      %2424 = vrot.lane.b32.xlu0 %v1920, 32
      %v2425 = vpop.permute.xlu0 %2424
      %v2428 = vsel %vm1118, %v2420, 0
      %v2431 = vsel %vm1118, %v2421, 0
      %v2434 = vand.u32 %v2425, %v1163
      %2436 = vmatprep.subr.bf16.mxu0 0
      %2437 = vmatpush1.bf16.msra.mxu0 %v2423
      %2438 = vmatprep.subr.bf16.mxu0 0
      %2439 = vmatpush1.bf16.msra.mxu0 %v2434
      %2440 = vmatprep.subr.bf16.mxu0 0
      %2441 = vmatpush1.bf16.msra.mxu0 0
      %2442 = vmatprep.subr.bf16.mxu0 0
      %2443 = vmatpush1.bf16.msra.mxu0 0
      %2444 = vmatprep.subr.bf16.mxu0 0
      %2445 = vmatpush1.bf16.msra.mxu0 0
      %2446 = vmatprep.subr.bf16.mxu0 0
      %2447 = vmatpush1.bf16.msra.mxu0 0
      %2448 = vmatprep.subr.bf16.mxu0 0
      %2449 = vmatpush1.bf16.msra.mxu0 0
      %2450 = vmatprep.subr.bf16.mxu0 0
      %2451 = vmatpush1.bf16.msra.mxu0 0
      %2452 = vmatprep.subr.bf16.mxu0 0
      %2453 = vmatpush1.bf16.msra.mxu0 0
      %2454 = vmatprep.subr.bf16.mxu0 0
      %2455 = vmatpush1.bf16.msra.mxu0 0
      %2456 = vmatprep.subr.bf16.mxu0 0
      %2457 = vmatpush1.bf16.msra.mxu0 0
      %2458 = vmatprep.subr.bf16.mxu0 0
      %2459 = vmatpush1.bf16.msra.mxu0 0
      %2460 = vmatprep.subr.bf16.mxu0 0
      %2461 = vmatpush1.bf16.msra.mxu0 0
      %2462 = vmatprep.subr.bf16.mxu0 0
      %2463 = vmatpush1.bf16.msra.mxu0 0
      %2464 = vmatprep.subr.bf16.mxu0 0
      %2465 = vmatpush1.bf16.msra.mxu0 0
      %2466 = vmatprep.subr.bf16.mxu0 0
      %2467 = vmatpush1.bf16.msra.mxu0 0
      %2468 = vmatprep.mubr.bf16.mxu0 0
      %2469 = vmatmul.mubr.bf16.gmra.mrb[0].mxu0 %v2428
      %v2470 = vpop.f32.mrb[0].mxu0
      %v2471 = vadd.f32 0.0, %v2470
      %v2472 = vpop.f32.mrb[0].mxu0
      %v2473 = vpop.f32.mrb[0].mxu0
      %v2474 = vadd.f32 0.0, %v2473
      %v2475 = vpop.f32.mrb[0].mxu0
      %2476 = vmatprep.mubr.bf16.mxu0 0
      %2477 = vmatmul.mubr.bf16.gmra.mrb[0].mxu0 %v2431
      %v2478 = vpop.f32.mrb[0].mxu0
      %v2479 = vadd.f32 0.0, %v2478
      %v2480 = vpop.f32.mrb[0].mxu0
      %v2481 = vpop.f32.mrb[0].mxu0
      %v2482 = vpop.f32.mrb[0].mxu0
      %2483 = vdwg.mxu0
      %2487 = vrot.lane.b32.xlu0 %v2135, 32
      %v2488 = vpop.permute.xlu0 %2487
      %2489 = vrot.lane.b32.xlu0 %v2138, 32
      %v2490 = vpop.permute.xlu0 %2489
      %2491 = vrot.lane.b32.xlu0 %v2143, 32
      %v2492 = vpop.permute.xlu0 %2491
      %2499 = vrot.lane.b32.xlu0 %v2303, 64
      %v2500 = vpop.permute.xlu0 %2499
      %2501 = vrot.lane.b32.xlu0 %v2306, 64
      %v2502 = vpop.permute.xlu0 %2501
      %2503 = vrot.lane.b32.xlu0 %v2311, 64
      %v2504 = vpop.permute.xlu0 %2503
      %2511 = vrot.lane.b32.xlu0 %v2471, 96
      %v2512 = vpop.permute.xlu0 %2511
      %2513 = vrot.lane.b32.xlu0 %v2474, 96
      %v2514 = vpop.permute.xlu0 %2513
      %2515 = vrot.lane.b32.xlu0 %v2479, 96
      %v2516 = vpop.permute.xlu0 %2515
      %v2520 = vsel %vm1054, %v1967, %v2488
      %v2521 = vsel %vm1054, %v1970, %v2490
      %v2522 = vsel %vm1054, %v1975, %v2492
      %v2523 = vsel %vm1764, %v2520, %v2500
      %v2524 = vsel %vm1764, %v2521, %v2502
      %v2525 = vsel %vm1764, %v2522, %v2504
      %v2526 = vsel %vm1768, %v2523, %v2512
      %v2527 = vsel %vm1768, %v2524, %v2514
      %v2528 = vsel %vm1768, %v2525, %v2516
      %2529 = vst [vmem:[#allocation3 + $0x11] sm:$0xff] %v2526
      %2530 = vst [vmem:[#allocation3 + $0x19] sm:$0xff] %v2527
      %2531 = vst [vmem:[#allocation3 + $0x21] sm:$0x1] %v2528
      %v2532 = vld [vmem:[#allocation3] sm:$0xff]
      %v2533 = vld [vmem:[#allocation3 + $0x8] sm:$0xff]
      %v2534 = vld [vmem:[#allocation3 + $0x10] sm:$0xff]
      %v2535 = vld [vmem:[#allocation3 + $0x18] sm:$0xff]
      %v2536 = vld [vmem:[#allocation3 + $0x20] sm:$0x3]
      %v2537 = vpack.c.bf16 %v2533, %v2532
      %v2538 = vpack.c.bf16 %v2535, %v2534
      %v2539 = vpack.c.bf16 %v2536, %v2536
      %v2540 = vld [vmem:[%s617] sm:$0xf]
      %v2541 = vld [vmem:[%s617 + $0x4] sm:$0xf]
      %v2542 = vld [vmem:[%s617 + $0x8] sm:$0xf]
      %v2543 = vld [vmem:[%s617 + $0xc] sm:$0xf]
      %v2544 = vld [vmem:[%s617 + $0x10] sm:$0xf]
      %v2545 = vld [vmem:[%s617 + $0x14] sm:$0xf]
      %v2546 = vld [vmem:[%s617 + $0x18] sm:$0xf]
      %v2547 = vld [vmem:[%s617 + $0x1c] sm:$0xf]
      %v2548 = vld [vmem:[%s617 + $0x20] sm:$0xf]
      %v2549 = vld [vmem:[%s617 + $0x24] sm:$0xf]
      %v2550 = vld [vmem:[%s617 + $0x28] sm:$0xf]
      %v2551 = vld [vmem:[%s617 + $0x2c] sm:$0xf]
      %v2552 = vld [vmem:[%s617 + $0x30] sm:$0xf]
      %v2553 = vld [vmem:[%s617 + $0x34] sm:$0xf]
      %v2554 = vld [vmem:[%s617 + $0x38] sm:$0xf]
      %v2555 = vld [vmem:[%s617 + $0x3c] sm:$0xf]
      %v2556 = vld [vmem:[%s620] sm:$0x1]
      %v2558 = vlaneseq
      %v2559 = vshrl.u32 %v2558, 7
      %v2560 = vsub.s32 0, %v2559
      %v2561 = vrot.slane %v2556, %v2560
      %v2579 = vunpack.c.l.b16 %v2540
      %v2580 = vunpack.c.l.b16 %v2541
      %v2581 = vunpack.c.l.b16 %v2542
      %v2582 = vunpack.c.l.b16 %v2543
      %v2583 = vunpack.c.l.b16 %v2544
      %v2584 = vunpack.c.l.b16 %v2545
      %v2585 = vunpack.c.l.b16 %v2546
      %v2586 = vunpack.c.l.b16 %v2547
      %v2587 = vunpack.c.l.b16 %v2548
      %v2588 = vunpack.c.l.b16 %v2549
      %v2589 = vunpack.c.l.b16 %v2550
      %v2590 = vunpack.c.l.b16 %v2551
      %v2591 = vunpack.c.l.b16 %v2552
      %v2592 = vunpack.c.l.b16 %v2553
      %v2593 = vunpack.c.l.b16 %v2554
      %v2594 = vunpack.c.l.b16 %v2555
      %v2595 = vpack.c.b16 %v2580, %v2579
      %v2596 = vpack.c.b16 %v2582, %v2581
      %v2597 = vpack.c.b16 %v2584, %v2583
      %v2598 = vpack.c.b16 %v2586, %v2585
      %v2599 = vpack.c.b16 %v2588, %v2587
      %v2600 = vpack.c.b16 %v2590, %v2589
      %v2601 = vpack.c.b16 %v2592, %v2591
      %v2602 = vpack.c.b16 %v2594, %v2593
      %2611 = vmatprep.subr.bf16.mxu0 0
      %2612 = vmatpush1.bf16.msra.mxu0 %v2595
      %2613 = vmatprep.subr.bf16.mxu0 0
      %2614 = vmatpush1.bf16.msra.mxu0 %v2596
      %2615 = vmatprep.subr.bf16.mxu0 0
      %2616 = vmatpush1.bf16.msra.mxu0 %v2597
      %2617 = vmatprep.subr.bf16.mxu0 0
      %2618 = vmatpush1.bf16.msra.mxu0 %v2598
      %2619 = vmatprep.subr.bf16.mxu0 0
      %2620 = vmatpush1.bf16.msra.mxu0 %v2599
      %2621 = vmatprep.subr.bf16.mxu0 0
      %2622 = vmatpush1.bf16.msra.mxu0 %v2600
      %2623 = vmatprep.subr.bf16.mxu0 0
      %2624 = vmatpush1.bf16.msra.mxu0 %v2601
      %2625 = vmatprep.subr.bf16.mxu0 0
      %2626 = vmatpush1.bf16.msra.mxu0 %v2602
      %2627 = vmatprep.subr.bf16.mxu0 0
      %2628 = vmatpush1.bf16.msra.mxu0 0
      %2629 = vmatprep.subr.bf16.mxu0 0
      %2630 = vmatpush1.bf16.msra.mxu0 0
      %2631 = vmatprep.subr.bf16.mxu0 0
      %2632 = vmatpush1.bf16.msra.mxu0 0
      %2633 = vmatprep.subr.bf16.mxu0 0
      %2634 = vmatpush1.bf16.msra.mxu0 0
      %2635 = vmatprep.subr.bf16.mxu0 0
      %2636 = vmatpush1.bf16.msra.mxu0 0
      %2637 = vmatprep.subr.bf16.mxu0 0
      %2638 = vmatpush1.bf16.msra.mxu0 0
      %2639 = vmatprep.subr.bf16.mxu0 0
      %2640 = vmatpush1.bf16.msra.mxu0 0
      %2641 = vmatprep.subr.bf16.mxu0 0
      %2642 = vmatpush1.bf16.msra.mxu0 0
      %2643 = vmatprep.mubr.bf16.mxu0 0
      %2644 = vmatmul.mubr.bf16.gmra.mrb[0].mxu0 %v2537
      %v2645 = vpop.f32.mrb[0].mxu0
      %v2646 = vadd.f32 %v2561, %v2645
      %v2647 = vpop.f32.mrb[0].mxu0
      %v2648 = vpop.f32.mrb[0].mxu0
      %v2649 = vadd.f32 %v2561, %v2648
      %v2650 = vpop.f32.mrb[0].mxu0
      %2651 = vmatprep.mubr.bf16.mxu0 0
      %2652 = vmatmul.mubr.bf16.gmra.mrb[0].mxu0 %v2538
      %v2653 = vpop.f32.mrb[0].mxu0
      %v2654 = vadd.f32 %v2561, %v2653
      %v2655 = vpop.f32.mrb[0].mxu0
      %v2656 = vpop.f32.mrb[0].mxu0
      %v2657 = vadd.f32 %v2561, %v2656
      %v2658 = vpop.f32.mrb[0].mxu0
      %2659 = vmatprep.mubr.bf16.mxu0 0
      %2660 = vmatmul.mubr.bf16.gmra.mrb[0].mxu0 %v2539
      %v2661 = vpop.f32.mrb[0].mxu0
      %v2662 = vadd.f32 %v2561, %v2661
      %v2663 = vpop.f32.mrb[0].mxu0
      %v2664 = vpop.f32.mrb[0].mxu0
      %v2665 = vpop.f32.mrb[0].mxu0
      %2666 = vdwg.mxu0
      %v2667 = vadd.f32 %v663, %v2646
      %v2668 = vadd.f32 %v664, %v2649
      %v2669 = vadd.f32 %v665, %v2654
      %v2670 = vadd.f32 %v666, %v2657
      %v2671 = vadd.f32 %v667, %v2662
      %v2672 = vld [vmem:[%s623] sm:$0x1]
      %v2673 = vld [vmem:[%s626] sm:$0x1]
      %2674 = vadd.xlane.f32.xlu0 %v2667
      %v2675 = vpop.xlane.xlu0 %2674
      %2676 = vadd.xlane.f32.xlu0 %v2668
      %v2677 = vpop.xlane.xlu0 %2676
      %2678 = vadd.xlane.f32.xlu0 %v2669
      %v2679 = vpop.xlane.xlu0 %2678
      %2680 = vadd.xlane.f32.xlu0 %v2670
      %v2681 = vpop.xlane.xlu0 %2680
      %v2682 = vsel %vm678, %v2671, 0.0
      %2683 = vadd.xlane.f32.xlu0 %v2682
      %v2684 = vpop.xlane.xlu0 %2683
      %v2685 = vmul.f32 %v2675, %v682
      %v2686 = vmul.f32 %v2677, %v682
      %v2687 = vmul.f32 %v2679, %v682
      %v2688 = vmul.f32 %v2681, %v682
      %v2689 = vmul.f32 %v2684, %v682
      %v2690 = vsub.f32 %v2667, %v2685
      %v2691 = vsub.f32 %v2668, %v2686
      %v2692 = vsub.f32 %v2669, %v2687
      %v2693 = vsub.f32 %v2670, %v2688
      %v2694 = vsub.f32 %v2671, %v2689
      %v2695 = vmul.f32 %v2690, %v2690
      %v2696 = vmul.f32 %v2691, %v2691
      %v2697 = vmul.f32 %v2692, %v2692
      %v2698 = vmul.f32 %v2693, %v2693
      %v2699 = vmul.f32 %v2694, %v2694
      %2700 = vadd.xlane.f32.xlu0 %v2695
      %v2701 = vpop.xlane.xlu0 %2700
      %2702 = vadd.xlane.f32.xlu0 %v2696
      %v2703 = vpop.xlane.xlu0 %2702
      %2704 = vadd.xlane.f32.xlu0 %v2697
      %v2705 = vpop.xlane.xlu0 %2704
      %2706 = vadd.xlane.f32.xlu0 %v2698
      %v2707 = vpop.xlane.xlu0 %2706
      %v2708 = vsel %vm678, %v2699, 0.0
      %2709 = vadd.xlane.f32.xlu0 %v2708
      %v2710 = vpop.xlane.xlu0 %2709
      %v2711 = vmul.f32 %v2701, %v682
      %v2712 = vmul.f32 %v2703, %v682
      %v2713 = vmul.f32 %v2705, %v682
      %v2714 = vmul.f32 %v2707, %v682
      %v2715 = vmul.f32 %v2710, %v682
      %v2716 = vadd.f32 %v2711, 1e-05
      %v2717 = vadd.f32 %v2712, 1e-05
      %v2718 = vadd.f32 %v2713, 1e-05
      %v2719 = vadd.f32 %v2714, 1e-05
      %v2720 = vadd.f32 %v2715, 1e-05
      %v2721 = vrsqrt.pop %v2716
      %v2722 = vrsqrt.pop %v2717
      %v2723 = vrsqrt.pop %v2718
      %v2724 = vrsqrt.pop %v2719
      %v2725 = vrsqrt.pop %v2720
      %v2726 = vmul.f32 %v2690, %v2721
      %v2727 = vmul.f32 %v2691, %v2722
      %v2728 = vmul.f32 %v2692, %v2723
      %v2729 = vmul.f32 %v2693, %v2724
      %v2730 = vmul.f32 %v2694, %v2725
      %v2732 = vlaneseq
      %v2733 = vshrl.u32 %v2732, 7
      %v2734 = vsub.s32 0, %v2733
      %v2735 = vrot.slane %v2672, %v2734
      %v2737 = vmul.f32 %v2726, %v2735
      %v2738 = vmul.f32 %v2727, %v2735
      %v2739 = vmul.f32 %v2728, %v2735
      %v2740 = vmul.f32 %v2729, %v2735
      %v2741 = vmul.f32 %v2730, %v2735
      %v2743 = vlaneseq
      %v2744 = vshrl.u32 %v2743, 7
      %v2745 = vsub.s32 0, %v2744
      %v2746 = vrot.slane %v2673, %v2745
      %v2748 = vadd.f32 %v2737, %v2746
      %v2749 = vadd.f32 %v2738, %v2746
      %v2750 = vadd.f32 %v2739, %v2746
      %v2751 = vadd.f32 %v2740, %v2746
      %v2752 = vadd.f32 %v2741, %v2746
      %v2753 = vpack.c.bf16 %v2749, %v2748
      %v2754 = vpack.c.bf16 %v2751, %v2750
      %v2755 = vpack.c.bf16 %v2752, %v2752
      %v2756 = vld [vmem:[%s631] sm:$0xf]
      %v2757 = vld [vmem:[%s631 + $0x4] sm:$0xf]
      %v2758 = vld [vmem:[%s631 + $0x8] sm:$0xf]
      %v2759 = vld [vmem:[%s631 + $0xc] sm:$0xf]
      %v2760 = vld [vmem:[%s631 + $0x10] sm:$0xf]
      %v2761 = vld [vmem:[%s631 + $0x14] sm:$0xf]
      %v2762 = vld [vmem:[%s631 + $0x18] sm:$0xf]
      %v2763 = vld [vmem:[%s631 + $0x1c] sm:$0xf]
      %v2764 = vld [vmem:[%s631 + $0x20] sm:$0xf]
      %v2765 = vld [vmem:[%s631 + $0x24] sm:$0xf]
      %v2766 = vld [vmem:[%s631 + $0x28] sm:$0xf]
      %v2767 = vld [vmem:[%s631 + $0x2c] sm:$0xf]
      %v2768 = vld [vmem:[%s631 + $0x30] sm:$0xf]
      %v2769 = vld [vmem:[%s631 + $0x34] sm:$0xf]
      %v2770 = vld [vmem:[%s631 + $0x38] sm:$0xf]
      %v2771 = vld [vmem:[%s631 + $0x3c] sm:$0xf]
      %v2772 = vld [vmem:[%s634] sm:$0x1]
      %v2774 = vlaneseq
      %v2775 = vshrl.u32 %v2774, 7
      %v2776 = vsub.s32 0, %v2775
      %v2777 = vrot.slane %v2772, %v2776
      %v2795 = vunpack.c.l.b16 %v2756
      %v2796 = vunpack.c.l.b16 %v2757
      %v2797 = vunpack.c.l.b16 %v2758
      %v2798 = vunpack.c.l.b16 %v2759
      %v2799 = vunpack.c.l.b16 %v2760
      %v2800 = vunpack.c.l.b16 %v2761
      %v2801 = vunpack.c.l.b16 %v2762
      %v2802 = vunpack.c.l.b16 %v2763
      %v2803 = vunpack.c.l.b16 %v2764
      %v2804 = vunpack.c.l.b16 %v2765
      %v2805 = vunpack.c.l.b16 %v2766
      %v2806 = vunpack.c.l.b16 %v2767
      %v2807 = vunpack.c.l.b16 %v2768
      %v2808 = vunpack.c.l.b16 %v2769
      %v2809 = vunpack.c.l.b16 %v2770
      %v2810 = vunpack.c.l.b16 %v2771
      %v2811 = vpack.c.b16 %v2796, %v2795
      %v2812 = vpack.c.b16 %v2798, %v2797
      %v2813 = vpack.c.b16 %v2800, %v2799
      %v2814 = vpack.c.b16 %v2802, %v2801
      %v2815 = vpack.c.b16 %v2804, %v2803
      %v2816 = vpack.c.b16 %v2806, %v2805
      %v2817 = vpack.c.b16 %v2808, %v2807
      %v2818 = vpack.c.b16 %v2810, %v2809
      %2827 = vmatprep.subr.bf16.mxu0 0
      %2828 = vmatpush1.bf16.msra.mxu0 %v2811
      %2829 = vmatprep.subr.bf16.mxu0 0
      %2830 = vmatpush1.bf16.msra.mxu0 %v2812
      %2831 = vmatprep.subr.bf16.mxu0 0
      %2832 = vmatpush1.bf16.msra.mxu0 %v2813
      %2833 = vmatprep.subr.bf16.mxu0 0
      %2834 = vmatpush1.bf16.msra.mxu0 %v2814
      %2835 = vmatprep.subr.bf16.mxu0 0
      %2836 = vmatpush1.bf16.msra.mxu0 %v2815
      %2837 = vmatprep.subr.bf16.mxu0 0
      %2838 = vmatpush1.bf16.msra.mxu0 %v2816
      %2839 = vmatprep.subr.bf16.mxu0 0
      %2840 = vmatpush1.bf16.msra.mxu0 %v2817
      %2841 = vmatprep.subr.bf16.mxu0 0
      %2842 = vmatpush1.bf16.msra.mxu0 %v2818
      %2843 = vmatprep.subr.bf16.mxu0 0
      %2844 = vmatpush1.bf16.msra.mxu0 0
      %2845 = vmatprep.subr.bf16.mxu0 0
      %2846 = vmatpush1.bf16.msra.mxu0 0
      %2847 = vmatprep.subr.bf16.mxu0 0
      %2848 = vmatpush1.bf16.msra.mxu0 0
      %2849 = vmatprep.subr.bf16.mxu0 0
      %2850 = vmatpush1.bf16.msra.mxu0 0
      %2851 = vmatprep.subr.bf16.mxu0 0
      %2852 = vmatpush1.bf16.msra.mxu0 0
      %2853 = vmatprep.subr.bf16.mxu0 0
      %2854 = vmatpush1.bf16.msra.mxu0 0
      %2855 = vmatprep.subr.bf16.mxu0 0
      %2856 = vmatpush1.bf16.msra.mxu0 0
      %2857 = vmatprep.subr.bf16.mxu0 0
      %2858 = vmatpush1.bf16.msra.mxu0 0
      %2859 = vmatprep.mubr.bf16.mxu0 0
      %2860 = vmatmul.mubr.bf16.gmra.mrb[0].mxu0 %v2753
      %v2861 = vpop.f32.mrb[0].mxu0
      %v2862 = vadd.f32 %v2777, %v2861
      %v2863 = vpop.f32.mrb[0].mxu0
      %v2864 = vpop.f32.mrb[0].mxu0
      %v2865 = vadd.f32 %v2777, %v2864
      %v2866 = vpop.f32.mrb[0].mxu0
      %2867 = vmatprep.mubr.bf16.mxu0 0
      %2868 = vmatmul.mubr.bf16.gmra.mrb[0].mxu0 %v2754
      %v2869 = vpop.f32.mrb[0].mxu0
      %v2870 = vadd.f32 %v2777, %v2869
      %v2871 = vpop.f32.mrb[0].mxu0
      %v2872 = vpop.f32.mrb[0].mxu0
      %v2873 = vadd.f32 %v2777, %v2872
      %v2874 = vpop.f32.mrb[0].mxu0
      %2875 = vmatprep.mubr.bf16.mxu0 0
      %2876 = vmatmul.mubr.bf16.gmra.mrb[0].mxu0 %v2755
      %v2877 = vpop.f32.mrb[0].mxu0
      %v2878 = vadd.f32 %v2777, %v2877
      %v2879 = vpop.f32.mrb[0].mxu0
      %v2880 = vpop.f32.mrb[0].mxu0
      %v2881 = vpop.f32.mrb[0].mxu0
      %2882 = vdwg.mxu0
      %v2883 = vmul.f32 %v2862, 0.5
      %v2884 = vmul.f32 %v2865, 0.5
      %v2885 = vmul.f32 %v2870, 0.5
      %v2886 = vmul.f32 %v2873, 0.5
      %v2887 = vmul.f32 %v2878, 0.5
      %v2888 = vmul.f32 %v2862, 0.70710677
      %v2889 = vmul.f32 %v2865, 0.70710677
      %v2890 = vmul.f32 %v2870, 0.70710677
      %v2891 = vmul.f32 %v2873, 0.70710677
      %v2892 = vmul.f32 %v2878, 0.70710677
      %v2893 = verf.f32.pop %v2888
      %v2894 = verf.f32.pop %v2889
      %v2895 = verf.f32.pop %v2890
      %v2896 = verf.f32.pop %v2891
      %v2897 = verf.f32.pop %v2892
      %v2898 = vadd.f32 %v2893, 1.0
      %v2899 = vadd.f32 %v2894, 1.0
      %v2900 = vadd.f32 %v2895, 1.0
      %v2901 = vadd.f32 %v2896, 1.0
      %v2902 = vadd.f32 %v2897, 1.0
      %v2903 = vmul.f32 %v2883, %v2898
      %v2904 = vmul.f32 %v2884, %v2899
      %v2905 = vmul.f32 %v2885, %v2900
      %v2906 = vmul.f32 %v2886, %v2901
      %v2907 = vmul.f32 %v2887, %v2902
      %v2908 = vpack.c.bf16 %v2904, %v2903
      %v2909 = vpack.c.bf16 %v2906, %v2905
      %v2910 = vpack.c.bf16 %v2907, %v2907
      %v2911 = vld [vmem:[%s639] sm:$0xf]
      %v2912 = vld [vmem:[%s639 + $0x4] sm:$0xf]
      %v2913 = vld [vmem:[%s639 + $0x8] sm:$0xf]
      %v2914 = vld [vmem:[%s639 + $0xc] sm:$0xf]
      %v2915 = vld [vmem:[%s639 + $0x10] sm:$0xf]
      %v2916 = vld [vmem:[%s639 + $0x14] sm:$0xf]
      %v2917 = vld [vmem:[%s639 + $0x18] sm:$0xf]
      %v2918 = vld [vmem:[%s639 + $0x1c] sm:$0xf]
      %v2919 = vld [vmem:[%s639 + $0x20] sm:$0xf]
      %v2920 = vld [vmem:[%s639 + $0x24] sm:$0xf]
      %v2921 = vld [vmem:[%s639 + $0x28] sm:$0xf]
      %v2922 = vld [vmem:[%s639 + $0x2c] sm:$0xf]
      %v2923 = vld [vmem:[%s639 + $0x30] sm:$0xf]
      %v2924 = vld [vmem:[%s639 + $0x34] sm:$0xf]
      %v2925 = vld [vmem:[%s639 + $0x38] sm:$0xf]
      %v2926 = vld [vmem:[%s639 + $0x3c] sm:$0xf]
      %v2927 = vld [vmem:[%s642] sm:$0x1]
      %v2929 = vlaneseq
      %v2930 = vshrl.u32 %v2929, 7
      %v2931 = vsub.s32 0, %v2930
      %v2932 = vrot.slane %v2927, %v2931
      %v2950 = vunpack.c.l.b16 %v2911
      %v2951 = vunpack.c.l.b16 %v2912
      %v2952 = vunpack.c.l.b16 %v2913
      %v2953 = vunpack.c.l.b16 %v2914
      %v2954 = vunpack.c.l.b16 %v2915
      %v2955 = vunpack.c.l.b16 %v2916
      %v2956 = vunpack.c.l.b16 %v2917
      %v2957 = vunpack.c.l.b16 %v2918
      %v2958 = vunpack.c.l.b16 %v2919
      %v2959 = vunpack.c.l.b16 %v2920
      %v2960 = vunpack.c.l.b16 %v2921
      %v2961 = vunpack.c.l.b16 %v2922
      %v2962 = vunpack.c.l.b16 %v2923
      %v2963 = vunpack.c.l.b16 %v2924
      %v2964 = vunpack.c.l.b16 %v2925
      %v2965 = vunpack.c.l.b16 %v2926
      %v2966 = vpack.c.b16 %v2951, %v2950
      %v2967 = vpack.c.b16 %v2953, %v2952
      %v2968 = vpack.c.b16 %v2955, %v2954
      %v2969 = vpack.c.b16 %v2957, %v2956
      %v2970 = vpack.c.b16 %v2959, %v2958
      %v2971 = vpack.c.b16 %v2961, %v2960
      %v2972 = vpack.c.b16 %v2963, %v2962
      %v2973 = vpack.c.b16 %v2965, %v2964
      %2982 = vmatprep.subr.bf16.mxu0 0
      %2983 = vmatpush1.bf16.msra.mxu0 %v2966
      %2984 = vmatprep.subr.bf16.mxu0 0
      %2985 = vmatpush1.bf16.msra.mxu0 %v2967
      %2986 = vmatprep.subr.bf16.mxu0 0
      %2987 = vmatpush1.bf16.msra.mxu0 %v2968
      %2988 = vmatprep.subr.bf16.mxu0 0
      %2989 = vmatpush1.bf16.msra.mxu0 %v2969
      %2990 = vmatprep.subr.bf16.mxu0 0
      %2991 = vmatpush1.bf16.msra.mxu0 %v2970
      %2992 = vmatprep.subr.bf16.mxu0 0
      %2993 = vmatpush1.bf16.msra.mxu0 %v2971
      %2994 = vmatprep.subr.bf16.mxu0 0
      %2995 = vmatpush1.bf16.msra.mxu0 %v2972
      %2996 = vmatprep.subr.bf16.mxu0 0
      %2997 = vmatpush1.bf16.msra.mxu0 %v2973
      %2998 = vmatprep.subr.bf16.mxu0 0
      %2999 = vmatpush1.bf16.msra.mxu0 0
      %3000 = vmatprep.subr.bf16.mxu0 0
      %3001 = vmatpush1.bf16.msra.mxu0 0
      %3002 = vmatprep.subr.bf16.mxu0 0
      %3003 = vmatpush1.bf16.msra.mxu0 0
      %3004 = vmatprep.subr.bf16.mxu0 0
      %3005 = vmatpush1.bf16.msra.mxu0 0
      %3006 = vmatprep.subr.bf16.mxu0 0
      %3007 = vmatpush1.bf16.msra.mxu0 0
      %3008 = vmatprep.subr.bf16.mxu0 0
      %3009 = vmatpush1.bf16.msra.mxu0 0
      %3010 = vmatprep.subr.bf16.mxu0 0
      %3011 = vmatpush1.bf16.msra.mxu0 0
      %3012 = vmatprep.subr.bf16.mxu0 0
      %3013 = vmatpush1.bf16.msra.mxu0 0
      %3014 = vmatprep.mubr.bf16.mxu0 0
      %3015 = vmatmul.mubr.bf16.gmra.mrb[0].mxu0 %v2908
      %v3016 = vpop.f32.mrb[0].mxu0
      %v3017 = vadd.f32 %v2932, %v3016
      %v3018 = vpop.f32.mrb[0].mxu0
      %v3019 = vpop.f32.mrb[0].mxu0
      %v3020 = vadd.f32 %v2932, %v3019
      %v3021 = vpop.f32.mrb[0].mxu0
      %3022 = vmatprep.mubr.bf16.mxu0 0
      %3023 = vmatmul.mubr.bf16.gmra.mrb[0].mxu0 %v2909
      %v3024 = vpop.f32.mrb[0].mxu0
      %v3025 = vadd.f32 %v2932, %v3024
      %v3026 = vpop.f32.mrb[0].mxu0
      %v3027 = vpop.f32.mrb[0].mxu0
      %v3028 = vadd.f32 %v2932, %v3027
      %v3029 = vpop.f32.mrb[0].mxu0
      %3030 = vmatprep.mubr.bf16.mxu0 0
      %3031 = vmatmul.mubr.bf16.gmra.mrb[0].mxu0 %v2910
      %v3032 = vpop.f32.mrb[0].mxu0
      %v3033 = vadd.f32 %v2932, %v3032
      %v3034 = vpop.f32.mrb[0].mxu0
      %v3035 = vpop.f32.mrb[0].mxu0
      %v3036 = vpop.f32.mrb[0].mxu0
      %3037 = vdwg.mxu0
      %v3038 = vadd.f32 %v2667, %v3017
      %v3039 = vadd.f32 %v2668, %v3020
      %v3040 = vadd.f32 %v2669, %v3025
      %v3041 = vadd.f32 %v2670, %v3028
      %v3042 = vadd.f32 %v2671, %v3033
      %3043 = vst [vmem:[#allocation2] sm:$0xff] %v3038
      %3044 = vst [vmem:[#allocation2 + $0x8] sm:$0xff] %v3039
      %3045 = vst [vmem:[#allocation2 + $0x10] sm:$0xff] %v3040
      %3046 = vst [vmem:[#allocation2 + $0x18] sm:$0xff] %v3041
      %3047 = vst [vmem:[#allocation2 + $0x20] sm:$0x3] %v3042
      %p3048 = scmp.eq.s32.totalorder %s29, 1
      // Predicated region
      $region77: #{vit_forward.4} parent=71 // pred_check
        %p3049 = pneg %p3048
      $region78: #{vit_forward.4} parent=71 // pred_check_branch
        %3051 = sbr.rel (%p3049) target = $region80
      $region79: #{vit_forward.4} parent=71 // pred_region
        %3052 = vst [vmem:[%s647] sm:$0xff] %v3038
        %3053 = vst [vmem:[%s647 + $0x8] sm:$0xff] %v3039
        %3054 = vst [vmem:[%s647 + $0x10] sm:$0xff] %v3040
        %3055 = vst [vmem:[%s647 + $0x18] sm:$0xff] %v3041
        %3056 = vst [vmem:[%s647 + $0x20] sm:$0x3] %v3042
      $region80: #{vit_forward.4} parent=71 // pred_fallthru
        _
      %p3057 = scmp.lt.s32.totalorder %s28, 0
      %s3058 = scalar_select %p3057, %s28, 0
      %s3059 = smul.addr %s3058, 5
      %s3060 = smul.addr %s3059, 8
      %s3061 = scalar_lea.vmem %s13, %s3060
      // Predicated region
      $region81: #{vit_forward.4} parent=71 // pred_check
        %p3062 = pneg %p392
      $region82: #{vit_forward.4} parent=71 // pred_check_branch
        %3064 = sbr.rel (%p3062) target = $region84
      $region83: #{vit_forward.4} parent=71 // pred_region
        _
      $region84: #{vit_forward.4} parent=71 // pred_fallthru
        _
      // Predicated region
      $region85: #{vit_forward.4} parent=71 // pred_check
        %p3065 = pneg %p392
      $region86: #{vit_forward.4} parent=71 // pred_check_branch
        %3067 = sbr.rel (%p3065) target = $region88
      $region87: #{vit_forward.4} parent=71 // pred_region
        %p3068 = scmp.lt.s32.totalorder %s28, 0
        %s3069 = scalar_select %p3068, %s28, 0
        %s3070 = smul.addr %s3069, 5
        %s3071 = smul.addr %s3070, 8
        %s3072 = scalar_lea.vmem %s13, %s3071
      $region88: #{vit_forward.4} parent=71 // pred_fallthru
        _
    $region72: #{vit_forward.4} parent=5 // pred_fallthru
      _
    %p3073 = scmp.le.s32.totalorder 2, %s19
    // Predicated region
    $region89: #{vit_forward.4} parent=5 // pred_check
      %p3074 = pneg %p3073
    $region90: #{vit_forward.4} parent=5 // pred_check_branch
      %3076 = sbr.rel (%p3074) target = $region92
    $region91: #{vit_forward.4} parent=5 // pred_region
      %s3077 = ssub.s32 %s19, 2
    $region92: #{vit_forward.4} parent=5 // pred_fallthru
      _
  $region6: #{vit_forward.4} parent=0 // loop_footer
    %s23 = sadd.s32 1, %s19
  $region7: #{vit_forward.4} parent=0 // loop_footer_branch
    %18 = sbr.rel target = $region3
  $region8: #{vit_forward.4} parent=0 // loop_exit
    _

</llo_original>
